<compile_context>
chip_gen: v7x
topology: tpu7x:2x2x1
jax: 0.10.0
libtpu: 0.0.40
codegen_flags: <defaults>
</compile_context>

<pallas_src>
import functools

import jax
import jax.numpy as jnp
from jax.experimental import pallas as pl
from jax.experimental.pallas import tpu as pltpu


def _round_up(x, m):
    return (x + m - 1) // m * m


# ----------------------------------------------------------------------------
# Pallas kernel: tiled GEMM, f32 accumulator, bias folded into init, (+ ReLU).
# ----------------------------------------------------------------------------
def _matmul_bias_kernel(a_ref, b_ref, bias_ref, o_ref, acc_ref, *, apply_relu):
    @pl.when(pl.program_id(2) == 0)
    def _init():
        # Bias folded into the accumulator init (saves a full-tile f32 add at
        # finalize).
        acc_ref[...] = jnp.broadcast_to(bias_ref[...], acc_ref.shape)

    acc_ref[...] += jnp.dot(a_ref[...], b_ref[...],
                            preferred_element_type=jnp.float32)

    @pl.when(pl.program_id(2) == pl.num_programs(2) - 1)
    def _finalize():
        out = acc_ref[...]
        if apply_relu:
            out = jnp.maximum(out, 0.0)
        o_ref[...] = out.astype(o_ref.dtype)


def pallas_matmul_bias(a, b, bias, apply_relu, out_dtype=jnp.bfloat16):
    """a: (M, K) patches, b: (K, N) weights, bias: (N,). Returns (M, N)."""
    M, K = a.shape
    K2, N = b.shape
    assert K == K2

    a = a.astype(jnp.bfloat16)
    b = b.astype(jnp.bfloat16)
    bias2d = bias.astype(jnp.float32).reshape(1, N)

    # Reduction-axis tiling: a single full-K block when it fits (Mosaic pads
    # the sub-(8,128) tile in VMEM); otherwise a 128-multiple divisor of K so
    # no HBM-side padding of the big patch matrix is needed.  Padding is kept
    # only as a last-resort fallback.
    if K <= 1024:
        tk = K
    else:
        tk = 0
        for cand in range(1024, 127, -128):
            if K % cand == 0:
                tk = cand
                break
        if tk == 0:
            tk = 512
            Kp = _round_up(K, tk)
            a = jnp.pad(a, ((0, 0), (0, Kp - K)))
            b = jnp.pad(b, ((0, Kp - K), (0, 0)))
            K = Kp

    # Larger output tiles (review): tm up to 512 rows; tn = N (all layers of
    # this network have N <= 512, so a single lane-block).  Ragged last M/N
    # blocks are safe: OOB input reads only feed OOB output rows/cols, which
    # Pallas masks on writeback.
    tm = min(512, M)
    tn = N if N <= 512 else 512

    grid = (pl.cdiv(M, tm), pl.cdiv(N, tn), K // tk)

    out_bytes = jnp.dtype(out_dtype).itemsize
    cost = pl.CostEstimate(
        flops=2 * M * N * K,
        transcendentals=0,
        bytes_accessed=M * K * 2 + K * N * 2 + M * N * out_bytes + N * 4,
    )

    return pl.pallas_call(
        functools.partial(_matmul_bias_kernel, apply_relu=apply_relu),
        out_shape=jax.ShapeDtypeStruct((M, N), out_dtype),
        grid_spec=pltpu.PrefetchScalarGridSpec(
            num_scalar_prefetch=0,
            grid=grid,
            in_specs=[
                pl.BlockSpec((tm, tk), lambda i, j, k: (i, k)),
                pl.BlockSpec((tk, tn), lambda i, j, k: (k, j)),
                pl.BlockSpec((1, tn), lambda i, j, k: (0, j)),
            ],
            out_specs=pl.BlockSpec((tm, tn), lambda i, j, k: (i, j)),
            scratch_shapes=[pltpu.VMEM((tm, tn), jnp.float32)],
        ),
        compiler_params=pltpu.CompilerParams(
            dimension_semantics=("parallel", "parallel", "arbitrary"),
            vmem_limit_bytes=32 * 1024 * 1024,   # v5e scoped default is 16 MiB
        ),
        cost_estimate=cost,
    )(a, b, bias2d)


# ----------------------------------------------------------------------------
# Thin JAX glue: NHWC im2col (bf16), layer wrappers, weight re-layout.
# ----------------------------------------------------------------------------
def _im2col_nhwc(x, kh, kw, stride, pad):
    """x: (N,H,W,C) -> patches (N*Ho*Wo, kh*kw*C); K index = (i*kw + j)*C + c."""
    N, H, W, C = x.shape
    if pad:
        x = jnp.pad(x, ((0, 0), (pad, pad), (pad, pad), (0, 0)))
    Ho = (H + 2 * pad - kh) // stride + 1
    Wo = (W + 2 * pad - kw) // stride + 1
    cols = []
    for i in range(kh):
        for j in range(kw):
            cols.append(x[:, i:i + stride * Ho:stride, j:j + stride * Wo:stride, :])
    patches = jnp.concatenate(cols, axis=-1)               # (N, Ho, Wo, kh*kw*C)
    return patches.reshape(N * Ho * Wo, kh * kw * C), Ho, Wo


def conv2d_nhwc(x, w_mat, bias, kh, kw, stride, pad, relu,
                out_dtype=jnp.bfloat16):
    """x: (N,H,W,C), w_mat: (kh*kw*C, O) (PyTorch ordering), bias: (O,)."""
    N = x.shape[0]
    O = w_mat.shape[1]
    patches, Ho, Wo = _im2col_nhwc(x, kh, kw, stride, pad)
    out = pallas_matmul_bias(patches, w_mat, bias, relu, out_dtype=out_dtype)
    return out.reshape(N, Ho, Wo, O)                        # NHWC, no transpose


def _conv_wmat(weight):
    """PyTorch Conv2d weight (O, C, kh, kw) -> (kh*kw*C, O)."""
    O = weight.shape[0]
    return weight.transpose(2, 3, 1, 0).reshape(-1, O)


# Sub-pixel decomposition of ConvTranspose2d(k=4, stride=2, padding=1), fused
# over the 4 output phases on a SHARED 3x3/pad-1/stride-1 patch.
# Per axis: output phase p at position m reads input offsets / kernel taps:
#   p=0: x[m-1]*w[3] + x[m]*w[1]       p=1: x[m]*w[2] + x[m+1]*w[0]
# A 3x3 pad-1 patch tap ky covers input offset ky-1, giving:
_PHASE_TAP = {
    0: {0: 3, 1: 1},   # ky -> transpose-kernel tap (ky=2 unused -> zero)
    1: {1: 2, 2: 0},   # (ky=0 unused -> zero)
}


def _deconv_fused_wmat(weight):
    """PyTorch ConvTranspose2d weight (Cin, Cout, 4, 4) -> (9*Cin, 4*Cout)
    matrix (one 3x3 weight block per output phase, unused taps zeroed).
    Column groups ordered phase (py, px) = (0,0),(0,1),(1,0),(1,1)."""
    Cin, Cout = weight.shape[0], weight.shape[1]
    cols = []
    for py in (0, 1):
        for px in (0, 1):
            w3 = jnp.zeros((3, 3, Cin, Cout), weight.dtype)
            for ky, ty in _PHASE_TAP[py].items():
                for kx, tx in _PHASE_TAP[px].items():
                    w3 = w3.at[ky, kx].set(weight[:, :, ty, tx])
            cols.append(w3.reshape(9 * Cin, Cout))
    return jnp.concatenate(cols, axis=1)                    # (9*Cin, 4*Cout)


def conv_transpose2d_nhwc(x, w_fused, bias4, relu):
    """ConvTranspose2d(k=4, stride=2, pad=1): ONE GEMM over shared 3x3 patches
    producing all 4 sub-pixel phases, then a free depth-to-space reshape."""
    N, H, W, _ = x.shape
    Cout = w_fused.shape[1] // 4
    patches, Ho, Wo = _im2col_nhwc(x, 3, 3, 1, 1)           # Ho=H, Wo=W
    out = pallas_matmul_bias(patches, w_fused, bias4, relu,
                             out_dtype=jnp.bfloat16)        # (N*H*W, 4*Cout)
    out = out.reshape(N, H, W, 2, 2, Cout)                  # (.., py, px, c)
    out = out.transpose(0, 1, 3, 2, 4, 5).reshape(N, 2 * H, 2 * W, Cout)
    return out


# ----------------------------------------------------------------------------
# Parameters (PyTorch layout) + GEMM-ready re-layout + forward pass.
# ----------------------------------------------------------------------------
def init_params(key, in_channels, base_channels):
    ks = jax.random.split(key, 14)
    bc = base_channels
    scale = 0.1

    def w(k, shape):
        return scale * jax.random.normal(k, shape, jnp.float32)

    return {
        "enc1_w": w(ks[0], (bc, in_channels, 3, 3)),      "enc1_b": w(ks[1], (bc,)),
        "enc2_w": w(ks[2], (2 * bc, bc, 4, 4)),           "enc2_b": w(ks[3], (2 * bc,)),
        "enc3_w": w(ks[4], (4 * bc, 2 * bc, 4, 4)),       "enc3_b": w(ks[5], (4 * bc,)),
        "bott_w": w(ks[6], (4 * bc, 4 * bc, 3, 3)),       "bott_b": w(ks[7], (4 * bc,)),
        # ConvTranspose2d weights are (Cin, Cout, kh, kw) in PyTorch.
        "dec3_w": w(ks[8], (4 * bc, 2 * bc, 4, 4)),       "dec3_b": w(ks[9], (2 * bc,)),
        "dec2_w": w(ks[10], (4 * bc, bc, 4, 4)),          "dec2_b": w(ks[11], (bc,)),
        "dec1_w": w(ks[12], (in_channels, 2 * bc, 3, 3)), "dec1_b": w(ks[13], (in_channels,)),
    }


def prepare_params(raw):
    """Convert PyTorch-layout weights into bf16 GEMM-ready matrices (once)."""
    cw = lambda w: _conv_wmat(w).astype(jnp.bfloat16)
    dw = lambda w: _deconv_fused_wmat(w).astype(jnp.bfloat16)
    return {
        "enc1_wm": cw(raw["enc1_w"]), "enc1_b": raw["enc1_b"],
        "enc2_wm": cw(raw["enc2_w"]), "enc2_b": raw["enc2_b"],
        "enc3_wm": cw(raw["enc3_w"]), "enc3_b": raw["enc3_b"],
        "bott_wm": cw(raw["bott_w"]), "bott_b": raw["bott_b"],
        "dec3_wm": dw(raw["dec3_w"]), "dec3_b": jnp.tile(raw["dec3_b"], 4),
        "dec2_wm": dw(raw["dec2_w"]), "dec2_b": jnp.tile(raw["dec2_b"], 4),
        "dec1_wm": cw(raw["dec1_w"]), "dec1_b": raw["dec1_b"],
    }


def diffusion_unet_forward(params, x_nchw):
    # NCHW -> NHWC once; bf16 activations end-to-end (im2col/concat/pad stay
    # bf16, halving HBM traffic).  Final layer emits f32.
    x = x_nchw.transpose(0, 2, 3, 1).astype(jnp.bfloat16)
    e1 = conv2d_nhwc(x,  params["enc1_wm"], params["enc1_b"], 3, 3, 1, 1, True)
    e2 = conv2d_nhwc(e1, params["enc2_wm"], params["enc2_b"], 4, 4, 2, 1, True)
    e3 = conv2d_nhwc(e2, params["enc3_wm"], params["enc3_b"], 4, 4, 2, 1, True)
    b  = conv2d_nhwc(e3, params["bott_wm"], params["bott_b"], 3, 3, 1, 1, True)
    d3 = conv_transpose2d_nhwc(b, params["dec3_wm"], params["dec3_b"], True)
    d3 = jnp.concatenate([d3, e2], axis=-1)                 # channel concat (NHWC)
    d2 = conv_transpose2d_nhwc(d3, params["dec2_wm"], params["dec2_b"], True)
    d2 = jnp.concatenate([d2, e1], axis=-1)
    out = conv2d_nhwc(d2, params["dec1_wm"], params["dec1_b"], 3, 3, 1, 1, False,
                      out_dtype=jnp.float32)
    return out.transpose(0, 3, 1, 2)                        # NHWC -> NCHW once


# ----------------------------------------------------------------------------
# Pure-JAX f32 reference (PyTorch semantics) for a tolerance check.
# ----------------------------------------------------------------------------
def _conv_ref(x, w, b, stride, pad):
    out = jax.lax.conv_general_dilated(
        x, w, window_strides=(stride, stride), padding=[(pad, pad), (pad, pad)],
        dimension_numbers=("NCHW", "OIHW", "NCHW"))
    return out + b.reshape(1, -1, 1, 1)


def _convT_ref(x, w, b, stride, pad):
    k = w.shape[2]
    w_conv = jnp.flip(w, (2, 3)).transpose(1, 0, 2, 3)
    out = jax.lax.conv_general_dilated(
        x, w_conv, window_strides=(1, 1),
        padding=[(k - 1 - pad,) * 2, (k - 1 - pad,) * 2],
        lhs_dilation=(stride, stride),
        dimension_numbers=("NCHW", "OIHW", "NCHW"))
    return out + b.reshape(1, -1, 1, 1)


def reference_forward(raw, x):
    relu = lambda t: jnp.maximum(t, 0.0)
    e1 = relu(_conv_ref(x, raw["enc1_w"], raw["enc1_b"], 1, 1))
    e2 = relu(_conv_ref(e1, raw["enc2_w"], raw["enc2_b"], 2, 1))
    e3 = relu(_conv_ref(e2, raw["enc3_w"], raw["enc3_b"], 2, 1))
    b = relu(_conv_ref(e3, raw["bott_w"], raw["bott_b"], 1, 1))
    d3 = relu(_convT_ref(b, raw["dec3_w"], raw["dec3_b"], 2, 1))
    d3 = jnp.concatenate([d3, e2], axis=1)
    d2 = relu(_convT_ref(d3, raw["dec2_w"], raw["dec2_b"], 2, 1))
    d2 = jnp.concatenate([d2, e1], axis=1)
    return _conv_ref(d2, raw["dec1_w"], raw["dec1_b"], 1, 1)


if __name__ == "__main__":
    key = jax.random.PRNGKey(0)
    k_param, k_x = jax.random.split(key)

    in_channels = 1
    base_channels = 8          # small, deterministic synthetic weights
    batch, spatial = 2, 16

    raw = init_params(k_param, in_channels, base_channels)
    params = prepare_params(raw)
    x = jax.random.normal(k_x, (batch, in_channels, spatial, spatial), jnp.float32)

    fwd = jax.jit(diffusion_unet_forward)
    out = jax.block_until_ready(fwd(params, x))

    assert out.shape == (batch, in_channels, spatial, spatial), out.shape
    assert out.dtype == jnp.float32

    ref = jax.block_until_ready(reference_forward(raw, x))
    max_err = float(jnp.max(jnp.abs(out - ref)))
    assert max_err < 5e-2, f"max abs err vs f32 reference: {max_err}"

    print("KERNEL_OK")
</pallas_src>

<mosaic_0001>
module attributes {stable_mosaic.version = 11 : i64} {
  func.func @_matmul_bias_kernel(%arg0: i32, %arg1: i32, %arg2: i32, %arg3: memref<512x9xbf16, #tpu.memory_space<vmem>>, %arg4: memref<9x8xbf16, #tpu.memory_space<vmem>>, %arg5: memref<1x8xf32, #tpu.memory_space<vmem>>, %arg6: memref<512x8xbf16, #tpu.memory_space<vmem>>, %arg7: memref<512x8xf32, #tpu.memory_space<vmem>>) attributes {dimension_semantics = [#tpu.dimension_semantics<parallel>, #tpu.dimension_semantics<parallel>, #tpu.dimension_semantics<arbitrary>], iteration_bounds = array<i64: 1, 1, 1>, scalar_prefetch = 0 : i64, scratch_operands = 1 : i64, tpu.core_type = #tpu.core_type<tc>, window_params = [{transform_indices = @transform_0, window_bounds = array<i64: 512, 9>}, {transform_indices = @transform_1, window_bounds = array<i64: 9, 8>}, {transform_indices = @transform_2, window_bounds = array<i64: 1, 8>}, {transform_indices = @transform_3, window_bounds = array<i64: 512, 8>}]} {
    %c0_i32 = arith.constant 0 : i32
    %0 = arith.cmpi eq, %arg2, %c0_i32 : i32
    %1 = arith.extui %0 : i1 to i32
    %c0_i32_0 = arith.constant 0 : i32
    %2 = arith.cmpi ne, %1, %c0_i32_0 : i32
    scf.if %2 {
      %c0_10 = arith.constant 0 : index
      %c0_11 = arith.constant 0 : index
      %12 = vector.load %arg5[%c0_10, %c0_11] : memref<1x8xf32, #tpu.memory_space<vmem>>, vector<1x8xf32>
      %13 = vector.shape_cast %12 : vector<1x8xf32> to vector<1x8xf32>
      %14 = vector.broadcast %13 : vector<1x8xf32> to vector<512x8xf32>
      %c0_12 = arith.constant 0 : index
      %c0_13 = arith.constant 0 : index
      %15 = vector.load %arg7[%c0_12, %c0_13] : memref<512x8xf32, #tpu.memory_space<vmem>>, vector<512x8xf32>
      tpu.vector_store %arg7[%c0_12, %c0_13], %14 {strides = array<i32>} : memref<512x8xf32, #tpu.memory_space<vmem>>, vector<512x8xf32>,
    } else {
    }
    %c0 = arith.constant 0 : index
    %c0_1 = arith.constant 0 : index
    %3 = vector.load %arg7[%c0, %c0_1] : memref<512x8xf32, #tpu.memory_space<vmem>>, vector<512x8xf32>
    %c0_2 = arith.constant 0 : index
    %c0_3 = arith.constant 0 : index
    %4 = vector.load %arg3[%c0_2, %c0_3] : memref<512x9xbf16, #tpu.memory_space<vmem>>, vector<512x9xbf16>
    %c0_4 = arith.constant 0 : index
    %c0_5 = arith.constant 0 : index
    %5 = vector.load %arg4[%c0_4, %c0_5] : memref<9x8xbf16, #tpu.memory_space<vmem>>, vector<9x8xbf16>
    %cst = arith.constant dense<0.000000e+00> : vector<512x8xf32>
    %6 = tpu.matmul %4, %5, %cst {dimension_numbers = #tpu.dot_dimension_numbers<[1], [0], [0], [1], [0, 0, 1, 1], [], []>} : vector<512x9xbf16>, vector<9x8xbf16>, vector<512x8xf32> -> vector<512x8xf32>
    %7 = arith.addf %3, %6 : vector<512x8xf32>
    %c0_6 = arith.constant 0 : index
    %c0_7 = arith.constant 0 : index
    %8 = vector.load %arg7[%c0_6, %c0_7] : memref<512x8xf32, #tpu.memory_space<vmem>>, vector<512x8xf32>
    tpu.vector_store %arg7[%c0_6, %c0_7], %7 {strides = array<i32>} : memref<512x8xf32, #tpu.memory_space<vmem>>, vector<512x8xf32>,
    %c0_i32_8 = arith.constant 0 : i32
    %9 = arith.cmpi eq, %arg2, %c0_i32_8 : i32
    %10 = arith.extui %9 : i1 to i32
    %c0_i32_9 = arith.constant 0 : i32
    %11 = arith.cmpi ne, %10, %c0_i32_9 : i32
    scf.if %11 {
      %c0_10 = arith.constant 0 : index
      %c0_11 = arith.constant 0 : index
      %12 = vector.load %arg7[%c0_10, %c0_11] : memref<512x8xf32, #tpu.memory_space<vmem>>, vector<512x8xf32>
      %cst_12 = arith.constant 0.000000e+00 : f32
      %13 = vector.broadcast %cst_12 : f32 to vector<512x8xf32>
      %14 = arith.maximumf %12, %13 : vector<512x8xf32>
      %15 = arith.truncf %14 : vector<512x8xf32> to vector<512x8xbf16>
      %c0_13 = arith.constant 0 : index
      %c0_14 = arith.constant 0 : index
      %16 = vector.load %arg6[%c0_13, %c0_14] : memref<512x8xbf16, #tpu.memory_space<vmem>>, vector<512x8xbf16>
      tpu.vector_store %arg6[%c0_13, %c0_14], %15 {strides = array<i32>} : memref<512x8xbf16, #tpu.memory_space<vmem>>, vector<512x8xbf16>,
    } else {
    }
    return
  }
  func.func @transform_0(%arg0: i32, %arg1: i32, %arg2: i32) -> (i32, i32) {
    %c0_i32 = arith.constant 0 : i32
    return %arg0, %arg2 : i32, i32
  }
  func.func @transform_1(%arg0: i32, %arg1: i32, %arg2: i32) -> (i32, i32) {
    %c0_i32 = arith.constant 0 : i32
    return %arg2, %arg1 : i32, i32
  }
  func.func @transform_2(%arg0: i32, %arg1: i32, %arg2: i32) -> (i32, i32) {
    %c0_i32 = arith.constant 0 : i32
    %c0_i32_0 = arith.constant 0 : i32
    return %c0_i32, %arg1 : i32, i32
  }
  func.func @transform_3(%arg0: i32, %arg1: i32, %arg2: i32) -> (i32, i32) {
    %c0_i32 = arith.constant 0 : i32
    return %arg0, %arg1 : i32, i32
  }
}

module attributes {stable_mosaic.version = 11 : i64} {
  func.func @_matmul_bias_kernel(%arg0: i32, %arg1: i32, %arg2: i32, %arg3: memref<128x128xbf16, #tpu.memory_space<vmem>>, %arg4: memref<128x16xbf16, #tpu.memory_space<vmem>>, %arg5: memref<1x16xf32, #tpu.memory_space<vmem>>, %arg6: memref<128x16xbf16, #tpu.memory_space<vmem>>, %arg7: memref<128x16xf32, #tpu.memory_space<vmem>>) attributes {dimension_semantics = [#tpu.dimension_semantics<parallel>, #tpu.dimension_semantics<parallel>, #tpu.dimension_semantics<arbitrary>], iteration_bounds = array<i64: 1, 1, 1>, scalar_prefetch = 0 : i64, scratch_operands = 1 : i64, tpu.core_type = #tpu.core_type<tc>, window_params = [{transform_indices = @transform_0, window_bounds = array<i64: 128, 128>}, {transform_indices = @transform_1, window_bounds = array<i64: 128, 16>}, {transform_indices = @transform_2, window_bounds = array<i64: 1, 16>}, {transform_indices = @transform_3, window_bounds = array<i64: 128, 16>}]} {
    %c0_i32 = arith.constant 0 : i32
    %0 = arith.cmpi eq, %arg2, %c0_i32 : i32
    %1 = arith.extui %0 : i1 to i32
    %c0_i32_0 = arith.constant 0 : i32
    %2 = arith.cmpi ne, %1, %c0_i32_0 : i32
    scf.if %2 {
      %c0_10 = arith.constant 0 : index
      %c0_11 = arith.constant 0 : index
      %12 = vector.load %arg5[%c0_10, %c0_11] : memref<1x16xf32, #tpu.memory_space<vmem>>, vector<1x16xf32>
      %13 = vector.shape_cast %12 : vector<1x16xf32> to vector<1x16xf32>
      %14 = vector.broadcast %13 : vector<1x16xf32> to vector<128x16xf32>
      %c0_12 = arith.constant 0 : index
      %c0_13 = arith.constant 0 : index
      %15 = vector.load %arg7[%c0_12, %c0_13] : memref<128x16xf32, #tpu.memory_space<vmem>>, vector<128x16xf32>
      tpu.vector_store %arg7[%c0_12, %c0_13], %14 {strides = array<i32>} : memref<128x16xf32, #tpu.memory_space<vmem>>, vector<128x16xf32>,
    } else {
    }
    %c0 = arith.constant 0 : index
    %c0_1 = arith.constant 0 : index
    %3 = vector.load %arg7[%c0, %c0_1] : memref<128x16xf32, #tpu.memory_space<vmem>>, vector<128x16xf32>
    %c0_2 = arith.constant 0 : index
    %c0_3 = arith.constant 0 : index
    %4 = vector.load %arg3[%c0_2, %c0_3] : memref<128x128xbf16, #tpu.memory_space<vmem>>, vector<128x128xbf16>
    %c0_4 = arith.constant 0 : index
    %c0_5 = arith.constant 0 : index
    %5 = vector.load %arg4[%c0_4, %c0_5] : memref<128x16xbf16, #tpu.memory_space<vmem>>, vector<128x16xbf16>
    %cst = arith.constant dense<0.000000e+00> : vector<128x16xf32>
    %6 = tpu.matmul %4, %5, %cst {dimension_numbers = #tpu.dot_dimension_numbers<[1], [0], [0], [1], [0, 0, 1, 1], [], []>} : vector<128x128xbf16>, vector<128x16xbf16>, vector<128x16xf32> -> vector<128x16xf32>
    %7 = arith.addf %3, %6 : vector<128x16xf32>
    %c0_6 = arith.constant 0 : index
    %c0_7 = arith.constant 0 : index
    %8 = vector.load %arg7[%c0_6, %c0_7] : memref<128x16xf32, #tpu.memory_space<vmem>>, vector<128x16xf32>
    tpu.vector_store %arg7[%c0_6, %c0_7], %7 {strides = array<i32>} : memref<128x16xf32, #tpu.memory_space<vmem>>, vector<128x16xf32>,
    %c0_i32_8 = arith.constant 0 : i32
    %9 = arith.cmpi eq, %arg2, %c0_i32_8 : i32
    %10 = arith.extui %9 : i1 to i32
    %c0_i32_9 = arith.constant 0 : i32
    %11 = arith.cmpi ne, %10, %c0_i32_9 : i32
    scf.if %11 {
      %c0_10 = arith.constant 0 : index
      %c0_11 = arith.constant 0 : index
      %12 = vector.load %arg7[%c0_10, %c0_11] : memref<128x16xf32, #tpu.memory_space<vmem>>, vector<128x16xf32>
      %cst_12 = arith.constant 0.000000e+00 : f32
      %13 = vector.broadcast %cst_12 : f32 to vector<128x16xf32>
      %14 = arith.maximumf %12, %13 : vector<128x16xf32>
      %15 = arith.truncf %14 : vector<128x16xf32> to vector<128x16xbf16>
      %c0_13 = arith.constant 0 : index
      %c0_14 = arith.constant 0 : index
      %16 = vector.load %arg6[%c0_13, %c0_14] : memref<128x16xbf16, #tpu.memory_space<vmem>>, vector<128x16xbf16>
      tpu.vector_store %arg6[%c0_13, %c0_14], %15 {strides = array<i32>} : memref<128x16xbf16, #tpu.memory_space<vmem>>, vector<128x16xbf16>,
    } else {
    }
    return
  }
  func.func @transform_0(%arg0: i32, %arg1: i32, %arg2: i32) -> (i32, i32) {
    %c0_i32 = arith.constant 0 : i32
    return %arg0, %arg2 : i32, i32
  }
  func.func @transform_1(%arg0: i32, %arg1: i32, %arg2: i32) -> (i32, i32) {
    %c0_i32 = arith.constant 0 : i32
    return %arg2, %arg1 : i32, i32
  }
  func.func @transform_2(%arg0: i32, %arg1: i32, %arg2: i32) -> (i32, i32) {
    %c0_i32 = arith.constant 0 : i32
    %c0_i32_0 = arith.constant 0 : i32
    return %c0_i32, %arg1 : i32, i32
  }
  func.func @transform_3(%arg0: i32, %arg1: i32, %arg2: i32) -> (i32, i32) {
    %c0_i32 = arith.constant 0 : i32
    return %arg0, %arg1 : i32, i32
  }
}

module attributes {stable_mosaic.version = 11 : i64} {
  func.func @_matmul_bias_kernel(%arg0: i32, %arg1: i32, %arg2: i32, %arg3: memref<32x256xbf16, #tpu.memory_space<vmem>>, %arg4: memref<256x32xbf16, #tpu.memory_space<vmem>>, %arg5: memref<1x32xf32, #tpu.memory_space<vmem>>, %arg6: memref<32x32xbf16, #tpu.memory_space<vmem>>, %arg7: memref<32x32xf32, #tpu.memory_space<vmem>>) attributes {dimension_semantics = [#tpu.dimension_semantics<parallel>, #tpu.dimension_semantics<parallel>, #tpu.dimension_semantics<arbitrary>], iteration_bounds = array<i64: 1, 1, 1>, scalar_prefetch = 0 : i64, scratch_operands = 1 : i64, tpu.core_type = #tpu.core_type<tc>, window_params = [{transform_indices = @transform_0, window_bounds = array<i64: 32, 256>}, {transform_indices = @transform_1, window_bounds = array<i64: 256, 32>}, {transform_indices = @transform_2, window_bounds = array<i64: 1, 32>}, {transform_indices = @transform_3, window_bounds = array<i64: 32, 32>}]} {
    %c0_i32 = arith.constant 0 : i32
    %0 = arith.cmpi eq, %arg2, %c0_i32 : i32
    %1 = arith.extui %0 : i1 to i32
    %c0_i32_0 = arith.constant 0 : i32
    %2 = arith.cmpi ne, %1, %c0_i32_0 : i32
    scf.if %2 {
      %c0_10 = arith.constant 0 : index
      %c0_11 = arith.constant 0 : index
      %12 = vector.load %arg5[%c0_10, %c0_11] : memref<1x32xf32, #tpu.memory_space<vmem>>, vector<1x32xf32>
      %13 = vector.shape_cast %12 : vector<1x32xf32> to vector<1x32xf32>
      %14 = vector.broadcast %13 : vector<1x32xf32> to vector<32x32xf32>
      %c0_12 = arith.constant 0 : index
      %c0_13 = arith.constant 0 : index
      %15 = vector.load %arg7[%c0_12, %c0_13] : memref<32x32xf32, #tpu.memory_space<vmem>>, vector<32x32xf32>
      tpu.vector_store %arg7[%c0_12, %c0_13], %14 {strides = array<i32>} : memref<32x32xf32, #tpu.memory_space<vmem>>, vector<32x32xf32>,
    } else {
    }
    %c0 = arith.constant 0 : index
    %c0_1 = arith.constant 0 : index
    %3 = vector.load %arg7[%c0, %c0_1] : memref<32x32xf32, #tpu.memory_space<vmem>>, vector<32x32xf32>
    %c0_2 = arith.constant 0 : index
    %c0_3 = arith.constant 0 : index
    %4 = vector.load %arg3[%c0_2, %c0_3] : memref<32x256xbf16, #tpu.memory_space<vmem>>, vector<32x256xbf16>
    %c0_4 = arith.constant 0 : index
    %c0_5 = arith.constant 0 : index
    %5 = vector.load %arg4[%c0_4, %c0_5] : memref<256x32xbf16, #tpu.memory_space<vmem>>, vector<256x32xbf16>
    %cst = arith.constant dense<0.000000e+00> : vector<32x32xf32>
    %6 = tpu.matmul %4, %5, %cst {dimension_numbers = #tpu.dot_dimension_numbers<[1], [0], [0], [1], [0, 0, 1, 1], [], []>} : vector<32x256xbf16>, vector<256x32xbf16>, vector<32x32xf32> -> vector<32x32xf32>
    %7 = arith.addf %3, %6 : vector<32x32xf32>
    %c0_6 = arith.constant 0 : index
    %c0_7 = arith.constant 0 : index
    %8 = vector.load %arg7[%c0_6, %c0_7] : memref<32x32xf32, #tpu.memory_space<vmem>>, vector<32x32xf32>
    tpu.vector_store %arg7[%c0_6, %c0_7], %7 {strides = array<i32>} : memref<32x32xf32, #tpu.memory_space<vmem>>, vector<32x32xf32>,
    %c0_i32_8 = arith.constant 0 : i32
    %9 = arith.cmpi eq, %arg2, %c0_i32_8 : i32
    %10 = arith.extui %9 : i1 to i32
    %c0_i32_9 = arith.constant 0 : i32
    %11 = arith.cmpi ne, %10, %c0_i32_9 : i32
    scf.if %11 {
      %c0_10 = arith.constant 0 : index
      %c0_11 = arith.constant 0 : index
      %12 = vector.load %arg7[%c0_10, %c0_11] : memref<32x32xf32, #tpu.memory_space<vmem>>, vector<32x32xf32>
      %cst_12 = arith.constant 0.000000e+00 : f32
      %13 = vector.broadcast %cst_12 : f32 to vector<32x32xf32>
      %14 = arith.maximumf %12, %13 : vector<32x32xf32>
      %15 = arith.truncf %14 : vector<32x32xf32> to vector<32x32xbf16>
      %c0_13 = arith.constant 0 : index
      %c0_14 = arith.constant 0 : index
      %16 = vector.load %arg6[%c0_13, %c0_14] : memref<32x32xbf16, #tpu.memory_space<vmem>>, vector<32x32xbf16>
      tpu.vector_store %arg6[%c0_13, %c0_14], %15 {strides = array<i32>} : memref<32x32xbf16, #tpu.memory_space<vmem>>, vector<32x32xbf16>,
    } else {
    }
    return
  }
  func.func @transform_0(%arg0: i32, %arg1: i32, %arg2: i32) -> (i32, i32) {
    %c0_i32 = arith.constant 0 : i32
    return %arg0, %arg2 : i32, i32
  }
  func.func @transform_1(%arg0: i32, %arg1: i32, %arg2: i32) -> (i32, i32) {
    %c0_i32 = arith.constant 0 : i32
    return %arg2, %arg1 : i32, i32
  }
  func.func @transform_2(%arg0: i32, %arg1: i32, %arg2: i32) -> (i32, i32) {
    %c0_i32 = arith.constant 0 : i32
    %c0_i32_0 = arith.constant 0 : i32
    return %c0_i32, %arg1 : i32, i32
  }
  func.func @transform_3(%arg0: i32, %arg1: i32, %arg2: i32) -> (i32, i32) {
    %c0_i32 = arith.constant 0 : i32
    return %arg0, %arg1 : i32, i32
  }
}

module attributes {stable_mosaic.version = 11 : i64} {
  func.func @_matmul_bias_kernel(%arg0: i32, %arg1: i32, %arg2: i32, %arg3: memref<32x288xbf16, #tpu.memory_space<vmem>>, %arg4: memref<288x32xbf16, #tpu.memory_space<vmem>>, %arg5: memref<1x32xf32, #tpu.memory_space<vmem>>, %arg6: memref<32x32xbf16, #tpu.memory_space<vmem>>, %arg7: memref<32x32xf32, #tpu.memory_space<vmem>>) attributes {dimension_semantics = [#tpu.dimension_semantics<parallel>, #tpu.dimension_semantics<parallel>, #tpu.dimension_semantics<arbitrary>], iteration_bounds = array<i64: 1, 1, 1>, scalar_prefetch = 0 : i64, scratch_operands = 1 : i64, tpu.core_type = #tpu.core_type<tc>, window_params = [{transform_indices = @transform_0, window_bounds = array<i64: 32, 288>}, {transform_indices = @transform_1, window_bounds = array<i64: 288, 32>}, {transform_indices = @transform_2, window_bounds = array<i64: 1, 32>}, {transform_indices = @transform_3, window_bounds = array<i64: 32, 32>}]} {
    %c0_i32 = arith.constant 0 : i32
    %0 = arith.cmpi eq, %arg2, %c0_i32 : i32
    %1 = arith.extui %0 : i1 to i32
    %c0_i32_0 = arith.constant 0 : i32
    %2 = arith.cmpi ne, %1, %c0_i32_0 : i32
    scf.if %2 {
      %c0_10 = arith.constant 0 : index
      %c0_11 = arith.constant 0 : index
      %12 = vector.load %arg5[%c0_10, %c0_11] : memref<1x32xf32, #tpu.memory_space<vmem>>, vector<1x32xf32>
      %13 = vector.shape_cast %12 : vector<1x32xf32> to vector<1x32xf32>
      %14 = vector.broadcast %13 : vector<1x32xf32> to vector<32x32xf32>
      %c0_12 = arith.constant 0 : index
      %c0_13 = arith.constant 0 : index
      %15 = vector.load %arg7[%c0_12, %c0_13] : memref<32x32xf32, #tpu.memory_space<vmem>>, vector<32x32xf32>
      tpu.vector_store %arg7[%c0_12, %c0_13], %14 {strides = array<i32>} : memref<32x32xf32, #tpu.memory_space<vmem>>, vector<32x32xf32>,
    } else {
    }
    %c0 = arith.constant 0 : index
    %c0_1 = arith.constant 0 : index
    %3 = vector.load %arg7[%c0, %c0_1] : memref<32x32xf32, #tpu.memory_space<vmem>>, vector<32x32xf32>
    %c0_2 = arith.constant 0 : index
    %c0_3 = arith.constant 0 : index
    %4 = vector.load %arg3[%c0_2, %c0_3] : memref<32x288xbf16, #tpu.memory_space<vmem>>, vector<32x288xbf16>
    %c0_4 = arith.constant 0 : index
    %c0_5 = arith.constant 0 : index
    %5 = vector.load %arg4[%c0_4, %c0_5] : memref<288x32xbf16, #tpu.memory_space<vmem>>, vector<288x32xbf16>
    %cst = arith.constant dense<0.000000e+00> : vector<32x32xf32>
    %6 = tpu.matmul %4, %5, %cst {dimension_numbers = #tpu.dot_dimension_numbers<[1], [0], [0], [1], [0, 0, 1, 1], [], []>} : vector<32x288xbf16>, vector<288x32xbf16>, vector<32x32xf32> -> vector<32x32xf32>
    %7 = arith.addf %3, %6 : vector<32x32xf32>
    %c0_6 = arith.constant 0 : index
    %c0_7 = arith.constant 0 : index
    %8 = vector.load %arg7[%c0_6, %c0_7] : memref<32x32xf32, #tpu.memory_space<vmem>>, vector<32x32xf32>
    tpu.vector_store %arg7[%c0_6, %c0_7], %7 {strides = array<i32>} : memref<32x32xf32, #tpu.memory_space<vmem>>, vector<32x32xf32>,
    %c0_i32_8 = arith.constant 0 : i32
    %9 = arith.cmpi eq, %arg2, %c0_i32_8 : i32
    %10 = arith.extui %9 : i1 to i32
    %c0_i32_9 = arith.constant 0 : i32
    %11 = arith.cmpi ne, %10, %c0_i32_9 : i32
    scf.if %11 {
      %c0_10 = arith.constant 0 : index
      %c0_11 = arith.constant 0 : index
      %12 = vector.load %arg7[%c0_10, %c0_11] : memref<32x32xf32, #tpu.memory_space<vmem>>, vector<32x32xf32>
      %cst_12 = arith.constant 0.000000e+00 : f32
      %13 = vector.broadcast %cst_12 : f32 to vector<32x32xf32>
      %14 = arith.maximumf %12, %13 : vector<32x32xf32>
      %15 = arith.truncf %14 : vector<32x32xf32> to vector<32x32xbf16>
      %c0_13 = arith.constant 0 : index
      %c0_14 = arith.constant 0 : index
      %16 = vector.load %arg6[%c0_13, %c0_14] : memref<32x32xbf16, #tpu.memory_space<vmem>>, vector<32x32xbf16>
      tpu.vector_store %arg6[%c0_13, %c0_14], %15 {strides = array<i32>} : memref<32x32xbf16, #tpu.memory_space<vmem>>, vector<32x32xbf16>,
    } else {
    }
    return
  }
  func.func @transform_0(%arg0: i32, %arg1: i32, %arg2: i32) -> (i32, i32) {
    %c0_i32 = arith.constant 0 : i32
    return %arg0, %arg2 : i32, i32
  }
  func.func @transform_1(%arg0: i32, %arg1: i32, %arg2: i32) -> (i32, i32) {
    %c0_i32 = arith.constant 0 : i32
    return %arg2, %arg1 : i32, i32
  }
  func.func @transform_2(%arg0: i32, %arg1: i32, %arg2: i32) -> (i32, i32) {
    %c0_i32 = arith.constant 0 : i32
    %c0_i32_0 = arith.constant 0 : i32
    return %c0_i32, %arg1 : i32, i32
  }
  func.func @transform_3(%arg0: i32, %arg1: i32, %arg2: i32) -> (i32, i32) {
    %c0_i32 = arith.constant 0 : i32
    return %arg0, %arg1 : i32, i32
  }
}

module attributes {stable_mosaic.version = 11 : i64} {
  func.func @_matmul_bias_kernel(%arg0: i32, %arg1: i32, %arg2: i32, %arg3: memref<32x288xbf16, #tpu.memory_space<vmem>>, %arg4: memref<288x64xbf16, #tpu.memory_space<vmem>>, %arg5: memref<1x64xf32, #tpu.memory_space<vmem>>, %arg6: memref<32x64xbf16, #tpu.memory_space<vmem>>, %arg7: memref<32x64xf32, #tpu.memory_space<vmem>>) attributes {dimension_semantics = [#tpu.dimension_semantics<parallel>, #tpu.dimension_semantics<parallel>, #tpu.dimension_semantics<arbitrary>], iteration_bounds = array<i64: 1, 1, 1>, scalar_prefetch = 0 : i64, scratch_operands = 1 : i64, tpu.core_type = #tpu.core_type<tc>, window_params = [{transform_indices = @transform_0, window_bounds = array<i64: 32, 288>}, {transform_indices = @transform_1, window_bounds = array<i64: 288, 64>}, {transform_indices = @transform_2, window_bounds = array<i64: 1, 64>}, {transform_indices = @transform_3, window_bounds = array<i64: 32, 64>}]} {
    %c0_i32 = arith.constant 0 : i32
    %0 = arith.cmpi eq, %arg2, %c0_i32 : i32
    %1 = arith.extui %0 : i1 to i32
    %c0_i32_0 = arith.constant 0 : i32
    %2 = arith.cmpi ne, %1, %c0_i32_0 : i32
    scf.if %2 {
      %c0_10 = arith.constant 0 : index
      %c0_11 = arith.constant 0 : index
      %12 = vector.load %arg5[%c0_10, %c0_11] : memref<1x64xf32, #tpu.memory_space<vmem>>, vector<1x64xf32>
      %13 = vector.shape_cast %12 : vector<1x64xf32> to vector<1x64xf32>
      %14 = vector.broadcast %13 : vector<1x64xf32> to vector<32x64xf32>
      %c0_12 = arith.constant 0 : index
      %c0_13 = arith.constant 0 : index
      %15 = vector.load %arg7[%c0_12, %c0_13] : memref<32x64xf32, #tpu.memory_space<vmem>>, vector<32x64xf32>
      tpu.vector_store %arg7[%c0_12, %c0_13], %14 {strides = array<i32>} : memref<32x64xf32, #tpu.memory_space<vmem>>, vector<32x64xf32>,
    } else {
    }
    %c0 = arith.constant 0 : index
    %c0_1 = arith.constant 0 : index
    %3 = vector.load %arg7[%c0, %c0_1] : memref<32x64xf32, #tpu.memory_space<vmem>>, vector<32x64xf32>
    %c0_2 = arith.constant 0 : index
    %c0_3 = arith.constant 0 : index
    %4 = vector.load %arg3[%c0_2, %c0_3] : memref<32x288xbf16, #tpu.memory_space<vmem>>, vector<32x288xbf16>
    %c0_4 = arith.constant 0 : index
    %c0_5 = arith.constant 0 : index
    %5 = vector.load %arg4[%c0_4, %c0_5] : memref<288x64xbf16, #tpu.memory_space<vmem>>, vector<288x64xbf16>
    %cst = arith.constant dense<0.000000e+00> : vector<32x64xf32>
    %6 = tpu.matmul %4, %5, %cst {dimension_numbers = #tpu.dot_dimension_numbers<[1], [0], [0], [1], [0, 0, 1, 1], [], []>} : vector<32x288xbf16>, vector<288x64xbf16>, vector<32x64xf32> -> vector<32x64xf32>
    %7 = arith.addf %3, %6 : vector<32x64xf32>
    %c0_6 = arith.constant 0 : index
    %c0_7 = arith.constant 0 : index
    %8 = vector.load %arg7[%c0_6, %c0_7] : memref<32x64xf32, #tpu.memory_space<vmem>>, vector<32x64xf32>
    tpu.vector_store %arg7[%c0_6, %c0_7], %7 {strides = array<i32>} : memref<32x64xf32, #tpu.memory_space<vmem>>, vector<32x64xf32>,
    %c0_i32_8 = arith.constant 0 : i32
    %9 = arith.cmpi eq, %arg2, %c0_i32_8 : i32
    %10 = arith.extui %9 : i1 to i32
    %c0_i32_9 = arith.constant 0 : i32
    %11 = arith.cmpi ne, %10, %c0_i32_9 : i32
    scf.if %11 {
      %c0_10 = arith.constant 0 : index
      %c0_11 = arith.constant 0 : index
      %12 = vector.load %arg7[%c0_10, %c0_11] : memref<32x64xf32, #tpu.memory_space<vmem>>, vector<32x64xf32>
      %cst_12 = arith.constant 0.000000e+00 : f32
      %13 = vector.broadcast %cst_12 : f32 to vector<32x64xf32>
      %14 = arith.maximumf %12, %13 : vector<32x64xf32>
      %15 = arith.truncf %14 : vector<32x64xf32> to vector<32x64xbf16>
      %c0_13 = arith.constant 0 : index
      %c0_14 = arith.constant 0 : index
      %16 = vector.load %arg6[%c0_13, %c0_14] : memref<32x64xbf16, #tpu.memory_space<vmem>>, vector<32x64xbf16>
      tpu.vector_store %arg6[%c0_13, %c0_14], %15 {strides = array<i32>} : memref<32x64xbf16, #tpu.memory_space<vmem>>, vector<32x64xbf16>,
    } else {
    }
    return
  }
  func.func @transform_0(%arg0: i32, %arg1: i32, %arg2: i32) -> (i32, i32) {
    %c0_i32 = arith.constant 0 : i32
    return %arg0, %arg2 : i32, i32
  }
  func.func @transform_1(%arg0: i32, %arg1: i32, %arg2: i32) -> (i32, i32) {
    %c0_i32 = arith.constant 0 : i32
    return %arg2, %arg1 : i32, i32
  }
  func.func @transform_2(%arg0: i32, %arg1: i32, %arg2: i32) -> (i32, i32) {
    %c0_i32 = arith.constant 0 : i32
    %c0_i32_0 = arith.constant 0 : i32
    return %c0_i32, %arg1 : i32, i32
  }
  func.func @transform_3(%arg0: i32, %arg1: i32, %arg2: i32) -> (i32, i32) {
    %c0_i32 = arith.constant 0 : i32
    return %arg0, %arg1 : i32, i32
  }
}

module attributes {stable_mosaic.version = 11 : i64} {
  func.func @_matmul_bias_kernel(%arg0: i32, %arg1: i32, %arg2: i32, %arg3: memref<128x288xbf16, #tpu.memory_space<vmem>>, %arg4: memref<288x32xbf16, #tpu.memory_space<vmem>>, %arg5: memref<1x32xf32, #tpu.memory_space<vmem>>, %arg6: memref<128x32xbf16, #tpu.memory_space<vmem>>, %arg7: memref<128x32xf32, #tpu.memory_space<vmem>>) attributes {dimension_semantics = [#tpu.dimension_semantics<parallel>, #tpu.dimension_semantics<parallel>, #tpu.dimension_semantics<arbitrary>], iteration_bounds = array<i64: 1, 1, 1>, scalar_prefetch = 0 : i64, scratch_operands = 1 : i64, tpu.core_type = #tpu.core_type<tc>, window_params = [{transform_indices = @transform_0, window_bounds = array<i64: 128, 288>}, {transform_indices = @transform_1, window_bounds = array<i64: 288, 32>}, {transform_indices = @transform_2, window_bounds = array<i64: 1, 32>}, {transform_indices = @transform_3, window_bounds = array<i64: 128, 32>}]} {
    %c0_i32 = arith.constant 0 : i32
    %0 = arith.cmpi eq, %arg2, %c0_i32 : i32
    %1 = arith.extui %0 : i1 to i32
    %c0_i32_0 = arith.constant 0 : i32
    %2 = arith.cmpi ne, %1, %c0_i32_0 : i32
    scf.if %2 {
      %c0_10 = arith.constant 0 : index
      %c0_11 = arith.constant 0 : index
      %12 = vector.load %arg5[%c0_10, %c0_11] : memref<1x32xf32, #tpu.memory_space<vmem>>, vector<1x32xf32>
      %13 = vector.shape_cast %12 : vector<1x32xf32> to vector<1x32xf32>
      %14 = vector.broadcast %13 : vector<1x32xf32> to vector<128x32xf32>
      %c0_12 = arith.constant 0 : index
      %c0_13 = arith.constant 0 : index
      %15 = vector.load %arg7[%c0_12, %c0_13] : memref<128x32xf32, #tpu.memory_space<vmem>>, vector<128x32xf32>
      tpu.vector_store %arg7[%c0_12, %c0_13], %14 {strides = array<i32>} : memref<128x32xf32, #tpu.memory_space<vmem>>, vector<128x32xf32>,
    } else {
    }
    %c0 = arith.constant 0 : index
    %c0_1 = arith.constant 0 : index
    %3 = vector.load %arg7[%c0, %c0_1] : memref<128x32xf32, #tpu.memory_space<vmem>>, vector<128x32xf32>
    %c0_2 = arith.constant 0 : index
    %c0_3 = arith.constant 0 : index
    %4 = vector.load %arg3[%c0_2, %c0_3] : memref<128x288xbf16, #tpu.memory_space<vmem>>, vector<128x288xbf16>
    %c0_4 = arith.constant 0 : index
    %c0_5 = arith.constant 0 : index
    %5 = vector.load %arg4[%c0_4, %c0_5] : memref<288x32xbf16, #tpu.memory_space<vmem>>, vector<288x32xbf16>
    %cst = arith.constant dense<0.000000e+00> : vector<128x32xf32>
    %6 = tpu.matmul %4, %5, %cst {dimension_numbers = #tpu.dot_dimension_numbers<[1], [0], [0], [1], [0, 0, 1, 1], [], []>} : vector<128x288xbf16>, vector<288x32xbf16>, vector<128x32xf32> -> vector<128x32xf32>
    %7 = arith.addf %3, %6 : vector<128x32xf32>
    %c0_6 = arith.constant 0 : index
    %c0_7 = arith.constant 0 : index
    %8 = vector.load %arg7[%c0_6, %c0_7] : memref<128x32xf32, #tpu.memory_space<vmem>>, vector<128x32xf32>
    tpu.vector_store %arg7[%c0_6, %c0_7], %7 {strides = array<i32>} : memref<128x32xf32, #tpu.memory_space<vmem>>, vector<128x32xf32>,
    %c0_i32_8 = arith.constant 0 : i32
    %9 = arith.cmpi eq, %arg2, %c0_i32_8 : i32
    %10 = arith.extui %9 : i1 to i32
    %c0_i32_9 = arith.constant 0 : i32
    %11 = arith.cmpi ne, %10, %c0_i32_9 : i32
    scf.if %11 {
      %c0_10 = arith.constant 0 : index
      %c0_11 = arith.constant 0 : index
      %12 = vector.load %arg7[%c0_10, %c0_11] : memref<128x32xf32, #tpu.memory_space<vmem>>, vector<128x32xf32>
      %cst_12 = arith.constant 0.000000e+00 : f32
      %13 = vector.broadcast %cst_12 : f32 to vector<128x32xf32>
      %14 = arith.maximumf %12, %13 : vector<128x32xf32>
      %15 = arith.truncf %14 : vector<128x32xf32> to vector<128x32xbf16>
      %c0_13 = arith.constant 0 : index
      %c0_14 = arith.constant 0 : index
      %16 = vector.load %arg6[%c0_13, %c0_14] : memref<128x32xbf16, #tpu.memory_space<vmem>>, vector<128x32xbf16>
      tpu.vector_store %arg6[%c0_13, %c0_14], %15 {strides = array<i32>} : memref<128x32xbf16, #tpu.memory_space<vmem>>, vector<128x32xbf16>,
    } else {
    }
    return
  }
  func.func @transform_0(%arg0: i32, %arg1: i32, %arg2: i32) -> (i32, i32) {
    %c0_i32 = arith.constant 0 : i32
    return %arg0, %arg2 : i32, i32
  }
  func.func @transform_1(%arg0: i32, %arg1: i32, %arg2: i32) -> (i32, i32) {
    %c0_i32 = arith.constant 0 : i32
    return %arg2, %arg1 : i32, i32
  }
  func.func @transform_2(%arg0: i32, %arg1: i32, %arg2: i32) -> (i32, i32) {
    %c0_i32 = arith.constant 0 : i32
    %c0_i32_0 = arith.constant 0 : i32
    return %c0_i32, %arg1 : i32, i32
  }
  func.func @transform_3(%arg0: i32, %arg1: i32, %arg2: i32) -> (i32, i32) {
    %c0_i32 = arith.constant 0 : i32
    return %arg0, %arg1 : i32, i32
  }
}

module attributes {stable_mosaic.version = 11 : i64} {
  func.func @_matmul_bias_kernel(%arg0: i32, %arg1: i32, %arg2: i32, %arg3: memref<512x144xbf16, #tpu.memory_space<vmem>>, %arg4: memref<144x1xbf16, #tpu.memory_space<vmem>>, %arg5: memref<1x1xf32, #tpu.memory_space<vmem>>, %arg6: memref<512x1xf32, #tpu.memory_space<vmem>>, %arg7: memref<512x1xf32, #tpu.memory_space<vmem>>) attributes {dimension_semantics = [#tpu.dimension_semantics<parallel>, #tpu.dimension_semantics<parallel>, #tpu.dimension_semantics<arbitrary>], iteration_bounds = array<i64: 1, 1, 1>, scalar_prefetch = 0 : i64, scratch_operands = 1 : i64, tpu.core_type = #tpu.core_type<tc>, window_params = [{transform_indices = @transform_0, window_bounds = array<i64: 512, 144>}, {transform_indices = @transform_1, window_bounds = array<i64: 144, 1>}, {transform_indices = @transform_2, window_bounds = array<i64: 1, 1>}, {transform_indices = @transform_3, window_bounds = array<i64: 512, 1>}]} {
    %c0_i32 = arith.constant 0 : i32
    %0 = arith.cmpi eq, %arg2, %c0_i32 : i32
    %1 = arith.extui %0 : i1 to i32
    %c0_i32_0 = arith.constant 0 : i32
    %2 = arith.cmpi ne, %1, %c0_i32_0 : i32
    scf.if %2 {
      %c0_10 = arith.constant 0 : index
      %c0_11 = arith.constant 0 : index
      %12 = vector.load %arg5[%c0_10, %c0_11] : memref<1x1xf32, #tpu.memory_space<vmem>>, vector<1x1xf32>
      %13 = vector.shape_cast %12 : vector<1x1xf32> to vector<1x1xf32>
      %14 = vector.broadcast %13 : vector<1x1xf32> to vector<512x1xf32>
      %c0_12 = arith.constant 0 : index
      %c0_13 = arith.constant 0 : index
      %15 = vector.load %arg7[%c0_12, %c0_13] : memref<512x1xf32, #tpu.memory_space<vmem>>, vector<512x1xf32>
      tpu.vector_store %arg7[%c0_12, %c0_13], %14 {strides = array<i32>} : memref<512x1xf32, #tpu.memory_space<vmem>>, vector<512x1xf32>,
    } else {
    }
    %c0 = arith.constant 0 : index
    %c0_1 = arith.constant 0 : index
    %3 = vector.load %arg7[%c0, %c0_1] : memref<512x1xf32, #tpu.memory_space<vmem>>, vector<512x1xf32>
    %c0_2 = arith.constant 0 : index
    %c0_3 = arith.constant 0 : index
    %4 = vector.load %arg3[%c0_2, %c0_3] : memref<512x144xbf16, #tpu.memory_space<vmem>>, vector<512x144xbf16>
    %c0_4 = arith.constant 0 : index
    %c0_5 = arith.constant 0 : index
    %5 = vector.load %arg4[%c0_4, %c0_5] : memref<144x1xbf16, #tpu.memory_space<vmem>>, vector<144x1xbf16>
    %cst = arith.constant dense<0.000000e+00> : vector<512x1xf32>
    %6 = tpu.matmul %4, %5, %cst {dimension_numbers = #tpu.dot_dimension_numbers<[1], [0], [0], [1], [0, 0, 1, 1], [], []>} : vector<512x144xbf16>, vector<144x1xbf16>, vector<512x1xf32> -> vector<512x1xf32>
    %7 = arith.addf %3, %6 : vector<512x1xf32>
    %c0_6 = arith.constant 0 : index
    %c0_7 = arith.constant 0 : index
    %8 = vector.load %arg7[%c0_6, %c0_7] : memref<512x1xf32, #tpu.memory_space<vmem>>, vector<512x1xf32>
    tpu.vector_store %arg7[%c0_6, %c0_7], %7 {strides = array<i32>} : memref<512x1xf32, #tpu.memory_space<vmem>>, vector<512x1xf32>,
    %c0_i32_8 = arith.constant 0 : i32
    %9 = arith.cmpi eq, %arg2, %c0_i32_8 : i32
    %10 = arith.extui %9 : i1 to i32
    %c0_i32_9 = arith.constant 0 : i32
    %11 = arith.cmpi ne, %10, %c0_i32_9 : i32
    scf.if %11 {
      %c0_10 = arith.constant 0 : index
      %c0_11 = arith.constant 0 : index
      %12 = vector.load %arg7[%c0_10, %c0_11] : memref<512x1xf32, #tpu.memory_space<vmem>>, vector<512x1xf32>
      %c0_12 = arith.constant 0 : index
      %c0_13 = arith.constant 0 : index
      %13 = vector.load %arg6[%c0_12, %c0_13] : memref<512x1xf32, #tpu.memory_space<vmem>>, vector<512x1xf32>
      tpu.vector_store %arg6[%c0_12, %c0_13], %12 {strides = array<i32>} : memref<512x1xf32, #tpu.memory_space<vmem>>, vector<512x1xf32>,
    } else {
    }
    return
  }
  func.func @transform_0(%arg0: i32, %arg1: i32, %arg2: i32) -> (i32, i32) {
    %c0_i32 = arith.constant 0 : i32
    return %arg0, %arg2 : i32, i32
  }
  func.func @transform_1(%arg0: i32, %arg1: i32, %arg2: i32) -> (i32, i32) {
    %c0_i32 = arith.constant 0 : i32
    return %arg2, %arg1 : i32, i32
  }
  func.func @transform_2(%arg0: i32, %arg1: i32, %arg2: i32) -> (i32, i32) {
    %c0_i32 = arith.constant 0 : i32
    %c0_i32_0 = arith.constant 0 : i32
    return %c0_i32, %arg1 : i32, i32
  }
  func.func @transform_3(%arg0: i32, %arg1: i32, %arg2: i32) -> (i32, i32) {
    %c0_i32 = arith.constant 0 : i32
    return %arg0, %arg1 : i32, i32
  }
}

</mosaic_0001>

<llo_original>
// kernel: diffusion_unet_forward.7
$region0: #{diffusion_unet_forward.7}
  #allocation0 [shape = 'u32[]', space=smem, size = 0x4, offset = 0x4, fixed_abs, tag = 'smem constant byte address 0x4 - core index']
  #allocation1 [shape = 'u32[144,128]{1,0:T(1,128)}', space=vmem, size = 0x12000, scoped, tag = 'internal scratch']
  #allocation2 [shape = 'f32[512,8]{1,0:T(8,128)}', space=vmem, size = 0x40000, scoped, tag = 'scratch operand']
  %s0 = inlined_call_operand.vmem [shape: bf16[512,9], index: 0, kind: input, shape index: {}]
  %s1 = inlined_call_operand.vmem [shape: bf16[9,8], index: 1, kind: input, shape index: {}]
  %s2 = inlined_call_operand.vmem [shape: f32[1,8], index: 2, kind: input, shape index: {}]
  %s3 = inlined_call_operand.vmem [shape: bf16[512,8], index: 3, kind: output, shape index: {}]
  %s4 = sld [smem:[#allocation0]]
  $region30: #{diffusion_unet_forward.7} parent=0
    _
  %s6 = ssub.s32 1, %s4
  %s7 = scalar_select 0, %s6, %s4
  // Predicated region
  $region2: #{diffusion_unet_forward.7} parent=0 // pred_check
    _
  $region3: #{diffusion_unet_forward.7} parent=0 // pred_check_branch
    %9 = sbr.rel (0) target = $region5
  $region4: #{diffusion_unet_forward.7} parent=0 // pred_region
    _
  $region5: #{diffusion_unet_forward.7} parent=0 // pred_fallthru
    _
  // Predicated region
  $region6: #{diffusion_unet_forward.7} parent=0 // pred_check
    _
  $region7: #{diffusion_unet_forward.7} parent=0 // pred_check_branch
    %11 = sbr.rel (0) target = $region9
  $region8: #{diffusion_unet_forward.7} parent=0 // pred_region
    _
  $region9: #{diffusion_unet_forward.7} parent=0 // pred_fallthru
    _
  // Predicated region
  $region10: #{diffusion_unet_forward.7} parent=0 // pred_check
    _
  $region11: #{diffusion_unet_forward.7} parent=0 // pred_check_branch
    %13 = sbr.rel (0) target = $region13
  $region12: #{diffusion_unet_forward.7} parent=0 // pred_region
    _
  $region13: #{diffusion_unet_forward.7} parent=0 // pred_fallthru
    _
  %p15 = scmp.eq.s32.totalorder 0, 0
  // Predicated region
  $region14: #{diffusion_unet_forward.7} parent=0 // pred_check
    %p16 = pneg %p15
  $region15: #{diffusion_unet_forward.7} parent=0 // pred_check_branch
    %18 = sbr.rel (%p16) target = $region17
  $region16: #{diffusion_unet_forward.7} parent=0 // pred_region
    %v19 = vld [vmem:[%s2] sm:$0x1]
    %v21 = vlaneseq
    %v22 = vshrl.u32 %v21, 7
    %v23 = vsub.s32 0, %v22
    %v24 = vrot.slane %v19, %v23
    %vm26 = vcmask 64512
    %27 = vst.msk [vmem:[#allocation2] sm:$0xff] %vm26, %v24
    %28 = vst.msk [vmem:[#allocation2 + $0x8] sm:$0xff] %vm26, %v24
    %29 = vst.msk [vmem:[#allocation2 + $0x10] sm:$0xff] %vm26, %v24
    %30 = vst.msk [vmem:[#allocation2 + $0x18] sm:$0xff] %vm26, %v24
    %31 = vst.msk [vmem:[#allocation2 + $0x20] sm:$0xff] %vm26, %v24
    %32 = vst.msk [vmem:[#allocation2 + $0x28] sm:$0xff] %vm26, %v24
    %33 = vst.msk [vmem:[#allocation2 + $0x30] sm:$0xff] %vm26, %v24
    %34 = vst.msk [vmem:[#allocation2 + $0x38] sm:$0xff] %vm26, %v24
    %35 = vst.msk [vmem:[#allocation2 + $0x40] sm:$0xff] %vm26, %v24
    %36 = vst.msk [vmem:[#allocation2 + $0x48] sm:$0xff] %vm26, %v24
    %37 = vst.msk [vmem:[#allocation2 + $0x50] sm:$0xff] %vm26, %v24
    %38 = vst.msk [vmem:[#allocation2 + $0x58] sm:$0xff] %vm26, %v24
    %39 = vst.msk [vmem:[#allocation2 + $0x60] sm:$0xff] %vm26, %v24
    %40 = vst.msk [vmem:[#allocation2 + $0x68] sm:$0xff] %vm26, %v24
    %41 = vst.msk [vmem:[#allocation2 + $0x70] sm:$0xff] %vm26, %v24
    %42 = vst.msk [vmem:[#allocation2 + $0x78] sm:$0xff] %vm26, %v24
    %43 = vst.msk [vmem:[#allocation2 + $0x80] sm:$0xff] %vm26, %v24
    %44 = vst.msk [vmem:[#allocation2 + $0x88] sm:$0xff] %vm26, %v24
    %45 = vst.msk [vmem:[#allocation2 + $0x90] sm:$0xff] %vm26, %v24
    %46 = vst.msk [vmem:[#allocation2 + $0x98] sm:$0xff] %vm26, %v24
    %47 = vst.msk [vmem:[#allocation2 + $0xa0] sm:$0xff] %vm26, %v24
    %48 = vst.msk [vmem:[#allocation2 + $0xa8] sm:$0xff] %vm26, %v24
    %49 = vst.msk [vmem:[#allocation2 + $0xb0] sm:$0xff] %vm26, %v24
    %50 = vst.msk [vmem:[#allocation2 + $0xb8] sm:$0xff] %vm26, %v24
    %51 = vst.msk [vmem:[#allocation2 + $0xc0] sm:$0xff] %vm26, %v24
    %52 = vst.msk [vmem:[#allocation2 + $0xc8] sm:$0xff] %vm26, %v24
    %53 = vst.msk [vmem:[#allocation2 + $0xd0] sm:$0xff] %vm26, %v24
    %54 = vst.msk [vmem:[#allocation2 + $0xd8] sm:$0xff] %vm26, %v24
    %55 = vst.msk [vmem:[#allocation2 + $0xe0] sm:$0xff] %vm26, %v24
    %56 = vst.msk [vmem:[#allocation2 + $0xe8] sm:$0xff] %vm26, %v24
    %57 = vst.msk [vmem:[#allocation2 + $0xf0] sm:$0xff] %vm26, %v24
    %58 = vst.msk [vmem:[#allocation2 + $0xf8] sm:$0xff] %vm26, %v24
    %59 = vst.msk [vmem:[#allocation2 + $0x100] sm:$0xff] %vm26, %v24
    %60 = vst.msk [vmem:[#allocation2 + $0x108] sm:$0xff] %vm26, %v24
    %61 = vst.msk [vmem:[#allocation2 + $0x110] sm:$0xff] %vm26, %v24
    %62 = vst.msk [vmem:[#allocation2 + $0x118] sm:$0xff] %vm26, %v24
    %63 = vst.msk [vmem:[#allocation2 + $0x120] sm:$0xff] %vm26, %v24
    %64 = vst.msk [vmem:[#allocation2 + $0x128] sm:$0xff] %vm26, %v24
    %65 = vst.msk [vmem:[#allocation2 + $0x130] sm:$0xff] %vm26, %v24
    %66 = vst.msk [vmem:[#allocation2 + $0x138] sm:$0xff] %vm26, %v24
    %67 = vst.msk [vmem:[#allocation2 + $0x140] sm:$0xff] %vm26, %v24
    %68 = vst.msk [vmem:[#allocation2 + $0x148] sm:$0xff] %vm26, %v24
    %69 = vst.msk [vmem:[#allocation2 + $0x150] sm:$0xff] %vm26, %v24
    %70 = vst.msk [vmem:[#allocation2 + $0x158] sm:$0xff] %vm26, %v24
    %71 = vst.msk [vmem:[#allocation2 + $0x160] sm:$0xff] %vm26, %v24
    %72 = vst.msk [vmem:[#allocation2 + $0x168] sm:$0xff] %vm26, %v24
    %73 = vst.msk [vmem:[#allocation2 + $0x170] sm:$0xff] %vm26, %v24
    %74 = vst.msk [vmem:[#allocation2 + $0x178] sm:$0xff] %vm26, %v24
    %75 = vst.msk [vmem:[#allocation2 + $0x180] sm:$0xff] %vm26, %v24
    %76 = vst.msk [vmem:[#allocation2 + $0x188] sm:$0xff] %vm26, %v24
    %77 = vst.msk [vmem:[#allocation2 + $0x190] sm:$0xff] %vm26, %v24
    %78 = vst.msk [vmem:[#allocation2 + $0x198] sm:$0xff] %vm26, %v24
    %79 = vst.msk [vmem:[#allocation2 + $0x1a0] sm:$0xff] %vm26, %v24
    %80 = vst.msk [vmem:[#allocation2 + $0x1a8] sm:$0xff] %vm26, %v24
    %81 = vst.msk [vmem:[#allocation2 + $0x1b0] sm:$0xff] %vm26, %v24
    %82 = vst.msk [vmem:[#allocation2 + $0x1b8] sm:$0xff] %vm26, %v24
    %83 = vst.msk [vmem:[#allocation2 + $0x1c0] sm:$0xff] %vm26, %v24
    %84 = vst.msk [vmem:[#allocation2 + $0x1c8] sm:$0xff] %vm26, %v24
    %85 = vst.msk [vmem:[#allocation2 + $0x1d0] sm:$0xff] %vm26, %v24
    %86 = vst.msk [vmem:[#allocation2 + $0x1d8] sm:$0xff] %vm26, %v24
    %87 = vst.msk [vmem:[#allocation2 + $0x1e0] sm:$0xff] %vm26, %v24
    %88 = vst.msk [vmem:[#allocation2 + $0x1e8] sm:$0xff] %vm26, %v24
    %89 = vst.msk [vmem:[#allocation2 + $0x1f0] sm:$0xff] %vm26, %v24
    %90 = vst.msk [vmem:[#allocation2 + $0x1f8] sm:$0xff] %vm26, %v24
  $region17: #{diffusion_unet_forward.7} parent=0 // pred_fallthru
    _
  %v91 = vld [vmem:[#allocation2] sm:$0xff]
  %v92 = vld [vmem:[#allocation2 + $0x8] sm:$0xff]
  %v93 = vld [vmem:[#allocation2 + $0x10] sm:$0xff]
  %v94 = vld [vmem:[#allocation2 + $0x18] sm:$0xff]
  %v95 = vld [vmem:[#allocation2 + $0x20] sm:$0xff]
  %v96 = vld [vmem:[#allocation2 + $0x28] sm:$0xff]
  %v97 = vld [vmem:[#allocation2 + $0x30] sm:$0xff]
  %v98 = vld [vmem:[#allocation2 + $0x38] sm:$0xff]
  %v99 = vld [vmem:[#allocation2 + $0x40] sm:$0xff]
  %v100 = vld [vmem:[#allocation2 + $0x48] sm:$0xff]
  %v101 = vld [vmem:[#allocation2 + $0x50] sm:$0xff]
  %v102 = vld [vmem:[#allocation2 + $0x58] sm:$0xff]
  %v103 = vld [vmem:[#allocation2 + $0x60] sm:$0xff]
  %v104 = vld [vmem:[#allocation2 + $0x68] sm:$0xff]
  %v105 = vld [vmem:[#allocation2 + $0x70] sm:$0xff]
  %v106 = vld [vmem:[#allocation2 + $0x78] sm:$0xff]
  %v107 = vld [vmem:[#allocation2 + $0x80] sm:$0xff]
  %v108 = vld [vmem:[#allocation2 + $0x88] sm:$0xff]
  %v109 = vld [vmem:[#allocation2 + $0x90] sm:$0xff]
  %v110 = vld [vmem:[#allocation2 + $0x98] sm:$0xff]
  %v111 = vld [vmem:[#allocation2 + $0xa0] sm:$0xff]
  %v112 = vld [vmem:[#allocation2 + $0xa8] sm:$0xff]
  %v113 = vld [vmem:[#allocation2 + $0xb0] sm:$0xff]
  %v114 = vld [vmem:[#allocation2 + $0xb8] sm:$0xff]
  %v115 = vld [vmem:[#allocation2 + $0xc0] sm:$0xff]
  %v116 = vld [vmem:[#allocation2 + $0xc8] sm:$0xff]
  %v117 = vld [vmem:[#allocation2 + $0xd0] sm:$0xff]
  %v118 = vld [vmem:[#allocation2 + $0xd8] sm:$0xff]
  %v119 = vld [vmem:[#allocation2 + $0xe0] sm:$0xff]
  %v120 = vld [vmem:[#allocation2 + $0xe8] sm:$0xff]
  %v121 = vld [vmem:[#allocation2 + $0xf0] sm:$0xff]
  %v122 = vld [vmem:[#allocation2 + $0xf8] sm:$0xff]
  %v123 = vld [vmem:[#allocation2 + $0x100] sm:$0xff]
  %v124 = vld [vmem:[#allocation2 + $0x108] sm:$0xff]
  %v125 = vld [vmem:[#allocation2 + $0x110] sm:$0xff]
  %v126 = vld [vmem:[#allocation2 + $0x118] sm:$0xff]
  %v127 = vld [vmem:[#allocation2 + $0x120] sm:$0xff]
  %v128 = vld [vmem:[#allocation2 + $0x128] sm:$0xff]
  %v129 = vld [vmem:[#allocation2 + $0x130] sm:$0xff]
  %v130 = vld [vmem:[#allocation2 + $0x138] sm:$0xff]
  %v131 = vld [vmem:[#allocation2 + $0x140] sm:$0xff]
  %v132 = vld [vmem:[#allocation2 + $0x148] sm:$0xff]
  %v133 = vld [vmem:[#allocation2 + $0x150] sm:$0xff]
  %v134 = vld [vmem:[#allocation2 + $0x158] sm:$0xff]
  %v135 = vld [vmem:[#allocation2 + $0x160] sm:$0xff]
  %v136 = vld [vmem:[#allocation2 + $0x168] sm:$0xff]
  %v137 = vld [vmem:[#allocation2 + $0x170] sm:$0xff]
  %v138 = vld [vmem:[#allocation2 + $0x178] sm:$0xff]
  %v139 = vld [vmem:[#allocation2 + $0x180] sm:$0xff]
  %v140 = vld [vmem:[#allocation2 + $0x188] sm:$0xff]
  %v141 = vld [vmem:[#allocation2 + $0x190] sm:$0xff]
  %v142 = vld [vmem:[#allocation2 + $0x198] sm:$0xff]
  %v143 = vld [vmem:[#allocation2 + $0x1a0] sm:$0xff]
  %v144 = vld [vmem:[#allocation2 + $0x1a8] sm:$0xff]
  %v145 = vld [vmem:[#allocation2 + $0x1b0] sm:$0xff]
  %v146 = vld [vmem:[#allocation2 + $0x1b8] sm:$0xff]
  %v147 = vld [vmem:[#allocation2 + $0x1c0] sm:$0xff]
  %v148 = vld [vmem:[#allocation2 + $0x1c8] sm:$0xff]
  %v149 = vld [vmem:[#allocation2 + $0x1d0] sm:$0xff]
  %v150 = vld [vmem:[#allocation2 + $0x1d8] sm:$0xff]
  %v151 = vld [vmem:[#allocation2 + $0x1e0] sm:$0xff]
  %v152 = vld [vmem:[#allocation2 + $0x1e8] sm:$0xff]
  %v153 = vld [vmem:[#allocation2 + $0x1f0] sm:$0xff]
  %v154 = vld [vmem:[#allocation2 + $0x1f8] sm:$0xff]
  %v155 = vld [vmem:[%s0] sm:$0xf]
  %v156 = vld [vmem:[%s0 + $0x4] sm:$0xf]
  %v157 = vld [vmem:[%s0 + $0x8] sm:$0xf]
  %v158 = vld [vmem:[%s0 + $0xc] sm:$0xf]
  %v159 = vld [vmem:[%s0 + $0x10] sm:$0xf]
  %v160 = vld [vmem:[%s0 + $0x14] sm:$0xf]
  %v161 = vld [vmem:[%s0 + $0x18] sm:$0xf]
  %v162 = vld [vmem:[%s0 + $0x1c] sm:$0xf]
  %v163 = vld [vmem:[%s0 + $0x20] sm:$0xf]
  %v164 = vld [vmem:[%s0 + $0x24] sm:$0xf]
  %v165 = vld [vmem:[%s0 + $0x28] sm:$0xf]
  %v166 = vld [vmem:[%s0 + $0x2c] sm:$0xf]
  %v167 = vld [vmem:[%s0 + $0x30] sm:$0xf]
  %v168 = vld [vmem:[%s0 + $0x34] sm:$0xf]
  %v169 = vld [vmem:[%s0 + $0x38] sm:$0xf]
  %v170 = vld [vmem:[%s0 + $0x3c] sm:$0xf]
  %v171 = vld [vmem:[%s0 + $0x40] sm:$0xf]
  %v172 = vld [vmem:[%s0 + $0x44] sm:$0xf]
  %v173 = vld [vmem:[%s0 + $0x48] sm:$0xf]
  %v174 = vld [vmem:[%s0 + $0x4c] sm:$0xf]
  %v175 = vld [vmem:[%s0 + $0x50] sm:$0xf]
  %v176 = vld [vmem:[%s0 + $0x54] sm:$0xf]
  %v177 = vld [vmem:[%s0 + $0x58] sm:$0xf]
  %v178 = vld [vmem:[%s0 + $0x5c] sm:$0xf]
  %v179 = vld [vmem:[%s0 + $0x60] sm:$0xf]
  %v180 = vld [vmem:[%s0 + $0x64] sm:$0xf]
  %v181 = vld [vmem:[%s0 + $0x68] sm:$0xf]
  %v182 = vld [vmem:[%s0 + $0x6c] sm:$0xf]
  %v183 = vld [vmem:[%s0 + $0x70] sm:$0xf]
  %v184 = vld [vmem:[%s0 + $0x74] sm:$0xf]
  %v185 = vld [vmem:[%s0 + $0x78] sm:$0xf]
  %v186 = vld [vmem:[%s0 + $0x7c] sm:$0xf]
  %v187 = vld [vmem:[%s0 + $0x80] sm:$0xf]
  %v188 = vld [vmem:[%s0 + $0x84] sm:$0xf]
  %v189 = vld [vmem:[%s0 + $0x88] sm:$0xf]
  %v190 = vld [vmem:[%s0 + $0x8c] sm:$0xf]
  %v191 = vld [vmem:[%s0 + $0x90] sm:$0xf]
  %v192 = vld [vmem:[%s0 + $0x94] sm:$0xf]
  %v193 = vld [vmem:[%s0 + $0x98] sm:$0xf]
  %v194 = vld [vmem:[%s0 + $0x9c] sm:$0xf]
  %v195 = vld [vmem:[%s0 + $0xa0] sm:$0xf]
  %v196 = vld [vmem:[%s0 + $0xa4] sm:$0xf]
  %v197 = vld [vmem:[%s0 + $0xa8] sm:$0xf]
  %v198 = vld [vmem:[%s0 + $0xac] sm:$0xf]
  %v199 = vld [vmem:[%s0 + $0xb0] sm:$0xf]
  %v200 = vld [vmem:[%s0 + $0xb4] sm:$0xf]
  %v201 = vld [vmem:[%s0 + $0xb8] sm:$0xf]
  %v202 = vld [vmem:[%s0 + $0xbc] sm:$0xf]
  %v203 = vld [vmem:[%s0 + $0xc0] sm:$0xf]
  %v204 = vld [vmem:[%s0 + $0xc4] sm:$0xf]
  %v205 = vld [vmem:[%s0 + $0xc8] sm:$0xf]
  %v206 = vld [vmem:[%s0 + $0xcc] sm:$0xf]
  %v207 = vld [vmem:[%s0 + $0xd0] sm:$0xf]
  %v208 = vld [vmem:[%s0 + $0xd4] sm:$0xf]
  %v209 = vld [vmem:[%s0 + $0xd8] sm:$0xf]
  %v210 = vld [vmem:[%s0 + $0xdc] sm:$0xf]
  %v211 = vld [vmem:[%s0 + $0xe0] sm:$0xf]
  %v212 = vld [vmem:[%s0 + $0xe4] sm:$0xf]
  %v213 = vld [vmem:[%s0 + $0xe8] sm:$0xf]
  %v214 = vld [vmem:[%s0 + $0xec] sm:$0xf]
  %v215 = vld [vmem:[%s0 + $0xf0] sm:$0xf]
  %v216 = vld [vmem:[%s0 + $0xf4] sm:$0xf]
  %v217 = vld [vmem:[%s0 + $0xf8] sm:$0xf]
  %v218 = vld [vmem:[%s0 + $0xfc] sm:$0xf]
  %v219 = vld [vmem:[%s1] sm:$0xf]
  %v220 = vld [vmem:[%s1 + $0x4] sm:$0x1]
  %v285 = vunpack.c.l.b16 %v155
  %v286 = vunpack.c.l.b16 %v156
  %v287 = vunpack.c.l.b16 %v157
  %v288 = vunpack.c.l.b16 %v158
  %v289 = vunpack.c.l.b16 %v159
  %v290 = vunpack.c.l.b16 %v160
  %v291 = vunpack.c.l.b16 %v161
  %v292 = vunpack.c.l.b16 %v162
  %v293 = vunpack.c.l.b16 %v163
  %v294 = vunpack.c.l.b16 %v164
  %v295 = vunpack.c.l.b16 %v165
  %v296 = vunpack.c.l.b16 %v166
  %v297 = vunpack.c.l.b16 %v167
  %v298 = vunpack.c.l.b16 %v168
  %v299 = vunpack.c.l.b16 %v169
  %v300 = vunpack.c.l.b16 %v170
  %v301 = vunpack.c.l.b16 %v171
  %v302 = vunpack.c.l.b16 %v172
  %v303 = vunpack.c.l.b16 %v173
  %v304 = vunpack.c.l.b16 %v174
  %v305 = vunpack.c.l.b16 %v175
  %v306 = vunpack.c.l.b16 %v176
  %v307 = vunpack.c.l.b16 %v177
  %v308 = vunpack.c.l.b16 %v178
  %v309 = vunpack.c.l.b16 %v179
  %v310 = vunpack.c.l.b16 %v180
  %v311 = vunpack.c.l.b16 %v181
  %v312 = vunpack.c.l.b16 %v182
  %v313 = vunpack.c.l.b16 %v183
  %v314 = vunpack.c.l.b16 %v184
  %v315 = vunpack.c.l.b16 %v185
  %v316 = vunpack.c.l.b16 %v186
  %v317 = vunpack.c.l.b16 %v187
  %v318 = vunpack.c.l.b16 %v188
  %v319 = vunpack.c.l.b16 %v189
  %v320 = vunpack.c.l.b16 %v190
  %v321 = vunpack.c.l.b16 %v191
  %v322 = vunpack.c.l.b16 %v192
  %v323 = vunpack.c.l.b16 %v193
  %v324 = vunpack.c.l.b16 %v194
  %v325 = vunpack.c.l.b16 %v195
  %v326 = vunpack.c.l.b16 %v196
  %v327 = vunpack.c.l.b16 %v197
  %v328 = vunpack.c.l.b16 %v198
  %v329 = vunpack.c.l.b16 %v199
  %v330 = vunpack.c.l.b16 %v200
  %v331 = vunpack.c.l.b16 %v201
  %v332 = vunpack.c.l.b16 %v202
  %v333 = vunpack.c.l.b16 %v203
  %v334 = vunpack.c.l.b16 %v204
  %v335 = vunpack.c.l.b16 %v205
  %v336 = vunpack.c.l.b16 %v206
  %v337 = vunpack.c.l.b16 %v207
  %v338 = vunpack.c.l.b16 %v208
  %v339 = vunpack.c.l.b16 %v209
  %v340 = vunpack.c.l.b16 %v210
  %v341 = vunpack.c.l.b16 %v211
  %v342 = vunpack.c.l.b16 %v212
  %v343 = vunpack.c.l.b16 %v213
  %v344 = vunpack.c.l.b16 %v214
  %v345 = vunpack.c.l.b16 %v215
  %v346 = vunpack.c.l.b16 %v216
  %v347 = vunpack.c.l.b16 %v217
  %v348 = vunpack.c.l.b16 %v218
  %v349 = vpack.c.b16 %v286, %v285
  %v350 = vpack.c.b16 %v288, %v287
  %v351 = vpack.c.b16 %v290, %v289
  %v352 = vpack.c.b16 %v292, %v291
  %v353 = vpack.c.b16 %v294, %v293
  %v354 = vpack.c.b16 %v296, %v295
  %v355 = vpack.c.b16 %v298, %v297
  %v356 = vpack.c.b16 %v300, %v299
  %v357 = vpack.c.b16 %v302, %v301
  %v358 = vpack.c.b16 %v304, %v303
  %v359 = vpack.c.b16 %v306, %v305
  %v360 = vpack.c.b16 %v308, %v307
  %v361 = vpack.c.b16 %v310, %v309
  %v362 = vpack.c.b16 %v312, %v311
  %v363 = vpack.c.b16 %v314, %v313
  %v364 = vpack.c.b16 %v316, %v315
  %v365 = vpack.c.b16 %v318, %v317
  %v366 = vpack.c.b16 %v320, %v319
  %v367 = vpack.c.b16 %v322, %v321
  %v368 = vpack.c.b16 %v324, %v323
  %v369 = vpack.c.b16 %v326, %v325
  %v370 = vpack.c.b16 %v328, %v327
  %v371 = vpack.c.b16 %v330, %v329
  %v372 = vpack.c.b16 %v332, %v331
  %v373 = vpack.c.b16 %v334, %v333
  %v374 = vpack.c.b16 %v336, %v335
  %v375 = vpack.c.b16 %v338, %v337
  %v376 = vpack.c.b16 %v340, %v339
  %v377 = vpack.c.b16 %v342, %v341
  %v378 = vpack.c.b16 %v344, %v343
  %v379 = vpack.c.b16 %v346, %v345
  %v380 = vpack.c.b16 %v348, %v347
  %v383 = vunpack.c.l.b16 %v219
  %v384 = vunpack.c.l.b16 %v220
  %v385 = vpack.c.b16 %v384, %v383
  %vm386 = vcmask 72704
  %v388 = vsel %vm386, %v349, 0
  %v391 = vsel %vm386, %v350, 0
  %v394 = vsel %vm386, %v351, 0
  %v397 = vsel %vm386, %v352, 0
  %v400 = vsel %vm386, %v353, 0
  %v403 = vsel %vm386, %v354, 0
  %v406 = vsel %vm386, %v355, 0
  %v409 = vsel %vm386, %v356, 0
  %v412 = vsel %vm386, %v357, 0
  %v415 = vsel %vm386, %v358, 0
  %v418 = vsel %vm386, %v359, 0
  %v421 = vsel %vm386, %v360, 0
  %v424 = vsel %vm386, %v361, 0
  %v427 = vsel %vm386, %v362, 0
  %v430 = vsel %vm386, %v363, 0
  %v433 = vsel %vm386, %v364, 0
  %v436 = vsel %vm386, %v365, 0
  %v439 = vsel %vm386, %v366, 0
  %v442 = vsel %vm386, %v367, 0
  %v445 = vsel %vm386, %v368, 0
  %v448 = vsel %vm386, %v369, 0
  %v451 = vsel %vm386, %v370, 0
  %v454 = vsel %vm386, %v371, 0
  %v457 = vsel %vm386, %v372, 0
  %v460 = vsel %vm386, %v373, 0
  %v463 = vsel %vm386, %v374, 0
  %v466 = vsel %vm386, %v375, 0
  %v469 = vsel %vm386, %v376, 0
  %v472 = vsel %vm386, %v377, 0
  %v475 = vsel %vm386, %v378, 0
  %v478 = vsel %vm386, %v379, 0
  %v481 = vsel %vm386, %v380, 0
  %vm483 = vcmask 1043456
  %vm484 = vcmask 1044480
  %v485 = vsel %vm483, 4294967295, 65535
  %v486 = vsel %vm484, %v485, 0
  %v488 = vand.u32 %v385, %v486
  %490 = vmatprep.subr.bf16.mxu0 0
  %491 = vmatpush1.bf16.msra.mxu0 %v488
  %492 = vmatprep.subr.bf16.mxu0 0
  %493 = vmatpush1.bf16.msra.mxu0 0
  %494 = vmatprep.subr.bf16.mxu0 0
  %495 = vmatpush1.bf16.msra.mxu0 0
  %496 = vmatprep.subr.bf16.mxu0 0
  %497 = vmatpush1.bf16.msra.mxu0 0
  %498 = vmatprep.subr.bf16.mxu0 0
  %499 = vmatpush1.bf16.msra.mxu0 0
  %500 = vmatprep.subr.bf16.mxu0 0
  %501 = vmatpush1.bf16.msra.mxu0 0
  %502 = vmatprep.subr.bf16.mxu0 0
  %503 = vmatpush1.bf16.msra.mxu0 0
  %504 = vmatprep.subr.bf16.mxu0 0
  %505 = vmatpush1.bf16.msra.mxu0 0
  %506 = vmatprep.subr.bf16.mxu0 0
  %507 = vmatpush1.bf16.msra.mxu0 0
  %508 = vmatprep.subr.bf16.mxu0 0
  %509 = vmatpush1.bf16.msra.mxu0 0
  %510 = vmatprep.subr.bf16.mxu0 0
  %511 = vmatpush1.bf16.msra.mxu0 0
  %512 = vmatprep.subr.bf16.mxu0 0
  %513 = vmatpush1.bf16.msra.mxu0 0
  %514 = vmatprep.subr.bf16.mxu0 0
  %515 = vmatpush1.bf16.msra.mxu0 0
  %516 = vmatprep.subr.bf16.mxu0 0
  %517 = vmatpush1.bf16.msra.mxu0 0
  %518 = vmatprep.subr.bf16.mxu0 0
  %519 = vmatpush1.bf16.msra.mxu0 0
  %520 = vmatprep.subr.bf16.mxu0 0
  %521 = vmatpush1.bf16.msra.mxu0 0
  %522 = vmatprep.mubr.bf16.mxu0 0
  %523 = vmatmul.mubr.bf16.gmra.mrb[0].mxu0 %v388
  %v524 = vpop.f32.mrb[0].mxu0
  %v525 = vadd.f32 0.0, %v524
  %v526 = vpop.f32.mrb[0].mxu0
  %v527 = vpop.f32.mrb[0].mxu0
  %v528 = vadd.f32 0.0, %v527
  %v529 = vpop.f32.mrb[0].mxu0
  %530 = vmatprep.mubr.bf16.mxu0 0
  %531 = vmatmul.mubr.bf16.gmra.mrb[0].mxu0 %v391
  %v532 = vpop.f32.mrb[0].mxu0
  %v533 = vadd.f32 0.0, %v532
  %v534 = vpop.f32.mrb[0].mxu0
  %v535 = vpop.f32.mrb[0].mxu0
  %v536 = vadd.f32 0.0, %v535
  %v537 = vpop.f32.mrb[0].mxu0
  %538 = vmatprep.mubr.bf16.mxu0 0
  %539 = vmatmul.mubr.bf16.gmra.mrb[0].mxu0 %v394
  %v540 = vpop.f32.mrb[0].mxu0
  %v541 = vadd.f32 0.0, %v540
  %v542 = vpop.f32.mrb[0].mxu0
  %v543 = vpop.f32.mrb[0].mxu0
  %v544 = vadd.f32 0.0, %v543
  %v545 = vpop.f32.mrb[0].mxu0
  %546 = vmatprep.mubr.bf16.mxu0 0
  %547 = vmatmul.mubr.bf16.gmra.mrb[0].mxu0 %v397
  %v548 = vpop.f32.mrb[0].mxu0
  %v549 = vadd.f32 0.0, %v548
  %v550 = vpop.f32.mrb[0].mxu0
  %v551 = vpop.f32.mrb[0].mxu0
  %v552 = vadd.f32 0.0, %v551
  %v553 = vpop.f32.mrb[0].mxu0
  %554 = vmatprep.mubr.bf16.mxu0 0
  %555 = vmatmul.mubr.bf16.gmra.mrb[0].mxu0 %v400
  %v556 = vpop.f32.mrb[0].mxu0
  %v557 = vadd.f32 0.0, %v556
  %v558 = vpop.f32.mrb[0].mxu0
  %v559 = vpop.f32.mrb[0].mxu0
  %v560 = vadd.f32 0.0, %v559
  %v561 = vpop.f32.mrb[0].mxu0
  %562 = vmatprep.mubr.bf16.mxu0 0
  %563 = vmatmul.mubr.bf16.gmra.mrb[0].mxu0 %v403
  %v564 = vpop.f32.mrb[0].mxu0
  %v565 = vadd.f32 0.0, %v564
  %v566 = vpop.f32.mrb[0].mxu0
  %v567 = vpop.f32.mrb[0].mxu0
  %v568 = vadd.f32 0.0, %v567
  %v569 = vpop.f32.mrb[0].mxu0
  %570 = vmatprep.mubr.bf16.mxu0 0
  %571 = vmatmul.mubr.bf16.gmra.mrb[0].mxu0 %v406
  %v572 = vpop.f32.mrb[0].mxu0
  %v573 = vadd.f32 0.0, %v572
  %v574 = vpop.f32.mrb[0].mxu0
  %v575 = vpop.f32.mrb[0].mxu0
  %v576 = vadd.f32 0.0, %v575
  %v577 = vpop.f32.mrb[0].mxu0
  %578 = vmatprep.mubr.bf16.mxu0 0
  %579 = vmatmul.mubr.bf16.gmra.mrb[0].mxu0 %v409
  %v580 = vpop.f32.mrb[0].mxu0
  %v581 = vadd.f32 0.0, %v580
  %v582 = vpop.f32.mrb[0].mxu0
  %v583 = vpop.f32.mrb[0].mxu0
  %v584 = vadd.f32 0.0, %v583
  %v585 = vpop.f32.mrb[0].mxu0
  %586 = vmatprep.mubr.bf16.mxu0 0
  %587 = vmatmul.mubr.bf16.gmra.mrb[0].mxu0 %v412
  %v588 = vpop.f32.mrb[0].mxu0
  %v589 = vadd.f32 0.0, %v588
  %v590 = vpop.f32.mrb[0].mxu0
  %v591 = vpop.f32.mrb[0].mxu0
  %v592 = vadd.f32 0.0, %v591
  %v593 = vpop.f32.mrb[0].mxu0
  %594 = vmatprep.mubr.bf16.mxu0 0
  %595 = vmatmul.mubr.bf16.gmra.mrb[0].mxu0 %v415
  %v596 = vpop.f32.mrb[0].mxu0
  %v597 = vadd.f32 0.0, %v596
  %v598 = vpop.f32.mrb[0].mxu0
  %v599 = vpop.f32.mrb[0].mxu0
  %v600 = vadd.f32 0.0, %v599
  %v601 = vpop.f32.mrb[0].mxu0
  %602 = vmatprep.mubr.bf16.mxu0 0
  %603 = vmatmul.mubr.bf16.gmra.mrb[0].mxu0 %v418
  %v604 = vpop.f32.mrb[0].mxu0
  %v605 = vadd.f32 0.0, %v604
  %v606 = vpop.f32.mrb[0].mxu0
  %v607 = vpop.f32.mrb[0].mxu0
  %v608 = vadd.f32 0.0, %v607
  %v609 = vpop.f32.mrb[0].mxu0
  %610 = vmatprep.mubr.bf16.mxu0 0
  %611 = vmatmul.mubr.bf16.gmra.mrb[0].mxu0 %v421
  %v612 = vpop.f32.mrb[0].mxu0
  %v613 = vadd.f32 0.0, %v612
  %v614 = vpop.f32.mrb[0].mxu0
  %v615 = vpop.f32.mrb[0].mxu0
  %v616 = vadd.f32 0.0, %v615
  %v617 = vpop.f32.mrb[0].mxu0
  %618 = vmatprep.mubr.bf16.mxu0 0
  %619 = vmatmul.mubr.bf16.gmra.mrb[0].mxu0 %v424
  %v620 = vpop.f32.mrb[0].mxu0
  %v621 = vadd.f32 0.0, %v620
  %v622 = vpop.f32.mrb[0].mxu0
  %v623 = vpop.f32.mrb[0].mxu0
  %v624 = vadd.f32 0.0, %v623
  %v625 = vpop.f32.mrb[0].mxu0
  %626 = vmatprep.mubr.bf16.mxu0 0
  %627 = vmatmul.mubr.bf16.gmra.mrb[0].mxu0 %v427
  %v628 = vpop.f32.mrb[0].mxu0
  %v629 = vadd.f32 0.0, %v628
  %v630 = vpop.f32.mrb[0].mxu0
  %v631 = vpop.f32.mrb[0].mxu0
  %v632 = vadd.f32 0.0, %v631
  %v633 = vpop.f32.mrb[0].mxu0
  %634 = vmatprep.mubr.bf16.mxu0 0
  %635 = vmatmul.mubr.bf16.gmra.mrb[0].mxu0 %v430
  %v636 = vpop.f32.mrb[0].mxu0
  %v637 = vadd.f32 0.0, %v636
  %v638 = vpop.f32.mrb[0].mxu0
  %v639 = vpop.f32.mrb[0].mxu0
  %v640 = vadd.f32 0.0, %v639
  %v641 = vpop.f32.mrb[0].mxu0
  %642 = vmatprep.mubr.bf16.mxu0 0
  %643 = vmatmul.mubr.bf16.gmra.mrb[0].mxu0 %v433
  %v644 = vpop.f32.mrb[0].mxu0
  %v645 = vadd.f32 0.0, %v644
  %v646 = vpop.f32.mrb[0].mxu0
  %v647 = vpop.f32.mrb[0].mxu0
  %v648 = vadd.f32 0.0, %v647
  %v649 = vpop.f32.mrb[0].mxu0
  %650 = vmatprep.mubr.bf16.mxu0 0
  %651 = vmatmul.mubr.bf16.gmra.mrb[0].mxu0 %v436
  %v652 = vpop.f32.mrb[0].mxu0
  %v653 = vadd.f32 0.0, %v652
  %v654 = vpop.f32.mrb[0].mxu0
  %v655 = vpop.f32.mrb[0].mxu0
  %v656 = vadd.f32 0.0, %v655
  %v657 = vpop.f32.mrb[0].mxu0
  %658 = vmatprep.mubr.bf16.mxu0 0
  %659 = vmatmul.mubr.bf16.gmra.mrb[0].mxu0 %v439
  %v660 = vpop.f32.mrb[0].mxu0
  %v661 = vadd.f32 0.0, %v660
  %v662 = vpop.f32.mrb[0].mxu0
  %v663 = vpop.f32.mrb[0].mxu0
  %v664 = vadd.f32 0.0, %v663
  %v665 = vpop.f32.mrb[0].mxu0
  %666 = vmatprep.mubr.bf16.mxu0 0
  %667 = vmatmul.mubr.bf16.gmra.mrb[0].mxu0 %v442
  %v668 = vpop.f32.mrb[0].mxu0
  %v669 = vadd.f32 0.0, %v668
  %v670 = vpop.f32.mrb[0].mxu0
  %v671 = vpop.f32.mrb[0].mxu0
  %v672 = vadd.f32 0.0, %v671
  %v673 = vpop.f32.mrb[0].mxu0
  %674 = vmatprep.mubr.bf16.mxu0 0
  %675 = vmatmul.mubr.bf16.gmra.mrb[0].mxu0 %v445
  %v676 = vpop.f32.mrb[0].mxu0
  %v677 = vadd.f32 0.0, %v676
  %v678 = vpop.f32.mrb[0].mxu0
  %v679 = vpop.f32.mrb[0].mxu0
  %v680 = vadd.f32 0.0, %v679
  %v681 = vpop.f32.mrb[0].mxu0
  %682 = vmatprep.mubr.bf16.mxu0 0
  %683 = vmatmul.mubr.bf16.gmra.mrb[0].mxu0 %v448
  %v684 = vpop.f32.mrb[0].mxu0
  %v685 = vadd.f32 0.0, %v684
  %v686 = vpop.f32.mrb[0].mxu0
  %v687 = vpop.f32.mrb[0].mxu0
  %v688 = vadd.f32 0.0, %v687
  %v689 = vpop.f32.mrb[0].mxu0
  %690 = vmatprep.mubr.bf16.mxu0 0
  %691 = vmatmul.mubr.bf16.gmra.mrb[0].mxu0 %v451
  %v692 = vpop.f32.mrb[0].mxu0
  %v693 = vadd.f32 0.0, %v692
  %v694 = vpop.f32.mrb[0].mxu0
  %v695 = vpop.f32.mrb[0].mxu0
  %v696 = vadd.f32 0.0, %v695
  %v697 = vpop.f32.mrb[0].mxu0
  %698 = vmatprep.mubr.bf16.mxu0 0
  %699 = vmatmul.mubr.bf16.gmra.mrb[0].mxu0 %v454
  %v700 = vpop.f32.mrb[0].mxu0
  %v701 = vadd.f32 0.0, %v700
  %v702 = vpop.f32.mrb[0].mxu0
  %v703 = vpop.f32.mrb[0].mxu0
  %v704 = vadd.f32 0.0, %v703
  %v705 = vpop.f32.mrb[0].mxu0
  %706 = vmatprep.mubr.bf16.mxu0 0
  %707 = vmatmul.mubr.bf16.gmra.mrb[0].mxu0 %v457
  %v708 = vpop.f32.mrb[0].mxu0
  %v709 = vadd.f32 0.0, %v708
  %v710 = vpop.f32.mrb[0].mxu0
  %v711 = vpop.f32.mrb[0].mxu0
  %v712 = vadd.f32 0.0, %v711
  %v713 = vpop.f32.mrb[0].mxu0
  %714 = vmatprep.mubr.bf16.mxu0 0
  %715 = vmatmul.mubr.bf16.gmra.mrb[0].mxu0 %v460
  %v716 = vpop.f32.mrb[0].mxu0
  %v717 = vadd.f32 0.0, %v716
  %v718 = vpop.f32.mrb[0].mxu0
  %v719 = vpop.f32.mrb[0].mxu0
  %v720 = vadd.f32 0.0, %v719
  %v721 = vpop.f32.mrb[0].mxu0
  %722 = vmatprep.mubr.bf16.mxu0 0
  %723 = vmatmul.mubr.bf16.gmra.mrb[0].mxu0 %v463
  %v724 = vpop.f32.mrb[0].mxu0
  %v725 = vadd.f32 0.0, %v724
  %v726 = vpop.f32.mrb[0].mxu0
  %v727 = vpop.f32.mrb[0].mxu0
  %v728 = vadd.f32 0.0, %v727
  %v729 = vpop.f32.mrb[0].mxu0
  %730 = vmatprep.mubr.bf16.mxu0 0
  %731 = vmatmul.mubr.bf16.gmra.mrb[0].mxu0 %v466
  %v732 = vpop.f32.mrb[0].mxu0
  %v733 = vadd.f32 0.0, %v732
  %v734 = vpop.f32.mrb[0].mxu0
  %v735 = vpop.f32.mrb[0].mxu0
  %v736 = vadd.f32 0.0, %v735
  %v737 = vpop.f32.mrb[0].mxu0
  %738 = vmatprep.mubr.bf16.mxu0 0
  %739 = vmatmul.mubr.bf16.gmra.mrb[0].mxu0 %v469
  %v740 = vpop.f32.mrb[0].mxu0
  %v741 = vadd.f32 0.0, %v740
  %v742 = vpop.f32.mrb[0].mxu0
  %v743 = vpop.f32.mrb[0].mxu0
  %v744 = vadd.f32 0.0, %v743
  %v745 = vpop.f32.mrb[0].mxu0
  %746 = vmatprep.mubr.bf16.mxu0 0
  %747 = vmatmul.mubr.bf16.gmra.mrb[0].mxu0 %v472
  %v748 = vpop.f32.mrb[0].mxu0
  %v749 = vadd.f32 0.0, %v748
  %v750 = vpop.f32.mrb[0].mxu0
  %v751 = vpop.f32.mrb[0].mxu0
  %v752 = vadd.f32 0.0, %v751
  %v753 = vpop.f32.mrb[0].mxu0
  %754 = vmatprep.mubr.bf16.mxu0 0
  %755 = vmatmul.mubr.bf16.gmra.mrb[0].mxu0 %v475
  %v756 = vpop.f32.mrb[0].mxu0
  %v757 = vadd.f32 0.0, %v756
  %v758 = vpop.f32.mrb[0].mxu0
  %v759 = vpop.f32.mrb[0].mxu0
  %v760 = vadd.f32 0.0, %v759
  %v761 = vpop.f32.mrb[0].mxu0
  %762 = vmatprep.mubr.bf16.mxu0 0
  %763 = vmatmul.mubr.bf16.gmra.mrb[0].mxu0 %v478
  %v764 = vpop.f32.mrb[0].mxu0
  %v765 = vadd.f32 0.0, %v764
  %v766 = vpop.f32.mrb[0].mxu0
  %v767 = vpop.f32.mrb[0].mxu0
  %v768 = vadd.f32 0.0, %v767
  %v769 = vpop.f32.mrb[0].mxu0
  %770 = vmatprep.mubr.bf16.mxu0 0
  %771 = vmatmul.mubr.bf16.gmra.mrb[0].mxu0 %v481
  %v772 = vpop.f32.mrb[0].mxu0
  %v773 = vadd.f32 0.0, %v772
  %v774 = vpop.f32.mrb[0].mxu0
  %v775 = vpop.f32.mrb[0].mxu0
  %v776 = vadd.f32 0.0, %v775
  %v777 = vpop.f32.mrb[0].mxu0
  %778 = vdwg.mxu0
  %v779 = vadd.f32 %v91, %v525
  %v780 = vadd.f32 %v92, %v528
  %v781 = vadd.f32 %v93, %v533
  %v782 = vadd.f32 %v94, %v536
  %v783 = vadd.f32 %v95, %v541
  %v784 = vadd.f32 %v96, %v544
  %v785 = vadd.f32 %v97, %v549
  %v786 = vadd.f32 %v98, %v552
  %v787 = vadd.f32 %v99, %v557
  %v788 = vadd.f32 %v100, %v560
  %v789 = vadd.f32 %v101, %v565
  %v790 = vadd.f32 %v102, %v568
  %v791 = vadd.f32 %v103, %v573
  %v792 = vadd.f32 %v104, %v576
  %v793 = vadd.f32 %v105, %v581
  %v794 = vadd.f32 %v106, %v584
  %v795 = vadd.f32 %v107, %v589
  %v796 = vadd.f32 %v108, %v592
  %v797 = vadd.f32 %v109, %v597
  %v798 = vadd.f32 %v110, %v600
  %v799 = vadd.f32 %v111, %v605
  %v800 = vadd.f32 %v112, %v608
  %v801 = vadd.f32 %v113, %v613
  %v802 = vadd.f32 %v114, %v616
  %v803 = vadd.f32 %v115, %v621
  %v804 = vadd.f32 %v116, %v624
  %v805 = vadd.f32 %v117, %v629
  %v806 = vadd.f32 %v118, %v632
  %v807 = vadd.f32 %v119, %v637
  %v808 = vadd.f32 %v120, %v640
  %v809 = vadd.f32 %v121, %v645
  %v810 = vadd.f32 %v122, %v648
  %v811 = vadd.f32 %v123, %v653
  %v812 = vadd.f32 %v124, %v656
  %v813 = vadd.f32 %v125, %v661
  %v814 = vadd.f32 %v126, %v664
  %v815 = vadd.f32 %v127, %v669
  %v816 = vadd.f32 %v128, %v672
  %v817 = vadd.f32 %v129, %v677
  %v818 = vadd.f32 %v130, %v680
  %v819 = vadd.f32 %v131, %v685
  %v820 = vadd.f32 %v132, %v688
  %v821 = vadd.f32 %v133, %v693
  %v822 = vadd.f32 %v134, %v696
  %v823 = vadd.f32 %v135, %v701
  %v824 = vadd.f32 %v136, %v704
  %v825 = vadd.f32 %v137, %v709
  %v826 = vadd.f32 %v138, %v712
  %v827 = vadd.f32 %v139, %v717
  %v828 = vadd.f32 %v140, %v720
  %v829 = vadd.f32 %v141, %v725
  %v830 = vadd.f32 %v142, %v728
  %v831 = vadd.f32 %v143, %v733
  %v832 = vadd.f32 %v144, %v736
  %v833 = vadd.f32 %v145, %v741
  %v834 = vadd.f32 %v146, %v744
  %v835 = vadd.f32 %v147, %v749
  %v836 = vadd.f32 %v148, %v752
  %v837 = vadd.f32 %v149, %v757
  %v838 = vadd.f32 %v150, %v760
  %v839 = vadd.f32 %v151, %v765
  %v840 = vadd.f32 %v152, %v768
  %v841 = vadd.f32 %v153, %v773
  %v842 = vadd.f32 %v154, %v776
  %vm843 = vcmask 64512
  %844 = vst.msk [vmem:[#allocation2] sm:$0xff] %vm843, %v779
  %845 = vst.msk [vmem:[#allocation2 + $0x8] sm:$0xff] %vm843, %v780
  %846 = vst.msk [vmem:[#allocation2 + $0x10] sm:$0xff] %vm843, %v781
  %847 = vst.msk [vmem:[#allocation2 + $0x18] sm:$0xff] %vm843, %v782
  %848 = vst.msk [vmem:[#allocation2 + $0x20] sm:$0xff] %vm843, %v783
  %849 = vst.msk [vmem:[#allocation2 + $0x28] sm:$0xff] %vm843, %v784
  %850 = vst.msk [vmem:[#allocation2 + $0x30] sm:$0xff] %vm843, %v785
  %851 = vst.msk [vmem:[#allocation2 + $0x38] sm:$0xff] %vm843, %v786
  %852 = vst.msk [vmem:[#allocation2 + $0x40] sm:$0xff] %vm843, %v787
  %853 = vst.msk [vmem:[#allocation2 + $0x48] sm:$0xff] %vm843, %v788
  %854 = vst.msk [vmem:[#allocation2 + $0x50] sm:$0xff] %vm843, %v789
  %855 = vst.msk [vmem:[#allocation2 + $0x58] sm:$0xff] %vm843, %v790
  %856 = vst.msk [vmem:[#allocation2 + $0x60] sm:$0xff] %vm843, %v791
  %857 = vst.msk [vmem:[#allocation2 + $0x68] sm:$0xff] %vm843, %v792
  %858 = vst.msk [vmem:[#allocation2 + $0x70] sm:$0xff] %vm843, %v793
  %859 = vst.msk [vmem:[#allocation2 + $0x78] sm:$0xff] %vm843, %v794
  %860 = vst.msk [vmem:[#allocation2 + $0x80] sm:$0xff] %vm843, %v795
  %861 = vst.msk [vmem:[#allocation2 + $0x88] sm:$0xff] %vm843, %v796
  %862 = vst.msk [vmem:[#allocation2 + $0x90] sm:$0xff] %vm843, %v797
  %863 = vst.msk [vmem:[#allocation2 + $0x98] sm:$0xff] %vm843, %v798
  %864 = vst.msk [vmem:[#allocation2 + $0xa0] sm:$0xff] %vm843, %v799
  %865 = vst.msk [vmem:[#allocation2 + $0xa8] sm:$0xff] %vm843, %v800
  %866 = vst.msk [vmem:[#allocation2 + $0xb0] sm:$0xff] %vm843, %v801
  %867 = vst.msk [vmem:[#allocation2 + $0xb8] sm:$0xff] %vm843, %v802
  %868 = vst.msk [vmem:[#allocation2 + $0xc0] sm:$0xff] %vm843, %v803
  %869 = vst.msk [vmem:[#allocation2 + $0xc8] sm:$0xff] %vm843, %v804
  %870 = vst.msk [vmem:[#allocation2 + $0xd0] sm:$0xff] %vm843, %v805
  %871 = vst.msk [vmem:[#allocation2 + $0xd8] sm:$0xff] %vm843, %v806
  %872 = vst.msk [vmem:[#allocation2 + $0xe0] sm:$0xff] %vm843, %v807
  %873 = vst.msk [vmem:[#allocation2 + $0xe8] sm:$0xff] %vm843, %v808
  %874 = vst.msk [vmem:[#allocation2 + $0xf0] sm:$0xff] %vm843, %v809
  %875 = vst.msk [vmem:[#allocation2 + $0xf8] sm:$0xff] %vm843, %v810
  %876 = vst.msk [vmem:[#allocation2 + $0x100] sm:$0xff] %vm843, %v811
  %877 = vst.msk [vmem:[#allocation2 + $0x108] sm:$0xff] %vm843, %v812
  %878 = vst.msk [vmem:[#allocation2 + $0x110] sm:$0xff] %vm843, %v813
  %879 = vst.msk [vmem:[#allocation2 + $0x118] sm:$0xff] %vm843, %v814
  %880 = vst.msk [vmem:[#allocation2 + $0x120] sm:$0xff] %vm843, %v815
  %881 = vst.msk [vmem:[#allocation2 + $0x128] sm:$0xff] %vm843, %v816
  %882 = vst.msk [vmem:[#allocation2 + $0x130] sm:$0xff] %vm843, %v817
  %883 = vst.msk [vmem:[#allocation2 + $0x138] sm:$0xff] %vm843, %v818
  %884 = vst.msk [vmem:[#allocation2 + $0x140] sm:$0xff] %vm843, %v819
  %885 = vst.msk [vmem:[#allocation2 + $0x148] sm:$0xff] %vm843, %v820
  %886 = vst.msk [vmem:[#allocation2 + $0x150] sm:$0xff] %vm843, %v821
  %887 = vst.msk [vmem:[#allocation2 + $0x158] sm:$0xff] %vm843, %v822
  %888 = vst.msk [vmem:[#allocation2 + $0x160] sm:$0xff] %vm843, %v823
  %889 = vst.msk [vmem:[#allocation2 + $0x168] sm:$0xff] %vm843, %v824
  %890 = vst.msk [vmem:[#allocation2 + $0x170] sm:$0xff] %vm843, %v825
  %891 = vst.msk [vmem:[#allocation2 + $0x178] sm:$0xff] %vm843, %v826
  %892 = vst.msk [vmem:[#allocation2 + $0x180] sm:$0xff] %vm843, %v827
  %893 = vst.msk [vmem:[#allocation2 + $0x188] sm:$0xff] %vm843, %v828
  %894 = vst.msk [vmem:[#allocation2 + $0x190] sm:$0xff] %vm843, %v829
  %895 = vst.msk [vmem:[#allocation2 + $0x198] sm:$0xff] %vm843, %v830
  %896 = vst.msk [vmem:[#allocation2 + $0x1a0] sm:$0xff] %vm843, %v831
  %897 = vst.msk [vmem:[#allocation2 + $0x1a8] sm:$0xff] %vm843, %v832
  %898 = vst.msk [vmem:[#allocation2 + $0x1b0] sm:$0xff] %vm843, %v833
  %899 = vst.msk [vmem:[#allocation2 + $0x1b8] sm:$0xff] %vm843, %v834
  %900 = vst.msk [vmem:[#allocation2 + $0x1c0] sm:$0xff] %vm843, %v835
  %901 = vst.msk [vmem:[#allocation2 + $0x1c8] sm:$0xff] %vm843, %v836
  %902 = vst.msk [vmem:[#allocation2 + $0x1d0] sm:$0xff] %vm843, %v837
  %903 = vst.msk [vmem:[#allocation2 + $0x1d8] sm:$0xff] %vm843, %v838
  %904 = vst.msk [vmem:[#allocation2 + $0x1e0] sm:$0xff] %vm843, %v839
  %905 = vst.msk [vmem:[#allocation2 + $0x1e8] sm:$0xff] %vm843, %v840
  %906 = vst.msk [vmem:[#allocation2 + $0x1f0] sm:$0xff] %vm843, %v841
  %907 = vst.msk [vmem:[#allocation2 + $0x1f8] sm:$0xff] %vm843, %v842
  // Predicated region
  $region18: #{diffusion_unet_forward.7} parent=0 // pred_check
    %p908 = pneg %p15
  $region19: #{diffusion_unet_forward.7} parent=0 // pred_check_branch
    %910 = sbr.rel (%p908) target = $region21
  $region20: #{diffusion_unet_forward.7} parent=0 // pred_region
    %v911 = vld [vmem:[#allocation2] sm:$0xff]
    %v912 = vld [vmem:[#allocation2 + $0x8] sm:$0xff]
    %v913 = vld [vmem:[#allocation2 + $0x10] sm:$0xff]
    %v914 = vld [vmem:[#allocation2 + $0x18] sm:$0xff]
    %v915 = vld [vmem:[#allocation2 + $0x20] sm:$0xff]
    %v916 = vld [vmem:[#allocation2 + $0x28] sm:$0xff]
    %v917 = vld [vmem:[#allocation2 + $0x30] sm:$0xff]
    %v918 = vld [vmem:[#allocation2 + $0x38] sm:$0xff]
    %v919 = vld [vmem:[#allocation2 + $0x40] sm:$0xff]
    %v920 = vld [vmem:[#allocation2 + $0x48] sm:$0xff]
    %v921 = vld [vmem:[#allocation2 + $0x50] sm:$0xff]
    %v922 = vld [vmem:[#allocation2 + $0x58] sm:$0xff]
    %v923 = vld [vmem:[#allocation2 + $0x60] sm:$0xff]
    %v924 = vld [vmem:[#allocation2 + $0x68] sm:$0xff]
    %v925 = vld [vmem:[#allocation2 + $0x70] sm:$0xff]
    %v926 = vld [vmem:[#allocation2 + $0x78] sm:$0xff]
    %v927 = vld [vmem:[#allocation2 + $0x80] sm:$0xff]
    %v928 = vld [vmem:[#allocation2 + $0x88] sm:$0xff]
    %v929 = vld [vmem:[#allocation2 + $0x90] sm:$0xff]
    %v930 = vld [vmem:[#allocation2 + $0x98] sm:$0xff]
    %v931 = vld [vmem:[#allocation2 + $0xa0] sm:$0xff]
    %v932 = vld [vmem:[#allocation2 + $0xa8] sm:$0xff]
    %v933 = vld [vmem:[#allocation2 + $0xb0] sm:$0xff]
    %v934 = vld [vmem:[#allocation2 + $0xb8] sm:$0xff]
    %v935 = vld [vmem:[#allocation2 + $0xc0] sm:$0xff]
    %v936 = vld [vmem:[#allocation2 + $0xc8] sm:$0xff]
    %v937 = vld [vmem:[#allocation2 + $0xd0] sm:$0xff]
    %v938 = vld [vmem:[#allocation2 + $0xd8] sm:$0xff]
    %v939 = vld [vmem:[#allocation2 + $0xe0] sm:$0xff]
    %v940 = vld [vmem:[#allocation2 + $0xe8] sm:$0xff]
    %v941 = vld [vmem:[#allocation2 + $0xf0] sm:$0xff]
    %v942 = vld [vmem:[#allocation2 + $0xf8] sm:$0xff]
    %v943 = vld [vmem:[#allocation2 + $0x100] sm:$0xff]
    %v944 = vld [vmem:[#allocation2 + $0x108] sm:$0xff]
    %v945 = vld [vmem:[#allocation2 + $0x110] sm:$0xff]
    %v946 = vld [vmem:[#allocation2 + $0x118] sm:$0xff]
    %v947 = vld [vmem:[#allocation2 + $0x120] sm:$0xff]
    %v948 = vld [vmem:[#allocation2 + $0x128] sm:$0xff]
    %v949 = vld [vmem:[#allocation2 + $0x130] sm:$0xff]
    %v950 = vld [vmem:[#allocation2 + $0x138] sm:$0xff]
    %v951 = vld [vmem:[#allocation2 + $0x140] sm:$0xff]
    %v952 = vld [vmem:[#allocation2 + $0x148] sm:$0xff]
    %v953 = vld [vmem:[#allocation2 + $0x150] sm:$0xff]
    %v954 = vld [vmem:[#allocation2 + $0x158] sm:$0xff]
    %v955 = vld [vmem:[#allocation2 + $0x160] sm:$0xff]
    %v956 = vld [vmem:[#allocation2 + $0x168] sm:$0xff]
    %v957 = vld [vmem:[#allocation2 + $0x170] sm:$0xff]
    %v958 = vld [vmem:[#allocation2 + $0x178] sm:$0xff]
    %v959 = vld [vmem:[#allocation2 + $0x180] sm:$0xff]
    %v960 = vld [vmem:[#allocation2 + $0x188] sm:$0xff]
    %v961 = vld [vmem:[#allocation2 + $0x190] sm:$0xff]
    %v962 = vld [vmem:[#allocation2 + $0x198] sm:$0xff]
    %v963 = vld [vmem:[#allocation2 + $0x1a0] sm:$0xff]
    %v964 = vld [vmem:[#allocation2 + $0x1a8] sm:$0xff]
    %v965 = vld [vmem:[#allocation2 + $0x1b0] sm:$0xff]
    %v966 = vld [vmem:[#allocation2 + $0x1b8] sm:$0xff]
    %v967 = vld [vmem:[#allocation2 + $0x1c0] sm:$0xff]
    %v968 = vld [vmem:[#allocation2 + $0x1c8] sm:$0xff]
    %v969 = vld [vmem:[#allocation2 + $0x1d0] sm:$0xff]
    %v970 = vld [vmem:[#allocation2 + $0x1d8] sm:$0xff]
    %v971 = vld [vmem:[#allocation2 + $0x1e0] sm:$0xff]
    %v972 = vld [vmem:[#allocation2 + $0x1e8] sm:$0xff]
    %v973 = vld [vmem:[#allocation2 + $0x1f0] sm:$0xff]
    %v974 = vld [vmem:[#allocation2 + $0x1f8] sm:$0xff]
    %v975 = vmax.f32 %v911, 0.0
    %v976 = vmax.f32 %v912, 0.0
    %v977 = vmax.f32 %v913, 0.0
    %v978 = vmax.f32 %v914, 0.0
    %v979 = vmax.f32 %v915, 0.0
    %v980 = vmax.f32 %v916, 0.0
    %v981 = vmax.f32 %v917, 0.0
    %v982 = vmax.f32 %v918, 0.0
    %v983 = vmax.f32 %v919, 0.0
    %v984 = vmax.f32 %v920, 0.0
    %v985 = vmax.f32 %v921, 0.0
    %v986 = vmax.f32 %v922, 0.0
    %v987 = vmax.f32 %v923, 0.0
    %v988 = vmax.f32 %v924, 0.0
    %v989 = vmax.f32 %v925, 0.0
    %v990 = vmax.f32 %v926, 0.0
    %v991 = vmax.f32 %v927, 0.0
    %v992 = vmax.f32 %v928, 0.0
    %v993 = vmax.f32 %v929, 0.0
    %v994 = vmax.f32 %v930, 0.0
    %v995 = vmax.f32 %v931, 0.0
    %v996 = vmax.f32 %v932, 0.0
    %v997 = vmax.f32 %v933, 0.0
    %v998 = vmax.f32 %v934, 0.0
    %v999 = vmax.f32 %v935, 0.0
    %v1000 = vmax.f32 %v936, 0.0
    %v1001 = vmax.f32 %v937, 0.0
    %v1002 = vmax.f32 %v938, 0.0
    %v1003 = vmax.f32 %v939, 0.0
    %v1004 = vmax.f32 %v940, 0.0
    %v1005 = vmax.f32 %v941, 0.0
    %v1006 = vmax.f32 %v942, 0.0
    %v1007 = vmax.f32 %v943, 0.0
    %v1008 = vmax.f32 %v944, 0.0
    %v1009 = vmax.f32 %v945, 0.0
    %v1010 = vmax.f32 %v946, 0.0
    %v1011 = vmax.f32 %v947, 0.0
    %v1012 = vmax.f32 %v948, 0.0
    %v1013 = vmax.f32 %v949, 0.0
    %v1014 = vmax.f32 %v950, 0.0
    %v1015 = vmax.f32 %v951, 0.0
    %v1016 = vmax.f32 %v952, 0.0
    %v1017 = vmax.f32 %v953, 0.0
    %v1018 = vmax.f32 %v954, 0.0
    %v1019 = vmax.f32 %v955, 0.0
    %v1020 = vmax.f32 %v956, 0.0
    %v1021 = vmax.f32 %v957, 0.0
    %v1022 = vmax.f32 %v958, 0.0
    %v1023 = vmax.f32 %v959, 0.0
    %v1024 = vmax.f32 %v960, 0.0
    %v1025 = vmax.f32 %v961, 0.0
    %v1026 = vmax.f32 %v962, 0.0
    %v1027 = vmax.f32 %v963, 0.0
    %v1028 = vmax.f32 %v964, 0.0
    %v1029 = vmax.f32 %v965, 0.0
    %v1030 = vmax.f32 %v966, 0.0
    %v1031 = vmax.f32 %v967, 0.0
    %v1032 = vmax.f32 %v968, 0.0
    %v1033 = vmax.f32 %v969, 0.0
    %v1034 = vmax.f32 %v970, 0.0
    %v1035 = vmax.f32 %v971, 0.0
    %v1036 = vmax.f32 %v972, 0.0
    %v1037 = vmax.f32 %v973, 0.0
    %v1038 = vmax.f32 %v974, 0.0
    %v1039 = vpack.c.bf16 %v976, %v975
    %v1040 = vpack.c.bf16 %v978, %v977
    %v1041 = vpack.c.bf16 %v980, %v979
    %v1042 = vpack.c.bf16 %v982, %v981
    %v1043 = vpack.c.bf16 %v984, %v983
    %v1044 = vpack.c.bf16 %v986, %v985
    %v1045 = vpack.c.bf16 %v988, %v987
    %v1046 = vpack.c.bf16 %v990, %v989
    %v1047 = vpack.c.bf16 %v992, %v991
    %v1048 = vpack.c.bf16 %v994, %v993
    %v1049 = vpack.c.bf16 %v996, %v995
    %v1050 = vpack.c.bf16 %v998, %v997
    %v1051 = vpack.c.bf16 %v1000, %v999
    %v1052 = vpack.c.bf16 %v1002, %v1001
    %v1053 = vpack.c.bf16 %v1004, %v1003
    %v1054 = vpack.c.bf16 %v1006, %v1005
    %v1055 = vpack.c.bf16 %v1008, %v1007
    %v1056 = vpack.c.bf16 %v1010, %v1009
    %v1057 = vpack.c.bf16 %v1012, %v1011
    %v1058 = vpack.c.bf16 %v1014, %v1013
    %v1059 = vpack.c.bf16 %v1016, %v1015
    %v1060 = vpack.c.bf16 %v1018, %v1017
    %v1061 = vpack.c.bf16 %v1020, %v1019
    %v1062 = vpack.c.bf16 %v1022, %v1021
    %v1063 = vpack.c.bf16 %v1024, %v1023
    %v1064 = vpack.c.bf16 %v1026, %v1025
    %v1065 = vpack.c.bf16 %v1028, %v1027
    %v1066 = vpack.c.bf16 %v1030, %v1029
    %v1067 = vpack.c.bf16 %v1032, %v1031
    %v1068 = vpack.c.bf16 %v1034, %v1033
    %v1069 = vpack.c.bf16 %v1036, %v1035
    %v1070 = vpack.c.bf16 %v1038, %v1037
    %v1103 = vunpack.c.l.b16 %v1039
    %v1104 = vunpack.c.h.b16 %v1039
    %v1105 = vunpack.c.l.b16 %v1040
    %v1106 = vunpack.c.h.b16 %v1040
    %v1107 = vunpack.c.l.b16 %v1041
    %v1108 = vunpack.c.h.b16 %v1041
    %v1109 = vunpack.c.l.b16 %v1042
    %v1110 = vunpack.c.h.b16 %v1042
    %v1111 = vunpack.c.l.b16 %v1043
    %v1112 = vunpack.c.h.b16 %v1043
    %v1113 = vunpack.c.l.b16 %v1044
    %v1114 = vunpack.c.h.b16 %v1044
    %v1115 = vunpack.c.l.b16 %v1045
    %v1116 = vunpack.c.h.b16 %v1045
    %v1117 = vunpack.c.l.b16 %v1046
    %v1118 = vunpack.c.h.b16 %v1046
    %v1119 = vunpack.c.l.b16 %v1047
    %v1120 = vunpack.c.h.b16 %v1047
    %v1121 = vunpack.c.l.b16 %v1048
    %v1122 = vunpack.c.h.b16 %v1048
    %v1123 = vunpack.c.l.b16 %v1049
    %v1124 = vunpack.c.h.b16 %v1049
    %v1125 = vunpack.c.l.b16 %v1050
    %v1126 = vunpack.c.h.b16 %v1050
    %v1127 = vunpack.c.l.b16 %v1051
    %v1128 = vunpack.c.h.b16 %v1051
    %v1129 = vunpack.c.l.b16 %v1052
    %v1130 = vunpack.c.h.b16 %v1052
    %v1131 = vunpack.c.l.b16 %v1053
    %v1132 = vunpack.c.h.b16 %v1053
    %v1133 = vunpack.c.l.b16 %v1054
    %v1134 = vunpack.c.h.b16 %v1054
    %v1135 = vunpack.c.l.b16 %v1055
    %v1136 = vunpack.c.h.b16 %v1055
    %v1137 = vunpack.c.l.b16 %v1056
    %v1138 = vunpack.c.h.b16 %v1056
    %v1139 = vunpack.c.l.b16 %v1057
    %v1140 = vunpack.c.h.b16 %v1057
    %v1141 = vunpack.c.l.b16 %v1058
    %v1142 = vunpack.c.h.b16 %v1058
    %v1143 = vunpack.c.l.b16 %v1059
    %v1144 = vunpack.c.h.b16 %v1059
    %v1145 = vunpack.c.l.b16 %v1060
    %v1146 = vunpack.c.h.b16 %v1060
    %v1147 = vunpack.c.l.b16 %v1061
    %v1148 = vunpack.c.h.b16 %v1061
    %v1149 = vunpack.c.l.b16 %v1062
    %v1150 = vunpack.c.h.b16 %v1062
    %v1151 = vunpack.c.l.b16 %v1063
    %v1152 = vunpack.c.h.b16 %v1063
    %v1153 = vunpack.c.l.b16 %v1064
    %v1154 = vunpack.c.h.b16 %v1064
    %v1155 = vunpack.c.l.b16 %v1065
    %v1156 = vunpack.c.h.b16 %v1065
    %v1157 = vunpack.c.l.b16 %v1066
    %v1158 = vunpack.c.h.b16 %v1066
    %v1159 = vunpack.c.l.b16 %v1067
    %v1160 = vunpack.c.h.b16 %v1067
    %v1161 = vunpack.c.l.b16 %v1068
    %v1162 = vunpack.c.h.b16 %v1068
    %v1163 = vunpack.c.l.b16 %v1069
    %v1164 = vunpack.c.h.b16 %v1069
    %v1165 = vunpack.c.l.b16 %v1070
    %v1166 = vunpack.c.h.b16 %v1070
    %v1167 = vpack.c.b16 %v1103, %v1103
    %v1168 = vpack.c.b16 %v1104, %v1104
    %v1169 = vpack.c.b16 %v1105, %v1105
    %v1170 = vpack.c.b16 %v1106, %v1106
    %v1171 = vpack.c.b16 %v1107, %v1107
    %v1172 = vpack.c.b16 %v1108, %v1108
    %v1173 = vpack.c.b16 %v1109, %v1109
    %v1174 = vpack.c.b16 %v1110, %v1110
    %v1175 = vpack.c.b16 %v1111, %v1111
    %v1176 = vpack.c.b16 %v1112, %v1112
    %v1177 = vpack.c.b16 %v1113, %v1113
    %v1178 = vpack.c.b16 %v1114, %v1114
    %v1179 = vpack.c.b16 %v1115, %v1115
    %v1180 = vpack.c.b16 %v1116, %v1116
    %v1181 = vpack.c.b16 %v1117, %v1117
    %v1182 = vpack.c.b16 %v1118, %v1118
    %v1183 = vpack.c.b16 %v1119, %v1119
    %v1184 = vpack.c.b16 %v1120, %v1120
    %v1185 = vpack.c.b16 %v1121, %v1121
    %v1186 = vpack.c.b16 %v1122, %v1122
    %v1187 = vpack.c.b16 %v1123, %v1123
    %v1188 = vpack.c.b16 %v1124, %v1124
    %v1189 = vpack.c.b16 %v1125, %v1125
    %v1190 = vpack.c.b16 %v1126, %v1126
    %v1191 = vpack.c.b16 %v1127, %v1127
    %v1192 = vpack.c.b16 %v1128, %v1128
    %v1193 = vpack.c.b16 %v1129, %v1129
    %v1194 = vpack.c.b16 %v1130, %v1130
    %v1195 = vpack.c.b16 %v1131, %v1131
    %v1196 = vpack.c.b16 %v1132, %v1132
    %v1197 = vpack.c.b16 %v1133, %v1133
    %v1198 = vpack.c.b16 %v1134, %v1134
    %v1199 = vpack.c.b16 %v1135, %v1135
    %v1200 = vpack.c.b16 %v1136, %v1136
    %v1201 = vpack.c.b16 %v1137, %v1137
    %v1202 = vpack.c.b16 %v1138, %v1138
    %v1203 = vpack.c.b16 %v1139, %v1139
    %v1204 = vpack.c.b16 %v1140, %v1140
    %v1205 = vpack.c.b16 %v1141, %v1141
    %v1206 = vpack.c.b16 %v1142, %v1142
    %v1207 = vpack.c.b16 %v1143, %v1143
    %v1208 = vpack.c.b16 %v1144, %v1144
    %v1209 = vpack.c.b16 %v1145, %v1145
    %v1210 = vpack.c.b16 %v1146, %v1146
    %v1211 = vpack.c.b16 %v1147, %v1147
    %v1212 = vpack.c.b16 %v1148, %v1148
    %v1213 = vpack.c.b16 %v1149, %v1149
    %v1214 = vpack.c.b16 %v1150, %v1150
    %v1215 = vpack.c.b16 %v1151, %v1151
    %v1216 = vpack.c.b16 %v1152, %v1152
    %v1217 = vpack.c.b16 %v1153, %v1153
    %v1218 = vpack.c.b16 %v1154, %v1154
    %v1219 = vpack.c.b16 %v1155, %v1155
    %v1220 = vpack.c.b16 %v1156, %v1156
    %v1221 = vpack.c.b16 %v1157, %v1157
    %v1222 = vpack.c.b16 %v1158, %v1158
    %v1223 = vpack.c.b16 %v1159, %v1159
    %v1224 = vpack.c.b16 %v1160, %v1160
    %v1225 = vpack.c.b16 %v1161, %v1161
    %v1226 = vpack.c.b16 %v1162, %v1162
    %v1227 = vpack.c.b16 %v1163, %v1163
    %v1228 = vpack.c.b16 %v1164, %v1164
    %v1229 = vpack.c.b16 %v1165, %v1165
    %v1230 = vpack.c.b16 %v1166, %v1166
    %vm1295 = vcmask 60416
    %1296 = vst.msk [vmem:[%s3] sm:$0xf] %vm1295, %v1167
    %1297 = vst.msk [vmem:[%s3 + $0x4] sm:$0xf] %vm1295, %v1168
    %1298 = vst.msk [vmem:[%s3 + $0x8] sm:$0xf] %vm1295, %v1169
    %1299 = vst.msk [vmem:[%s3 + $0xc] sm:$0xf] %vm1295, %v1170
    %1300 = vst.msk [vmem:[%s3 + $0x10] sm:$0xf] %vm1295, %v1171
    %1301 = vst.msk [vmem:[%s3 + $0x14] sm:$0xf] %vm1295, %v1172
    %1302 = vst.msk [vmem:[%s3 + $0x18] sm:$0xf] %vm1295, %v1173
    %1303 = vst.msk [vmem:[%s3 + $0x1c] sm:$0xf] %vm1295, %v1174
    %1304 = vst.msk [vmem:[%s3 + $0x20] sm:$0xf] %vm1295, %v1175
    %1305 = vst.msk [vmem:[%s3 + $0x24] sm:$0xf] %vm1295, %v1176
    %1306 = vst.msk [vmem:[%s3 + $0x28] sm:$0xf] %vm1295, %v1177
    %1307 = vst.msk [vmem:[%s3 + $0x2c] sm:$0xf] %vm1295, %v1178
    %1308 = vst.msk [vmem:[%s3 + $0x30] sm:$0xf] %vm1295, %v1179
    %1309 = vst.msk [vmem:[%s3 + $0x34] sm:$0xf] %vm1295, %v1180
    %1310 = vst.msk [vmem:[%s3 + $0x38] sm:$0xf] %vm1295, %v1181
    %1311 = vst.msk [vmem:[%s3 + $0x3c] sm:$0xf] %vm1295, %v1182
    %1312 = vst.msk [vmem:[%s3 + $0x40] sm:$0xf] %vm1295, %v1183
    %1313 = vst.msk [vmem:[%s3 + $0x44] sm:$0xf] %vm1295, %v1184
    %1314 = vst.msk [vmem:[%s3 + $0x48] sm:$0xf] %vm1295, %v1185
    %1315 = vst.msk [vmem:[%s3 + $0x4c] sm:$0xf] %vm1295, %v1186
    %1316 = vst.msk [vmem:[%s3 + $0x50] sm:$0xf] %vm1295, %v1187
    %1317 = vst.msk [vmem:[%s3 + $0x54] sm:$0xf] %vm1295, %v1188
    %1318 = vst.msk [vmem:[%s3 + $0x58] sm:$0xf] %vm1295, %v1189
    %1319 = vst.msk [vmem:[%s3 + $0x5c] sm:$0xf] %vm1295, %v1190
    %1320 = vst.msk [vmem:[%s3 + $0x60] sm:$0xf] %vm1295, %v1191
    %1321 = vst.msk [vmem:[%s3 + $0x64] sm:$0xf] %vm1295, %v1192
    %1322 = vst.msk [vmem:[%s3 + $0x68] sm:$0xf] %vm1295, %v1193
    %1323 = vst.msk [vmem:[%s3 + $0x6c] sm:$0xf] %vm1295, %v1194
    %1324 = vst.msk [vmem:[%s3 + $0x70] sm:$0xf] %vm1295, %v1195
    %1325 = vst.msk [vmem:[%s3 + $0x74] sm:$0xf] %vm1295, %v1196
    %1326 = vst.msk [vmem:[%s3 + $0x78] sm:$0xf] %vm1295, %v1197
    %1327 = vst.msk [vmem:[%s3 + $0x7c] sm:$0xf] %vm1295, %v1198
    %1328 = vst.msk [vmem:[%s3 + $0x80] sm:$0xf] %vm1295, %v1199
    %1329 = vst.msk [vmem:[%s3 + $0x84] sm:$0xf] %vm1295, %v1200
    %1330 = vst.msk [vmem:[%s3 + $0x88] sm:$0xf] %vm1295, %v1201
    %1331 = vst.msk [vmem:[%s3 + $0x8c] sm:$0xf] %vm1295, %v1202
    %1332 = vst.msk [vmem:[%s3 + $0x90] sm:$0xf] %vm1295, %v1203
    %1333 = vst.msk [vmem:[%s3 + $0x94] sm:$0xf] %vm1295, %v1204
    %1334 = vst.msk [vmem:[%s3 + $0x98] sm:$0xf] %vm1295, %v1205
    %1335 = vst.msk [vmem:[%s3 + $0x9c] sm:$0xf] %vm1295, %v1206
    %1336 = vst.msk [vmem:[%s3 + $0xa0] sm:$0xf] %vm1295, %v1207
    %1337 = vst.msk [vmem:[%s3 + $0xa4] sm:$0xf] %vm1295, %v1208
    %1338 = vst.msk [vmem:[%s3 + $0xa8] sm:$0xf] %vm1295, %v1209
    %1339 = vst.msk [vmem:[%s3 + $0xac] sm:$0xf] %vm1295, %v1210
    %1340 = vst.msk [vmem:[%s3 + $0xb0] sm:$0xf] %vm1295, %v1211
    %1341 = vst.msk [vmem:[%s3 + $0xb4] sm:$0xf] %vm1295, %v1212
    %1342 = vst.msk [vmem:[%s3 + $0xb8] sm:$0xf] %vm1295, %v1213
    %1343 = vst.msk [vmem:[%s3 + $0xbc] sm:$0xf] %vm1295, %v1214
    %1344 = vst.msk [vmem:[%s3 + $0xc0] sm:$0xf] %vm1295, %v1215
    %1345 = vst.msk [vmem:[%s3 + $0xc4] sm:$0xf] %vm1295, %v1216
    %1346 = vst.msk [vmem:[%s3 + $0xc8] sm:$0xf] %vm1295, %v1217
    %1347 = vst.msk [vmem:[%s3 + $0xcc] sm:$0xf] %vm1295, %v1218
    %1348 = vst.msk [vmem:[%s3 + $0xd0] sm:$0xf] %vm1295, %v1219
    %1349 = vst.msk [vmem:[%s3 + $0xd4] sm:$0xf] %vm1295, %v1220
    %1350 = vst.msk [vmem:[%s3 + $0xd8] sm:$0xf] %vm1295, %v1221
    %1351 = vst.msk [vmem:[%s3 + $0xdc] sm:$0xf] %vm1295, %v1222
    %1352 = vst.msk [vmem:[%s3 + $0xe0] sm:$0xf] %vm1295, %v1223
    %1353 = vst.msk [vmem:[%s3 + $0xe4] sm:$0xf] %vm1295, %v1224
    %1354 = vst.msk [vmem:[%s3 + $0xe8] sm:$0xf] %vm1295, %v1225
    %1355 = vst.msk [vmem:[%s3 + $0xec] sm:$0xf] %vm1295, %v1226
    %1356 = vst.msk [vmem:[%s3 + $0xf0] sm:$0xf] %vm1295, %v1227
    %1357 = vst.msk [vmem:[%s3 + $0xf4] sm:$0xf] %vm1295, %v1228
    %1358 = vst.msk [vmem:[%s3 + $0xf8] sm:$0xf] %vm1295, %v1229
    %1359 = vst.msk [vmem:[%s3 + $0xfc] sm:$0xf] %vm1295, %v1230
  $region21: #{diffusion_unet_forward.7} parent=0 // pred_fallthru
    _
  // Predicated region
  $region22: #{diffusion_unet_forward.7} parent=0 // pred_check
    _
  $region23: #{diffusion_unet_forward.7} parent=0 // pred_check_branch
    %1361 = sbr.rel (0) target = $region25
  $region24: #{diffusion_unet_forward.7} parent=0 // pred_region
    _
  $region25: #{diffusion_unet_forward.7} parent=0 // pred_fallthru
    _
  // Predicated region
  $region26: #{diffusion_unet_forward.7} parent=0 // pred_check
    _
  $region27: #{diffusion_unet_forward.7} parent=0 // pred_check_branch
    %1363 = sbr.rel (0) target = $region29
  $region28: #{diffusion_unet_forward.7} parent=0 // pred_region
    _
  $region29: #{diffusion_unet_forward.7} parent=0 // pred_fallthru
    _

// kernel: diffusion_unet_forward.8
$region0: #{diffusion_unet_forward.8}
  #allocation0 [shape = 'u32[]', space=smem, size = 0x4, offset = 0x4, fixed_abs, tag = 'smem constant byte address 0x4 - core index']
  #allocation1 [shape = 'u32[144,128]{1,0:T(1,128)}', space=vmem, size = 0x12000, scoped, tag = 'internal scratch']
  #allocation2 [shape = 'f32[128,16]{1,0:T(8,128)}', space=vmem, size = 0x10000, scoped, tag = 'scratch operand']
  %s0 = inlined_call_operand.vmem [shape: bf16[128,128], index: 0, kind: input, shape index: {}]
  %s1 = inlined_call_operand.vmem [shape: bf16[128,16], index: 1, kind: input, shape index: {}]
  %s2 = inlined_call_operand.vmem [shape: f32[1,16], index: 2, kind: input, shape index: {}]
  %s3 = inlined_call_operand.vmem [shape: bf16[128,16], index: 3, kind: output, shape index: {}]
  %s4 = sld [smem:[#allocation0]]
  $region30: #{diffusion_unet_forward.8} parent=0
    _
  %s6 = ssub.s32 1, %s4
  %s7 = scalar_select 0, %s6, %s4
  // Predicated region
  $region2: #{diffusion_unet_forward.8} parent=0 // pred_check
    _
  $region3: #{diffusion_unet_forward.8} parent=0 // pred_check_branch
    %9 = sbr.rel (0) target = $region5
  $region4: #{diffusion_unet_forward.8} parent=0 // pred_region
    _
  $region5: #{diffusion_unet_forward.8} parent=0 // pred_fallthru
    _
  // Predicated region
  $region6: #{diffusion_unet_forward.8} parent=0 // pred_check
    _
  $region7: #{diffusion_unet_forward.8} parent=0 // pred_check_branch
    %11 = sbr.rel (0) target = $region9
  $region8: #{diffusion_unet_forward.8} parent=0 // pred_region
    _
  $region9: #{diffusion_unet_forward.8} parent=0 // pred_fallthru
    _
  // Predicated region
  $region10: #{diffusion_unet_forward.8} parent=0 // pred_check
    _
  $region11: #{diffusion_unet_forward.8} parent=0 // pred_check_branch
    %13 = sbr.rel (0) target = $region13
  $region12: #{diffusion_unet_forward.8} parent=0 // pred_region
    _
  $region13: #{diffusion_unet_forward.8} parent=0 // pred_fallthru
    _
  %p15 = scmp.eq.s32.totalorder 0, 0
  // Predicated region
  $region14: #{diffusion_unet_forward.8} parent=0 // pred_check
    %p16 = pneg %p15
  $region15: #{diffusion_unet_forward.8} parent=0 // pred_check_branch
    %18 = sbr.rel (%p16) target = $region17
  $region16: #{diffusion_unet_forward.8} parent=0 // pred_region
    %v19 = vld [vmem:[%s2] sm:$0x1]
    %v21 = vlaneseq
    %v22 = vshrl.u32 %v21, 7
    %v23 = vsub.s32 0, %v22
    %v24 = vrot.slane %v19, %v23
    %vm26 = vcmask 130048
    %27 = vst.msk [vmem:[#allocation2] sm:$0xff] %vm26, %v24
    %28 = vst.msk [vmem:[#allocation2 + $0x8] sm:$0xff] %vm26, %v24
    %29 = vst.msk [vmem:[#allocation2 + $0x10] sm:$0xff] %vm26, %v24
    %30 = vst.msk [vmem:[#allocation2 + $0x18] sm:$0xff] %vm26, %v24
    %31 = vst.msk [vmem:[#allocation2 + $0x20] sm:$0xff] %vm26, %v24
    %32 = vst.msk [vmem:[#allocation2 + $0x28] sm:$0xff] %vm26, %v24
    %33 = vst.msk [vmem:[#allocation2 + $0x30] sm:$0xff] %vm26, %v24
    %34 = vst.msk [vmem:[#allocation2 + $0x38] sm:$0xff] %vm26, %v24
    %35 = vst.msk [vmem:[#allocation2 + $0x40] sm:$0xff] %vm26, %v24
    %36 = vst.msk [vmem:[#allocation2 + $0x48] sm:$0xff] %vm26, %v24
    %37 = vst.msk [vmem:[#allocation2 + $0x50] sm:$0xff] %vm26, %v24
    %38 = vst.msk [vmem:[#allocation2 + $0x58] sm:$0xff] %vm26, %v24
    %39 = vst.msk [vmem:[#allocation2 + $0x60] sm:$0xff] %vm26, %v24
    %40 = vst.msk [vmem:[#allocation2 + $0x68] sm:$0xff] %vm26, %v24
    %41 = vst.msk [vmem:[#allocation2 + $0x70] sm:$0xff] %vm26, %v24
    %42 = vst.msk [vmem:[#allocation2 + $0x78] sm:$0xff] %vm26, %v24
  $region17: #{diffusion_unet_forward.8} parent=0 // pred_fallthru
    _
  %v43 = vld [vmem:[#allocation2] sm:$0xff]
  %v44 = vld [vmem:[#allocation2 + $0x8] sm:$0xff]
  %v45 = vld [vmem:[#allocation2 + $0x10] sm:$0xff]
  %v46 = vld [vmem:[#allocation2 + $0x18] sm:$0xff]
  %v47 = vld [vmem:[#allocation2 + $0x20] sm:$0xff]
  %v48 = vld [vmem:[#allocation2 + $0x28] sm:$0xff]
  %v49 = vld [vmem:[#allocation2 + $0x30] sm:$0xff]
  %v50 = vld [vmem:[#allocation2 + $0x38] sm:$0xff]
  %v51 = vld [vmem:[#allocation2 + $0x40] sm:$0xff]
  %v52 = vld [vmem:[#allocation2 + $0x48] sm:$0xff]
  %v53 = vld [vmem:[#allocation2 + $0x50] sm:$0xff]
  %v54 = vld [vmem:[#allocation2 + $0x58] sm:$0xff]
  %v55 = vld [vmem:[#allocation2 + $0x60] sm:$0xff]
  %v56 = vld [vmem:[#allocation2 + $0x68] sm:$0xff]
  %v57 = vld [vmem:[#allocation2 + $0x70] sm:$0xff]
  %v58 = vld [vmem:[#allocation2 + $0x78] sm:$0xff]
  %v59 = vld [vmem:[%s0] sm:$0xf]
  %v60 = vld [vmem:[%s0 + $0x4] sm:$0xf]
  %v61 = vld [vmem:[%s0 + $0x8] sm:$0xf]
  %v62 = vld [vmem:[%s0 + $0xc] sm:$0xf]
  %v63 = vld [vmem:[%s0 + $0x10] sm:$0xf]
  %v64 = vld [vmem:[%s0 + $0x14] sm:$0xf]
  %v65 = vld [vmem:[%s0 + $0x18] sm:$0xf]
  %v66 = vld [vmem:[%s0 + $0x1c] sm:$0xf]
  %v67 = vld [vmem:[%s0 + $0x20] sm:$0xf]
  %v68 = vld [vmem:[%s0 + $0x24] sm:$0xf]
  %v69 = vld [vmem:[%s0 + $0x28] sm:$0xf]
  %v70 = vld [vmem:[%s0 + $0x2c] sm:$0xf]
  %v71 = vld [vmem:[%s0 + $0x30] sm:$0xf]
  %v72 = vld [vmem:[%s0 + $0x34] sm:$0xf]
  %v73 = vld [vmem:[%s0 + $0x38] sm:$0xf]
  %v74 = vld [vmem:[%s0 + $0x3c] sm:$0xf]
  %v75 = vld [vmem:[%s1] sm:$0xf]
  %v76 = vld [vmem:[%s1 + $0x4] sm:$0xf]
  %v77 = vld [vmem:[%s1 + $0x8] sm:$0xf]
  %v78 = vld [vmem:[%s1 + $0xc] sm:$0xf]
  %v79 = vld [vmem:[%s1 + $0x10] sm:$0xf]
  %v80 = vld [vmem:[%s1 + $0x14] sm:$0xf]
  %v81 = vld [vmem:[%s1 + $0x18] sm:$0xf]
  %v82 = vld [vmem:[%s1 + $0x1c] sm:$0xf]
  %v83 = vld [vmem:[%s1 + $0x20] sm:$0xf]
  %v84 = vld [vmem:[%s1 + $0x24] sm:$0xf]
  %v85 = vld [vmem:[%s1 + $0x28] sm:$0xf]
  %v86 = vld [vmem:[%s1 + $0x2c] sm:$0xf]
  %v87 = vld [vmem:[%s1 + $0x30] sm:$0xf]
  %v88 = vld [vmem:[%s1 + $0x34] sm:$0xf]
  %v89 = vld [vmem:[%s1 + $0x38] sm:$0xf]
  %v90 = vld [vmem:[%s1 + $0x3c] sm:$0xf]
  %v107 = vunpack.c.l.b16 %v59
  %v108 = vunpack.c.l.b16 %v60
  %v109 = vunpack.c.l.b16 %v61
  %v110 = vunpack.c.l.b16 %v62
  %v111 = vunpack.c.l.b16 %v63
  %v112 = vunpack.c.l.b16 %v64
  %v113 = vunpack.c.l.b16 %v65
  %v114 = vunpack.c.l.b16 %v66
  %v115 = vunpack.c.l.b16 %v67
  %v116 = vunpack.c.l.b16 %v68
  %v117 = vunpack.c.l.b16 %v69
  %v118 = vunpack.c.l.b16 %v70
  %v119 = vunpack.c.l.b16 %v71
  %v120 = vunpack.c.l.b16 %v72
  %v121 = vunpack.c.l.b16 %v73
  %v122 = vunpack.c.l.b16 %v74
  %v123 = vpack.c.b16 %v108, %v107
  %v124 = vpack.c.b16 %v110, %v109
  %v125 = vpack.c.b16 %v112, %v111
  %v126 = vpack.c.b16 %v114, %v113
  %v127 = vpack.c.b16 %v116, %v115
  %v128 = vpack.c.b16 %v118, %v117
  %v129 = vpack.c.b16 %v120, %v119
  %v130 = vpack.c.b16 %v122, %v121
  %v155 = vunpack.c.l.b16 %v75
  %v156 = vunpack.c.l.b16 %v76
  %v157 = vunpack.c.l.b16 %v77
  %v158 = vunpack.c.l.b16 %v78
  %v159 = vunpack.c.l.b16 %v79
  %v160 = vunpack.c.l.b16 %v80
  %v161 = vunpack.c.l.b16 %v81
  %v162 = vunpack.c.l.b16 %v82
  %v163 = vunpack.c.l.b16 %v83
  %v164 = vunpack.c.l.b16 %v84
  %v165 = vunpack.c.l.b16 %v85
  %v166 = vunpack.c.l.b16 %v86
  %v167 = vunpack.c.l.b16 %v87
  %v168 = vunpack.c.l.b16 %v88
  %v169 = vunpack.c.l.b16 %v89
  %v170 = vunpack.c.l.b16 %v90
  %v171 = vpack.c.b16 %v156, %v155
  %v172 = vpack.c.b16 %v158, %v157
  %v173 = vpack.c.b16 %v160, %v159
  %v174 = vpack.c.b16 %v162, %v161
  %v175 = vpack.c.b16 %v164, %v163
  %v176 = vpack.c.b16 %v166, %v165
  %v177 = vpack.c.b16 %v168, %v167
  %v178 = vpack.c.b16 %v170, %v169
  %187 = vmatprep.subr.bf16.mxu0 0
  %188 = vmatpush1.bf16.msra.mxu0 %v171
  %189 = vmatprep.subr.bf16.mxu0 0
  %190 = vmatpush1.bf16.msra.mxu0 %v172
  %191 = vmatprep.subr.bf16.mxu0 0
  %192 = vmatpush1.bf16.msra.mxu0 %v173
  %193 = vmatprep.subr.bf16.mxu0 0
  %194 = vmatpush1.bf16.msra.mxu0 %v174
  %195 = vmatprep.subr.bf16.mxu0 0
  %196 = vmatpush1.bf16.msra.mxu0 %v175
  %197 = vmatprep.subr.bf16.mxu0 0
  %198 = vmatpush1.bf16.msra.mxu0 %v176
  %199 = vmatprep.subr.bf16.mxu0 0
  %200 = vmatpush1.bf16.msra.mxu0 %v177
  %201 = vmatprep.subr.bf16.mxu0 0
  %202 = vmatpush1.bf16.msra.mxu0 %v178
  %203 = vmatprep.subr.bf16.mxu0 0
  %204 = vmatpush1.bf16.msra.mxu0 0
  %205 = vmatprep.subr.bf16.mxu0 0
  %206 = vmatpush1.bf16.msra.mxu0 0
  %207 = vmatprep.subr.bf16.mxu0 0
  %208 = vmatpush1.bf16.msra.mxu0 0
  %209 = vmatprep.subr.bf16.mxu0 0
  %210 = vmatpush1.bf16.msra.mxu0 0
  %211 = vmatprep.subr.bf16.mxu0 0
  %212 = vmatpush1.bf16.msra.mxu0 0
  %213 = vmatprep.subr.bf16.mxu0 0
  %214 = vmatpush1.bf16.msra.mxu0 0
  %215 = vmatprep.subr.bf16.mxu0 0
  %216 = vmatpush1.bf16.msra.mxu0 0
  %217 = vmatprep.subr.bf16.mxu0 0
  %218 = vmatpush1.bf16.msra.mxu0 0
  %219 = vmatprep.mubr.bf16.mxu0 0
  %220 = vmatmul.mubr.bf16.gmra.mrb[0].mxu0 %v123
  %v221 = vpop.f32.mrb[0].mxu0
  %v222 = vadd.f32 0.0, %v221
  %v223 = vpop.f32.mrb[0].mxu0
  %v224 = vpop.f32.mrb[0].mxu0
  %v225 = vadd.f32 0.0, %v224
  %v226 = vpop.f32.mrb[0].mxu0
  %227 = vmatprep.mubr.bf16.mxu0 0
  %228 = vmatmul.mubr.bf16.gmra.mrb[0].mxu0 %v124
  %v229 = vpop.f32.mrb[0].mxu0
  %v230 = vadd.f32 0.0, %v229
  %v231 = vpop.f32.mrb[0].mxu0
  %v232 = vpop.f32.mrb[0].mxu0
  %v233 = vadd.f32 0.0, %v232
  %v234 = vpop.f32.mrb[0].mxu0
  %235 = vmatprep.mubr.bf16.mxu0 0
  %236 = vmatmul.mubr.bf16.gmra.mrb[0].mxu0 %v125
  %v237 = vpop.f32.mrb[0].mxu0
  %v238 = vadd.f32 0.0, %v237
  %v239 = vpop.f32.mrb[0].mxu0
  %v240 = vpop.f32.mrb[0].mxu0
  %v241 = vadd.f32 0.0, %v240
  %v242 = vpop.f32.mrb[0].mxu0
  %243 = vmatprep.mubr.bf16.mxu0 0
  %244 = vmatmul.mubr.bf16.gmra.mrb[0].mxu0 %v126
  %v245 = vpop.f32.mrb[0].mxu0
  %v246 = vadd.f32 0.0, %v245
  %v247 = vpop.f32.mrb[0].mxu0
  %v248 = vpop.f32.mrb[0].mxu0
  %v249 = vadd.f32 0.0, %v248
  %v250 = vpop.f32.mrb[0].mxu0
  %251 = vmatprep.mubr.bf16.mxu0 0
  %252 = vmatmul.mubr.bf16.gmra.mrb[0].mxu0 %v127
  %v253 = vpop.f32.mrb[0].mxu0
  %v254 = vadd.f32 0.0, %v253
  %v255 = vpop.f32.mrb[0].mxu0
  %v256 = vpop.f32.mrb[0].mxu0
  %v257 = vadd.f32 0.0, %v256
  %v258 = vpop.f32.mrb[0].mxu0
  %259 = vmatprep.mubr.bf16.mxu0 0
  %260 = vmatmul.mubr.bf16.gmra.mrb[0].mxu0 %v128
  %v261 = vpop.f32.mrb[0].mxu0
  %v262 = vadd.f32 0.0, %v261
  %v263 = vpop.f32.mrb[0].mxu0
  %v264 = vpop.f32.mrb[0].mxu0
  %v265 = vadd.f32 0.0, %v264
  %v266 = vpop.f32.mrb[0].mxu0
  %267 = vmatprep.mubr.bf16.mxu0 0
  %268 = vmatmul.mubr.bf16.gmra.mrb[0].mxu0 %v129
  %v269 = vpop.f32.mrb[0].mxu0
  %v270 = vadd.f32 0.0, %v269
  %v271 = vpop.f32.mrb[0].mxu0
  %v272 = vpop.f32.mrb[0].mxu0
  %v273 = vadd.f32 0.0, %v272
  %v274 = vpop.f32.mrb[0].mxu0
  %275 = vmatprep.mubr.bf16.mxu0 0
  %276 = vmatmul.mubr.bf16.gmra.mrb[0].mxu0 %v130
  %v277 = vpop.f32.mrb[0].mxu0
  %v278 = vadd.f32 0.0, %v277
  %v279 = vpop.f32.mrb[0].mxu0
  %v280 = vpop.f32.mrb[0].mxu0
  %v281 = vadd.f32 0.0, %v280
  %v282 = vpop.f32.mrb[0].mxu0
  %283 = vdwg.mxu0
  %v284 = vadd.f32 %v43, %v222
  %v285 = vadd.f32 %v44, %v225
  %v286 = vadd.f32 %v45, %v230
  %v287 = vadd.f32 %v46, %v233
  %v288 = vadd.f32 %v47, %v238
  %v289 = vadd.f32 %v48, %v241
  %v290 = vadd.f32 %v49, %v246
  %v291 = vadd.f32 %v50, %v249
  %v292 = vadd.f32 %v51, %v254
  %v293 = vadd.f32 %v52, %v257
  %v294 = vadd.f32 %v53, %v262
  %v295 = vadd.f32 %v54, %v265
  %v296 = vadd.f32 %v55, %v270
  %v297 = vadd.f32 %v56, %v273
  %v298 = vadd.f32 %v57, %v278
  %v299 = vadd.f32 %v58, %v281
  %vm300 = vcmask 130048
  %301 = vst.msk [vmem:[#allocation2] sm:$0xff] %vm300, %v284
  %302 = vst.msk [vmem:[#allocation2 + $0x8] sm:$0xff] %vm300, %v285
  %303 = vst.msk [vmem:[#allocation2 + $0x10] sm:$0xff] %vm300, %v286
  %304 = vst.msk [vmem:[#allocation2 + $0x18] sm:$0xff] %vm300, %v287
  %305 = vst.msk [vmem:[#allocation2 + $0x20] sm:$0xff] %vm300, %v288
  %306 = vst.msk [vmem:[#allocation2 + $0x28] sm:$0xff] %vm300, %v289
  %307 = vst.msk [vmem:[#allocation2 + $0x30] sm:$0xff] %vm300, %v290
  %308 = vst.msk [vmem:[#allocation2 + $0x38] sm:$0xff] %vm300, %v291
  %309 = vst.msk [vmem:[#allocation2 + $0x40] sm:$0xff] %vm300, %v292
  %310 = vst.msk [vmem:[#allocation2 + $0x48] sm:$0xff] %vm300, %v293
  %311 = vst.msk [vmem:[#allocation2 + $0x50] sm:$0xff] %vm300, %v294
  %312 = vst.msk [vmem:[#allocation2 + $0x58] sm:$0xff] %vm300, %v295
  %313 = vst.msk [vmem:[#allocation2 + $0x60] sm:$0xff] %vm300, %v296
  %314 = vst.msk [vmem:[#allocation2 + $0x68] sm:$0xff] %vm300, %v297
  %315 = vst.msk [vmem:[#allocation2 + $0x70] sm:$0xff] %vm300, %v298
  %316 = vst.msk [vmem:[#allocation2 + $0x78] sm:$0xff] %vm300, %v299
  // Predicated region
  $region18: #{diffusion_unet_forward.8} parent=0 // pred_check
    %p317 = pneg %p15
  $region19: #{diffusion_unet_forward.8} parent=0 // pred_check_branch
    %319 = sbr.rel (%p317) target = $region21
  $region20: #{diffusion_unet_forward.8} parent=0 // pred_region
    %v320 = vld [vmem:[#allocation2] sm:$0xff]
    %v321 = vld [vmem:[#allocation2 + $0x8] sm:$0xff]
    %v322 = vld [vmem:[#allocation2 + $0x10] sm:$0xff]
    %v323 = vld [vmem:[#allocation2 + $0x18] sm:$0xff]
    %v324 = vld [vmem:[#allocation2 + $0x20] sm:$0xff]
    %v325 = vld [vmem:[#allocation2 + $0x28] sm:$0xff]
    %v326 = vld [vmem:[#allocation2 + $0x30] sm:$0xff]
    %v327 = vld [vmem:[#allocation2 + $0x38] sm:$0xff]
    %v328 = vld [vmem:[#allocation2 + $0x40] sm:$0xff]
    %v329 = vld [vmem:[#allocation2 + $0x48] sm:$0xff]
    %v330 = vld [vmem:[#allocation2 + $0x50] sm:$0xff]
    %v331 = vld [vmem:[#allocation2 + $0x58] sm:$0xff]
    %v332 = vld [vmem:[#allocation2 + $0x60] sm:$0xff]
    %v333 = vld [vmem:[#allocation2 + $0x68] sm:$0xff]
    %v334 = vld [vmem:[#allocation2 + $0x70] sm:$0xff]
    %v335 = vld [vmem:[#allocation2 + $0x78] sm:$0xff]
    %v336 = vmax.f32 %v320, 0.0
    %v337 = vmax.f32 %v321, 0.0
    %v338 = vmax.f32 %v322, 0.0
    %v339 = vmax.f32 %v323, 0.0
    %v340 = vmax.f32 %v324, 0.0
    %v341 = vmax.f32 %v325, 0.0
    %v342 = vmax.f32 %v326, 0.0
    %v343 = vmax.f32 %v327, 0.0
    %v344 = vmax.f32 %v328, 0.0
    %v345 = vmax.f32 %v329, 0.0
    %v346 = vmax.f32 %v330, 0.0
    %v347 = vmax.f32 %v331, 0.0
    %v348 = vmax.f32 %v332, 0.0
    %v349 = vmax.f32 %v333, 0.0
    %v350 = vmax.f32 %v334, 0.0
    %v351 = vmax.f32 %v335, 0.0
    %v352 = vpack.c.bf16 %v337, %v336
    %v353 = vpack.c.bf16 %v339, %v338
    %v354 = vpack.c.bf16 %v341, %v340
    %v355 = vpack.c.bf16 %v343, %v342
    %v356 = vpack.c.bf16 %v345, %v344
    %v357 = vpack.c.bf16 %v347, %v346
    %v358 = vpack.c.bf16 %v349, %v348
    %v359 = vpack.c.bf16 %v351, %v350
    %v368 = vunpack.c.l.b16 %v352
    %v369 = vunpack.c.h.b16 %v352
    %v370 = vunpack.c.l.b16 %v353
    %v371 = vunpack.c.h.b16 %v353
    %v372 = vunpack.c.l.b16 %v354
    %v373 = vunpack.c.h.b16 %v354
    %v374 = vunpack.c.l.b16 %v355
    %v375 = vunpack.c.h.b16 %v355
    %v376 = vunpack.c.l.b16 %v356
    %v377 = vunpack.c.h.b16 %v356
    %v378 = vunpack.c.l.b16 %v357
    %v379 = vunpack.c.h.b16 %v357
    %v380 = vunpack.c.l.b16 %v358
    %v381 = vunpack.c.h.b16 %v358
    %v382 = vunpack.c.l.b16 %v359
    %v383 = vunpack.c.h.b16 %v359
    %v384 = vpack.c.b16 %v368, %v368
    %v385 = vpack.c.b16 %v369, %v369
    %v386 = vpack.c.b16 %v370, %v370
    %v387 = vpack.c.b16 %v371, %v371
    %v388 = vpack.c.b16 %v372, %v372
    %v389 = vpack.c.b16 %v373, %v373
    %v390 = vpack.c.b16 %v374, %v374
    %v391 = vpack.c.b16 %v375, %v375
    %v392 = vpack.c.b16 %v376, %v376
    %v393 = vpack.c.b16 %v377, %v377
    %v394 = vpack.c.b16 %v378, %v378
    %v395 = vpack.c.b16 %v379, %v379
    %v396 = vpack.c.b16 %v380, %v380
    %v397 = vpack.c.b16 %v381, %v381
    %v398 = vpack.c.b16 %v382, %v382
    %v399 = vpack.c.b16 %v383, %v383
    %vm416 = vcmask 125952
    %417 = vst.msk [vmem:[%s3] sm:$0xf] %vm416, %v384
    %418 = vst.msk [vmem:[%s3 + $0x4] sm:$0xf] %vm416, %v385
    %419 = vst.msk [vmem:[%s3 + $0x8] sm:$0xf] %vm416, %v386
    %420 = vst.msk [vmem:[%s3 + $0xc] sm:$0xf] %vm416, %v387
    %421 = vst.msk [vmem:[%s3 + $0x10] sm:$0xf] %vm416, %v388
    %422 = vst.msk [vmem:[%s3 + $0x14] sm:$0xf] %vm416, %v389
    %423 = vst.msk [vmem:[%s3 + $0x18] sm:$0xf] %vm416, %v390
    %424 = vst.msk [vmem:[%s3 + $0x1c] sm:$0xf] %vm416, %v391
    %425 = vst.msk [vmem:[%s3 + $0x20] sm:$0xf] %vm416, %v392
    %426 = vst.msk [vmem:[%s3 + $0x24] sm:$0xf] %vm416, %v393
    %427 = vst.msk [vmem:[%s3 + $0x28] sm:$0xf] %vm416, %v394
    %428 = vst.msk [vmem:[%s3 + $0x2c] sm:$0xf] %vm416, %v395
    %429 = vst.msk [vmem:[%s3 + $0x30] sm:$0xf] %vm416, %v396
    %430 = vst.msk [vmem:[%s3 + $0x34] sm:$0xf] %vm416, %v397
    %431 = vst.msk [vmem:[%s3 + $0x38] sm:$0xf] %vm416, %v398
    %432 = vst.msk [vmem:[%s3 + $0x3c] sm:$0xf] %vm416, %v399
  $region21: #{diffusion_unet_forward.8} parent=0 // pred_fallthru
    _
  // Predicated region
  $region22: #{diffusion_unet_forward.8} parent=0 // pred_check
    _
  $region23: #{diffusion_unet_forward.8} parent=0 // pred_check_branch
    %434 = sbr.rel (0) target = $region25
  $region24: #{diffusion_unet_forward.8} parent=0 // pred_region
    _
  $region25: #{diffusion_unet_forward.8} parent=0 // pred_fallthru
    _
  // Predicated region
  $region26: #{diffusion_unet_forward.8} parent=0 // pred_check
    _
  $region27: #{diffusion_unet_forward.8} parent=0 // pred_check_branch
    %436 = sbr.rel (0) target = $region29
  $region28: #{diffusion_unet_forward.8} parent=0 // pred_region
    _
  $region29: #{diffusion_unet_forward.8} parent=0 // pred_fallthru
    _

// kernel: diffusion_unet_forward.9
$region0: #{diffusion_unet_forward.9}
  #allocation0 [shape = 'u32[]', space=smem, size = 0x4, offset = 0x4, fixed_abs, tag = 'smem constant byte address 0x4 - core index']
  #allocation1 [shape = 'u32[144,128]{1,0:T(1,128)}', space=vmem, size = 0x12000, scoped, tag = 'internal scratch']
  #allocation2 [shape = 'f32[32,32]{1,0:T(8,128)}', space=vmem, size = 0x4000, scoped, tag = 'scratch operand']
  %s0 = inlined_call_operand.vmem [shape: bf16[32,256], index: 0, kind: input, shape index: {}]
  %s1 = inlined_call_operand.vmem [shape: bf16[256,32], index: 1, kind: input, shape index: {}]
  %s2 = inlined_call_operand.vmem [shape: f32[1,32], index: 2, kind: input, shape index: {}]
  %s3 = inlined_call_operand.vmem [shape: bf16[32,32], index: 3, kind: output, shape index: {}]
  %s4 = sld [smem:[#allocation0]]
  $region30: #{diffusion_unet_forward.9} parent=0
    _
  %s6 = ssub.s32 1, %s4
  %s7 = scalar_select 0, %s6, %s4
  // Predicated region
  $region2: #{diffusion_unet_forward.9} parent=0 // pred_check
    _
  $region3: #{diffusion_unet_forward.9} parent=0 // pred_check_branch
    %9 = sbr.rel (0) target = $region5
  $region4: #{diffusion_unet_forward.9} parent=0 // pred_region
    _
  $region5: #{diffusion_unet_forward.9} parent=0 // pred_fallthru
    _
  // Predicated region
  $region6: #{diffusion_unet_forward.9} parent=0 // pred_check
    _
  $region7: #{diffusion_unet_forward.9} parent=0 // pred_check_branch
    %11 = sbr.rel (0) target = $region9
  $region8: #{diffusion_unet_forward.9} parent=0 // pred_region
    _
  $region9: #{diffusion_unet_forward.9} parent=0 // pred_fallthru
    _
  // Predicated region
  $region10: #{diffusion_unet_forward.9} parent=0 // pred_check
    _
  $region11: #{diffusion_unet_forward.9} parent=0 // pred_check_branch
    %13 = sbr.rel (0) target = $region13
  $region12: #{diffusion_unet_forward.9} parent=0 // pred_region
    _
  $region13: #{diffusion_unet_forward.9} parent=0 // pred_fallthru
    _
  %p15 = scmp.eq.s32.totalorder 0, 0
  // Predicated region
  $region14: #{diffusion_unet_forward.9} parent=0 // pred_check
    %p16 = pneg %p15
  $region15: #{diffusion_unet_forward.9} parent=0 // pred_check_branch
    %18 = sbr.rel (%p16) target = $region17
  $region16: #{diffusion_unet_forward.9} parent=0 // pred_region
    %v19 = vld [vmem:[%s2] sm:$0x1]
    %v21 = vlaneseq
    %v22 = vshrl.u32 %v21, 7
    %v23 = vsub.s32 0, %v22
    %v24 = vrot.slane %v19, %v23
    %vm26 = vcmask 261120
    %27 = vst.msk [vmem:[#allocation2] sm:$0xff] %vm26, %v24
    %28 = vst.msk [vmem:[#allocation2 + $0x8] sm:$0xff] %vm26, %v24
    %29 = vst.msk [vmem:[#allocation2 + $0x10] sm:$0xff] %vm26, %v24
    %30 = vst.msk [vmem:[#allocation2 + $0x18] sm:$0xff] %vm26, %v24
  $region17: #{diffusion_unet_forward.9} parent=0 // pred_fallthru
    _
  %v31 = vld [vmem:[#allocation2] sm:$0xff]
  %v32 = vld [vmem:[#allocation2 + $0x8] sm:$0xff]
  %v33 = vld [vmem:[#allocation2 + $0x10] sm:$0xff]
  %v34 = vld [vmem:[#allocation2 + $0x18] sm:$0xff]
  %v35 = vld [vmem:[%s0] sm:$0xff]
  %v36 = vld [vmem:[%s0 + $0x8] sm:$0xff]
  %v37 = vld [vmem:[%s0 + $0x10] sm:$0xff]
  %v38 = vld [vmem:[%s0 + $0x18] sm:$0xff]
  %v39 = vld [vmem:[%s1] sm:$0xf]
  %v40 = vld [vmem:[%s1 + $0x4] sm:$0xf]
  %v41 = vld [vmem:[%s1 + $0x8] sm:$0xf]
  %v42 = vld [vmem:[%s1 + $0xc] sm:$0xf]
  %v43 = vld [vmem:[%s1 + $0x10] sm:$0xf]
  %v44 = vld [vmem:[%s1 + $0x14] sm:$0xf]
  %v45 = vld [vmem:[%s1 + $0x18] sm:$0xf]
  %v46 = vld [vmem:[%s1 + $0x1c] sm:$0xf]
  %v47 = vld [vmem:[%s1 + $0x20] sm:$0xf]
  %v48 = vld [vmem:[%s1 + $0x24] sm:$0xf]
  %v49 = vld [vmem:[%s1 + $0x28] sm:$0xf]
  %v50 = vld [vmem:[%s1 + $0x2c] sm:$0xf]
  %v51 = vld [vmem:[%s1 + $0x30] sm:$0xf]
  %v52 = vld [vmem:[%s1 + $0x34] sm:$0xf]
  %v53 = vld [vmem:[%s1 + $0x38] sm:$0xf]
  %v54 = vld [vmem:[%s1 + $0x3c] sm:$0xf]
  %v55 = vld [vmem:[%s1 + $0x40] sm:$0xf]
  %v56 = vld [vmem:[%s1 + $0x44] sm:$0xf]
  %v57 = vld [vmem:[%s1 + $0x48] sm:$0xf]
  %v58 = vld [vmem:[%s1 + $0x4c] sm:$0xf]
  %v59 = vld [vmem:[%s1 + $0x50] sm:$0xf]
  %v60 = vld [vmem:[%s1 + $0x54] sm:$0xf]
  %v61 = vld [vmem:[%s1 + $0x58] sm:$0xf]
  %v62 = vld [vmem:[%s1 + $0x5c] sm:$0xf]
  %v63 = vld [vmem:[%s1 + $0x60] sm:$0xf]
  %v64 = vld [vmem:[%s1 + $0x64] sm:$0xf]
  %v65 = vld [vmem:[%s1 + $0x68] sm:$0xf]
  %v66 = vld [vmem:[%s1 + $0x6c] sm:$0xf]
  %v67 = vld [vmem:[%s1 + $0x70] sm:$0xf]
  %v68 = vld [vmem:[%s1 + $0x74] sm:$0xf]
  %v69 = vld [vmem:[%s1 + $0x78] sm:$0xf]
  %v70 = vld [vmem:[%s1 + $0x7c] sm:$0xf]
  %v75 = vunpack.c.l.b16 %v35
  %v76 = vunpack.c.h.b16 %v35
  %v77 = vunpack.c.l.b16 %v36
  %v78 = vunpack.c.h.b16 %v36
  %v79 = vunpack.c.l.b16 %v37
  %v80 = vunpack.c.h.b16 %v37
  %v81 = vunpack.c.l.b16 %v38
  %v82 = vunpack.c.h.b16 %v38
  %v83 = vpack.c.b16 %v77, %v75
  %v84 = vpack.c.b16 %v78, %v76
  %v85 = vpack.c.b16 %v81, %v79
  %v86 = vpack.c.b16 %v82, %v80
  %v123 = vunpack.c.l.b16 %v39
  %v124 = vunpack.c.l.b16 %v40
  %v125 = vunpack.c.l.b16 %v41
  %v126 = vunpack.c.l.b16 %v42
  %v127 = vunpack.c.l.b16 %v43
  %v128 = vunpack.c.l.b16 %v44
  %v129 = vunpack.c.l.b16 %v45
  %v130 = vunpack.c.l.b16 %v46
  %v131 = vunpack.c.l.b16 %v47
  %v132 = vunpack.c.l.b16 %v48
  %v133 = vunpack.c.l.b16 %v49
  %v134 = vunpack.c.l.b16 %v50
  %v135 = vunpack.c.l.b16 %v51
  %v136 = vunpack.c.l.b16 %v52
  %v137 = vunpack.c.l.b16 %v53
  %v138 = vunpack.c.l.b16 %v54
  %v139 = vunpack.c.l.b16 %v55
  %v140 = vunpack.c.l.b16 %v56
  %v141 = vunpack.c.l.b16 %v57
  %v142 = vunpack.c.l.b16 %v58
  %v143 = vunpack.c.l.b16 %v59
  %v144 = vunpack.c.l.b16 %v60
  %v145 = vunpack.c.l.b16 %v61
  %v146 = vunpack.c.l.b16 %v62
  %v147 = vunpack.c.l.b16 %v63
  %v148 = vunpack.c.l.b16 %v64
  %v149 = vunpack.c.l.b16 %v65
  %v150 = vunpack.c.l.b16 %v66
  %v151 = vunpack.c.l.b16 %v67
  %v152 = vunpack.c.l.b16 %v68
  %v153 = vunpack.c.l.b16 %v69
  %v154 = vunpack.c.l.b16 %v70
  %v155 = vpack.c.b16 %v124, %v123
  %v156 = vpack.c.b16 %v126, %v125
  %v157 = vpack.c.b16 %v128, %v127
  %v158 = vpack.c.b16 %v130, %v129
  %v159 = vpack.c.b16 %v132, %v131
  %v160 = vpack.c.b16 %v134, %v133
  %v161 = vpack.c.b16 %v136, %v135
  %v162 = vpack.c.b16 %v138, %v137
  %v163 = vpack.c.b16 %v140, %v139
  %v164 = vpack.c.b16 %v142, %v141
  %v165 = vpack.c.b16 %v144, %v143
  %v166 = vpack.c.b16 %v146, %v145
  %v167 = vpack.c.b16 %v148, %v147
  %v168 = vpack.c.b16 %v150, %v149
  %v169 = vpack.c.b16 %v152, %v151
  %v170 = vpack.c.b16 %v154, %v153
  %187 = vmatprep.subr.bf16.mxu0 0
  %188 = vmatpush1.bf16.msra.mxu0 %v155
  %189 = vmatprep.subr.bf16.mxu0 0
  %190 = vmatpush1.bf16.msra.mxu0 %v156
  %191 = vmatprep.subr.bf16.mxu0 0
  %192 = vmatpush1.bf16.msra.mxu0 %v157
  %193 = vmatprep.subr.bf16.mxu0 0
  %194 = vmatpush1.bf16.msra.mxu0 %v158
  %195 = vmatprep.subr.bf16.mxu0 0
  %196 = vmatpush1.bf16.msra.mxu0 %v159
  %197 = vmatprep.subr.bf16.mxu0 0
  %198 = vmatpush1.bf16.msra.mxu0 %v160
  %199 = vmatprep.subr.bf16.mxu0 0
  %200 = vmatpush1.bf16.msra.mxu0 %v161
  %201 = vmatprep.subr.bf16.mxu0 0
  %202 = vmatpush1.bf16.msra.mxu0 %v162
  %203 = vmatprep.subr.bf16.mxu0 0
  %204 = vmatpush1.bf16.msra.mxu0 %v163
  %205 = vmatprep.subr.bf16.mxu0 0
  %206 = vmatpush1.bf16.msra.mxu0 %v164
  %207 = vmatprep.subr.bf16.mxu0 0
  %208 = vmatpush1.bf16.msra.mxu0 %v165
  %209 = vmatprep.subr.bf16.mxu0 0
  %210 = vmatpush1.bf16.msra.mxu0 %v166
  %211 = vmatprep.subr.bf16.mxu0 0
  %212 = vmatpush1.bf16.msra.mxu0 %v167
  %213 = vmatprep.subr.bf16.mxu0 0
  %214 = vmatpush1.bf16.msra.mxu0 %v168
  %215 = vmatprep.subr.bf16.mxu0 0
  %216 = vmatpush1.bf16.msra.mxu0 %v169
  %217 = vmatprep.subr.bf16.mxu0 0
  %218 = vmatpush1.bf16.msra.mxu0 %v170
  %219 = vmatprep.mubr.bf16.mxu0 %v84
  %220 = vmatmul.mubr.bf16.gmra.mrb[0].mxu0 %v83
  %v221 = vpop.f32.mrb[0].mxu0
  %v222 = vadd.f32 0.0, %v221
  %v223 = vpop.f32.mrb[0].mxu0
  %v224 = vpop.f32.mrb[0].mxu0
  %v225 = vadd.f32 0.0, %v224
  %v226 = vpop.f32.mrb[0].mxu0
  %227 = vmatprep.mubr.bf16.mxu0 %v86
  %228 = vmatmul.mubr.bf16.gmra.mrb[0].mxu0 %v85
  %v229 = vpop.f32.mrb[0].mxu0
  %v230 = vadd.f32 0.0, %v229
  %v231 = vpop.f32.mrb[0].mxu0
  %v232 = vpop.f32.mrb[0].mxu0
  %v233 = vadd.f32 0.0, %v232
  %v234 = vpop.f32.mrb[0].mxu0
  %235 = vdwg.mxu0
  %v236 = vadd.f32 %v31, %v222
  %v237 = vadd.f32 %v32, %v225
  %v238 = vadd.f32 %v33, %v230
  %v239 = vadd.f32 %v34, %v233
  %vm240 = vcmask 261120
  %241 = vst.msk [vmem:[#allocation2] sm:$0xff] %vm240, %v236
  %242 = vst.msk [vmem:[#allocation2 + $0x8] sm:$0xff] %vm240, %v237
  %243 = vst.msk [vmem:[#allocation2 + $0x10] sm:$0xff] %vm240, %v238
  %244 = vst.msk [vmem:[#allocation2 + $0x18] sm:$0xff] %vm240, %v239
  // Predicated region
  $region18: #{diffusion_unet_forward.9} parent=0 // pred_check
    %p245 = pneg %p15
  $region19: #{diffusion_unet_forward.9} parent=0 // pred_check_branch
    %247 = sbr.rel (%p245) target = $region21
  $region20: #{diffusion_unet_forward.9} parent=0 // pred_region
    %v248 = vld [vmem:[#allocation2] sm:$0xff]
    %v249 = vld [vmem:[#allocation2 + $0x8] sm:$0xff]
    %v250 = vld [vmem:[#allocation2 + $0x10] sm:$0xff]
    %v251 = vld [vmem:[#allocation2 + $0x18] sm:$0xff]
    %v252 = vmax.f32 %v248, 0.0
    %v253 = vmax.f32 %v249, 0.0
    %v254 = vmax.f32 %v250, 0.0
    %v255 = vmax.f32 %v251, 0.0
    %v256 = vpack.c.bf16 %v253, %v252
    %v257 = vpack.c.bf16 %v255, %v254
    %v260 = vunpack.c.l.b16 %v256
    %v261 = vunpack.c.h.b16 %v256
    %v262 = vunpack.c.l.b16 %v257
    %v263 = vunpack.c.h.b16 %v257
    %v264 = vpack.c.b16 %v260, %v260
    %v265 = vpack.c.b16 %v261, %v261
    %v266 = vpack.c.b16 %v262, %v262
    %v267 = vpack.c.b16 %v263, %v263
    %vm272 = vcmask 257024
    %273 = vst.msk [vmem:[%s3] sm:$0xf] %vm272, %v264
    %274 = vst.msk [vmem:[%s3 + $0x4] sm:$0xf] %vm272, %v265
    %275 = vst.msk [vmem:[%s3 + $0x8] sm:$0xf] %vm272, %v266
    %276 = vst.msk [vmem:[%s3 + $0xc] sm:$0xf] %vm272, %v267
  $region21: #{diffusion_unet_forward.9} parent=0 // pred_fallthru
    _
  // Predicated region
  $region22: #{diffusion_unet_forward.9} parent=0 // pred_check
    _
  $region23: #{diffusion_unet_forward.9} parent=0 // pred_check_branch
    %278 = sbr.rel (0) target = $region25
  $region24: #{diffusion_unet_forward.9} parent=0 // pred_region
    _
  $region25: #{diffusion_unet_forward.9} parent=0 // pred_fallthru
    _
  // Predicated region
  $region26: #{diffusion_unet_forward.9} parent=0 // pred_check
    _
  $region27: #{diffusion_unet_forward.9} parent=0 // pred_check_branch
    %280 = sbr.rel (0) target = $region29
  $region28: #{diffusion_unet_forward.9} parent=0 // pred_region
    _
  $region29: #{diffusion_unet_forward.9} parent=0 // pred_fallthru
    _

// kernel: diffusion_unet_forward.10
$region0: #{diffusion_unet_forward.10}
  #allocation0 [shape = 'u32[]', space=smem, size = 0x4, offset = 0x4, fixed_abs, tag = 'smem constant byte address 0x4 - core index']
  #allocation1 [shape = 'u32[144,128]{1,0:T(1,128)}', space=vmem, size = 0x12000, scoped, tag = 'internal scratch']
  #allocation2 [shape = 'f32[32,32]{1,0:T(8,128)}', space=vmem, size = 0x4000, scoped, tag = 'scratch operand']
  %s0 = inlined_call_operand.vmem [shape: bf16[32,288], index: 0, kind: input, shape index: {}]
  %s1 = inlined_call_operand.vmem [shape: bf16[288,32], index: 1, kind: input, shape index: {}]
  %s2 = inlined_call_operand.vmem [shape: f32[1,32], index: 2, kind: input, shape index: {}]
  %s3 = inlined_call_operand.vmem [shape: bf16[32,32], index: 3, kind: output, shape index: {}]
  %s4 = sld [smem:[#allocation0]]
  $region30: #{diffusion_unet_forward.10} parent=0
    _
  %s6 = ssub.s32 1, %s4
  %s7 = scalar_select 0, %s6, %s4
  // Predicated region
  $region2: #{diffusion_unet_forward.10} parent=0 // pred_check
    _
  $region3: #{diffusion_unet_forward.10} parent=0 // pred_check_branch
    %9 = sbr.rel (0) target = $region5
  $region4: #{diffusion_unet_forward.10} parent=0 // pred_region
    _
  $region5: #{diffusion_unet_forward.10} parent=0 // pred_fallthru
    _
  // Predicated region
  $region6: #{diffusion_unet_forward.10} parent=0 // pred_check
    _
  $region7: #{diffusion_unet_forward.10} parent=0 // pred_check_branch
    %11 = sbr.rel (0) target = $region9
  $region8: #{diffusion_unet_forward.10} parent=0 // pred_region
    _
  $region9: #{diffusion_unet_forward.10} parent=0 // pred_fallthru
    _
  // Predicated region
  $region10: #{diffusion_unet_forward.10} parent=0 // pred_check
    _
  $region11: #{diffusion_unet_forward.10} parent=0 // pred_check_branch
    %13 = sbr.rel (0) target = $region13
  $region12: #{diffusion_unet_forward.10} parent=0 // pred_region
    _
  $region13: #{diffusion_unet_forward.10} parent=0 // pred_fallthru
    _
  %p15 = scmp.eq.s32.totalorder 0, 0
  // Predicated region
  $region14: #{diffusion_unet_forward.10} parent=0 // pred_check
    %p16 = pneg %p15
  $region15: #{diffusion_unet_forward.10} parent=0 // pred_check_branch
    %18 = sbr.rel (%p16) target = $region17
  $region16: #{diffusion_unet_forward.10} parent=0 // pred_region
    %v19 = vld [vmem:[%s2] sm:$0x1]
    %v21 = vlaneseq
    %v22 = vshrl.u32 %v21, 7
    %v23 = vsub.s32 0, %v22
    %v24 = vrot.slane %v19, %v23
    %vm26 = vcmask 261120
    %27 = vst.msk [vmem:[#allocation2] sm:$0xff] %vm26, %v24
    %28 = vst.msk [vmem:[#allocation2 + $0x8] sm:$0xff] %vm26, %v24
    %29 = vst.msk [vmem:[#allocation2 + $0x10] sm:$0xff] %vm26, %v24
    %30 = vst.msk [vmem:[#allocation2 + $0x18] sm:$0xff] %vm26, %v24
  $region17: #{diffusion_unet_forward.10} parent=0 // pred_fallthru
    _
  %v31 = vld [vmem:[#allocation2] sm:$0xff]
  %v32 = vld [vmem:[#allocation2 + $0x8] sm:$0xff]
  %v33 = vld [vmem:[#allocation2 + $0x10] sm:$0xff]
  %v34 = vld [vmem:[#allocation2 + $0x18] sm:$0xff]
  %v35 = vld [vmem:[%s0] sm:$0xff]
  %v36 = vld [vmem:[%s0 + $0x8] sm:$0xf]
  %v37 = vld [vmem:[%s0 + $0xc] sm:$0xff]
  %v38 = vld [vmem:[%s0 + $0x14] sm:$0xf]
  %v39 = vld [vmem:[%s0 + $0x18] sm:$0xff]
  %v40 = vld [vmem:[%s0 + $0x20] sm:$0xf]
  %v41 = vld [vmem:[%s0 + $0x24] sm:$0xff]
  %v42 = vld [vmem:[%s0 + $0x2c] sm:$0xf]
  %v43 = vld [vmem:[%s1] sm:$0xf]
  %v44 = vld [vmem:[%s1 + $0x4] sm:$0xf]
  %v45 = vld [vmem:[%s1 + $0x8] sm:$0xf]
  %v46 = vld [vmem:[%s1 + $0xc] sm:$0xf]
  %v47 = vld [vmem:[%s1 + $0x10] sm:$0xf]
  %v48 = vld [vmem:[%s1 + $0x14] sm:$0xf]
  %v49 = vld [vmem:[%s1 + $0x18] sm:$0xf]
  %v50 = vld [vmem:[%s1 + $0x1c] sm:$0xf]
  %v51 = vld [vmem:[%s1 + $0x20] sm:$0xf]
  %v52 = vld [vmem:[%s1 + $0x24] sm:$0xf]
  %v53 = vld [vmem:[%s1 + $0x28] sm:$0xf]
  %v54 = vld [vmem:[%s1 + $0x2c] sm:$0xf]
  %v55 = vld [vmem:[%s1 + $0x30] sm:$0xf]
  %v56 = vld [vmem:[%s1 + $0x34] sm:$0xf]
  %v57 = vld [vmem:[%s1 + $0x38] sm:$0xf]
  %v58 = vld [vmem:[%s1 + $0x3c] sm:$0xf]
  %v59 = vld [vmem:[%s1 + $0x40] sm:$0xf]
  %v60 = vld [vmem:[%s1 + $0x44] sm:$0xf]
  %v61 = vld [vmem:[%s1 + $0x48] sm:$0xf]
  %v62 = vld [vmem:[%s1 + $0x4c] sm:$0xf]
  %v63 = vld [vmem:[%s1 + $0x50] sm:$0xf]
  %v64 = vld [vmem:[%s1 + $0x54] sm:$0xf]
  %v65 = vld [vmem:[%s1 + $0x58] sm:$0xf]
  %v66 = vld [vmem:[%s1 + $0x5c] sm:$0xf]
  %v67 = vld [vmem:[%s1 + $0x60] sm:$0xf]
  %v68 = vld [vmem:[%s1 + $0x64] sm:$0xf]
  %v69 = vld [vmem:[%s1 + $0x68] sm:$0xf]
  %v70 = vld [vmem:[%s1 + $0x6c] sm:$0xf]
  %v71 = vld [vmem:[%s1 + $0x70] sm:$0xf]
  %v72 = vld [vmem:[%s1 + $0x74] sm:$0xf]
  %v73 = vld [vmem:[%s1 + $0x78] sm:$0xf]
  %v74 = vld [vmem:[%s1 + $0x7c] sm:$0xf]
  %v75 = vld [vmem:[%s1 + $0x80] sm:$0xf]
  %v76 = vld [vmem:[%s1 + $0x84] sm:$0xf]
  %v77 = vld [vmem:[%s1 + $0x88] sm:$0xf]
  %v78 = vld [vmem:[%s1 + $0x8c] sm:$0xf]
  %v87 = vunpack.c.l.b16 %v35
  %v88 = vunpack.c.h.b16 %v35
  %v89 = vunpack.c.l.b16 %v36
  %v90 = vunpack.c.l.b16 %v37
  %v91 = vunpack.c.h.b16 %v37
  %v92 = vunpack.c.l.b16 %v38
  %v93 = vunpack.c.l.b16 %v39
  %v94 = vunpack.c.h.b16 %v39
  %v95 = vunpack.c.l.b16 %v40
  %v96 = vunpack.c.l.b16 %v41
  %v97 = vunpack.c.h.b16 %v41
  %v98 = vunpack.c.l.b16 %v42
  %v99 = vpack.c.b16 %v90, %v87
  %v100 = vpack.c.b16 %v91, %v88
  %v101 = vpack.c.b16 %v92, %v89
  %v102 = vpack.c.b16 %v96, %v93
  %v103 = vpack.c.b16 %v97, %v94
  %v104 = vpack.c.b16 %v98, %v95
  %v145 = vunpack.c.l.b16 %v43
  %v146 = vunpack.c.l.b16 %v44
  %v147 = vunpack.c.l.b16 %v45
  %v148 = vunpack.c.l.b16 %v46
  %v149 = vunpack.c.l.b16 %v47
  %v150 = vunpack.c.l.b16 %v48
  %v151 = vunpack.c.l.b16 %v49
  %v152 = vunpack.c.l.b16 %v50
  %v153 = vunpack.c.l.b16 %v51
  %v154 = vunpack.c.l.b16 %v52
  %v155 = vunpack.c.l.b16 %v53
  %v156 = vunpack.c.l.b16 %v54
  %v157 = vunpack.c.l.b16 %v55
  %v158 = vunpack.c.l.b16 %v56
  %v159 = vunpack.c.l.b16 %v57
  %v160 = vunpack.c.l.b16 %v58
  %v161 = vunpack.c.l.b16 %v59
  %v162 = vunpack.c.l.b16 %v60
  %v163 = vunpack.c.l.b16 %v61
  %v164 = vunpack.c.l.b16 %v62
  %v165 = vunpack.c.l.b16 %v63
  %v166 = vunpack.c.l.b16 %v64
  %v167 = vunpack.c.l.b16 %v65
  %v168 = vunpack.c.l.b16 %v66
  %v169 = vunpack.c.l.b16 %v67
  %v170 = vunpack.c.l.b16 %v68
  %v171 = vunpack.c.l.b16 %v69
  %v172 = vunpack.c.l.b16 %v70
  %v173 = vunpack.c.l.b16 %v71
  %v174 = vunpack.c.l.b16 %v72
  %v175 = vunpack.c.l.b16 %v73
  %v176 = vunpack.c.l.b16 %v74
  %v177 = vunpack.c.l.b16 %v75
  %v178 = vunpack.c.l.b16 %v76
  %v179 = vunpack.c.l.b16 %v77
  %v180 = vunpack.c.l.b16 %v78
  %v181 = vpack.c.b16 %v146, %v145
  %v182 = vpack.c.b16 %v148, %v147
  %v183 = vpack.c.b16 %v150, %v149
  %v184 = vpack.c.b16 %v152, %v151
  %v185 = vpack.c.b16 %v154, %v153
  %v186 = vpack.c.b16 %v156, %v155
  %v187 = vpack.c.b16 %v158, %v157
  %v188 = vpack.c.b16 %v160, %v159
  %v189 = vpack.c.b16 %v162, %v161
  %v190 = vpack.c.b16 %v164, %v163
  %v191 = vpack.c.b16 %v166, %v165
  %v192 = vpack.c.b16 %v168, %v167
  %v193 = vpack.c.b16 %v170, %v169
  %v194 = vpack.c.b16 %v172, %v171
  %v195 = vpack.c.b16 %v174, %v173
  %v196 = vpack.c.b16 %v176, %v175
  %v197 = vpack.c.b16 %v178, %v177
  %v198 = vpack.c.b16 %v180, %v179
  %vm217 = vcmask 261120
  %v219 = vsel %vm217, %v101, 0
  %v222 = vsel %vm217, %v104, 0
  %224 = vmatprep.subr.bf16.mxu0 0
  %225 = vmatpush1.bf16.msra.mxu0 %v181
  %226 = vmatprep.subr.bf16.mxu0 0
  %227 = vmatpush1.bf16.msra.mxu0 %v182
  %228 = vmatprep.subr.bf16.mxu0 0
  %229 = vmatpush1.bf16.msra.mxu0 %v183
  %230 = vmatprep.subr.bf16.mxu0 0
  %231 = vmatpush1.bf16.msra.mxu0 %v184
  %232 = vmatprep.subr.bf16.mxu0 0
  %233 = vmatpush1.bf16.msra.mxu0 %v185
  %234 = vmatprep.subr.bf16.mxu0 0
  %235 = vmatpush1.bf16.msra.mxu0 %v186
  %236 = vmatprep.subr.bf16.mxu0 0
  %237 = vmatpush1.bf16.msra.mxu0 %v187
  %238 = vmatprep.subr.bf16.mxu0 0
  %239 = vmatpush1.bf16.msra.mxu0 %v188
  %240 = vmatprep.subr.bf16.mxu0 0
  %241 = vmatpush1.bf16.msra.mxu0 %v189
  %242 = vmatprep.subr.bf16.mxu0 0
  %243 = vmatpush1.bf16.msra.mxu0 %v190
  %244 = vmatprep.subr.bf16.mxu0 0
  %245 = vmatpush1.bf16.msra.mxu0 %v191
  %246 = vmatprep.subr.bf16.mxu0 0
  %247 = vmatpush1.bf16.msra.mxu0 %v192
  %248 = vmatprep.subr.bf16.mxu0 0
  %249 = vmatpush1.bf16.msra.mxu0 %v193
  %250 = vmatprep.subr.bf16.mxu0 0
  %251 = vmatpush1.bf16.msra.mxu0 %v194
  %252 = vmatprep.subr.bf16.mxu0 0
  %253 = vmatpush1.bf16.msra.mxu0 %v195
  %254 = vmatprep.subr.bf16.mxu0 0
  %255 = vmatpush1.bf16.msra.mxu0 %v196
  %256 = vmatprep.mubr.bf16.mxu0 %v100
  %257 = vmatmul.mubr.bf16.gmra.mrb[0].mxu0 %v99
  %v258 = vpop.f32.mrb[0].mxu0
  %v259 = vadd.f32 0.0, %v258
  %v260 = vpop.f32.mrb[0].mxu0
  %v261 = vpop.f32.mrb[0].mxu0
  %v262 = vadd.f32 0.0, %v261
  %v263 = vpop.f32.mrb[0].mxu0
  %264 = vmatprep.mubr.bf16.mxu0 %v103
  %265 = vmatmul.mubr.bf16.gmra.mrb[0].mxu0 %v102
  %v266 = vpop.f32.mrb[0].mxu0
  %v267 = vadd.f32 0.0, %v266
  %v268 = vpop.f32.mrb[0].mxu0
  %v269 = vpop.f32.mrb[0].mxu0
  %v270 = vadd.f32 0.0, %v269
  %v271 = vpop.f32.mrb[0].mxu0
  %272 = vdwg.mxu0
  %273 = vmatprep.subr.bf16.mxu0 0
  %274 = vmatpush1.bf16.msra.mxu0 %v197
  %275 = vmatprep.subr.bf16.mxu0 0
  %276 = vmatpush1.bf16.msra.mxu0 %v198
  %277 = vmatprep.subr.bf16.mxu0 0
  %278 = vmatpush1.bf16.msra.mxu0 0
  %279 = vmatprep.subr.bf16.mxu0 0
  %280 = vmatpush1.bf16.msra.mxu0 0
  %281 = vmatprep.subr.bf16.mxu0 0
  %282 = vmatpush1.bf16.msra.mxu0 0
  %283 = vmatprep.subr.bf16.mxu0 0
  %284 = vmatpush1.bf16.msra.mxu0 0
  %285 = vmatprep.subr.bf16.mxu0 0
  %286 = vmatpush1.bf16.msra.mxu0 0
  %287 = vmatprep.subr.bf16.mxu0 0
  %288 = vmatpush1.bf16.msra.mxu0 0
  %289 = vmatprep.subr.bf16.mxu0 0
  %290 = vmatpush1.bf16.msra.mxu0 0
  %291 = vmatprep.subr.bf16.mxu0 0
  %292 = vmatpush1.bf16.msra.mxu0 0
  %293 = vmatprep.subr.bf16.mxu0 0
  %294 = vmatpush1.bf16.msra.mxu0 0
  %295 = vmatprep.subr.bf16.mxu0 0
  %296 = vmatpush1.bf16.msra.mxu0 0
  %297 = vmatprep.subr.bf16.mxu0 0
  %298 = vmatpush1.bf16.msra.mxu0 0
  %299 = vmatprep.subr.bf16.mxu0 0
  %300 = vmatpush1.bf16.msra.mxu0 0
  %301 = vmatprep.subr.bf16.mxu0 0
  %302 = vmatpush1.bf16.msra.mxu0 0
  %303 = vmatprep.subr.bf16.mxu0 0
  %304 = vmatpush1.bf16.msra.mxu0 0
  %305 = vmatprep.mubr.bf16.mxu0 0
  %306 = vmatmul.mubr.bf16.gmra.mrb[0].mxu0 %v219
  %v307 = vpop.f32.mrb[0].mxu0
  %v308 = vadd.f32 %v259, %v307
  %v309 = vpop.f32.mrb[0].mxu0
  %v310 = vpop.f32.mrb[0].mxu0
  %v311 = vadd.f32 %v262, %v310
  %v312 = vpop.f32.mrb[0].mxu0
  %313 = vmatprep.mubr.bf16.mxu0 0
  %314 = vmatmul.mubr.bf16.gmra.mrb[0].mxu0 %v222
  %v315 = vpop.f32.mrb[0].mxu0
  %v316 = vadd.f32 %v267, %v315
  %v317 = vpop.f32.mrb[0].mxu0
  %v318 = vpop.f32.mrb[0].mxu0
  %v319 = vadd.f32 %v270, %v318
  %v320 = vpop.f32.mrb[0].mxu0
  %321 = vdwg.mxu0
  %v322 = vadd.f32 %v31, %v308
  %v323 = vadd.f32 %v32, %v311
  %v324 = vadd.f32 %v33, %v316
  %v325 = vadd.f32 %v34, %v319
  %326 = vst.msk [vmem:[#allocation2] sm:$0xff] %vm217, %v322
  %327 = vst.msk [vmem:[#allocation2 + $0x8] sm:$0xff] %vm217, %v323
  %328 = vst.msk [vmem:[#allocation2 + $0x10] sm:$0xff] %vm217, %v324
  %329 = vst.msk [vmem:[#allocation2 + $0x18] sm:$0xff] %vm217, %v325
  // Predicated region
  $region18: #{diffusion_unet_forward.10} parent=0 // pred_check
    %p330 = pneg %p15
  $region19: #{diffusion_unet_forward.10} parent=0 // pred_check_branch
    %332 = sbr.rel (%p330) target = $region21
  $region20: #{diffusion_unet_forward.10} parent=0 // pred_region
    %v333 = vld [vmem:[#allocation2] sm:$0xff]
    %v334 = vld [vmem:[#allocation2 + $0x8] sm:$0xff]
    %v335 = vld [vmem:[#allocation2 + $0x10] sm:$0xff]
    %v336 = vld [vmem:[#allocation2 + $0x18] sm:$0xff]
    %v337 = vmax.f32 %v333, 0.0
    %v338 = vmax.f32 %v334, 0.0
    %v339 = vmax.f32 %v335, 0.0
    %v340 = vmax.f32 %v336, 0.0
    %v341 = vpack.c.bf16 %v338, %v337
    %v342 = vpack.c.bf16 %v340, %v339
    %v345 = vunpack.c.l.b16 %v341
    %v346 = vunpack.c.h.b16 %v341
    %v347 = vunpack.c.l.b16 %v342
    %v348 = vunpack.c.h.b16 %v342
    %v349 = vpack.c.b16 %v345, %v345
    %v350 = vpack.c.b16 %v346, %v346
    %v351 = vpack.c.b16 %v347, %v347
    %v352 = vpack.c.b16 %v348, %v348
    %vm357 = vcmask 257024
    %358 = vst.msk [vmem:[%s3] sm:$0xf] %vm357, %v349
    %359 = vst.msk [vmem:[%s3 + $0x4] sm:$0xf] %vm357, %v350
    %360 = vst.msk [vmem:[%s3 + $0x8] sm:$0xf] %vm357, %v351
    %361 = vst.msk [vmem:[%s3 + $0xc] sm:$0xf] %vm357, %v352
  $region21: #{diffusion_unet_forward.10} parent=0 // pred_fallthru
    _
  // Predicated region
  $region22: #{diffusion_unet_forward.10} parent=0 // pred_check
    _
  $region23: #{diffusion_unet_forward.10} parent=0 // pred_check_branch
    %363 = sbr.rel (0) target = $region25
  $region24: #{diffusion_unet_forward.10} parent=0 // pred_region
    _
  $region25: #{diffusion_unet_forward.10} parent=0 // pred_fallthru
    _
  // Predicated region
  $region26: #{diffusion_unet_forward.10} parent=0 // pred_check
    _
  $region27: #{diffusion_unet_forward.10} parent=0 // pred_check_branch
    %365 = sbr.rel (0) target = $region29
  $region28: #{diffusion_unet_forward.10} parent=0 // pred_region
    _
  $region29: #{diffusion_unet_forward.10} parent=0 // pred_fallthru
    _

// kernel: diffusion_unet_forward.11
$region0: #{diffusion_unet_forward.11}
  #allocation0 [shape = 'u32[]', space=smem, size = 0x4, offset = 0x4, fixed_abs, tag = 'smem constant byte address 0x4 - core index']
  #allocation1 [shape = 'u32[144,128]{1,0:T(1,128)}', space=vmem, size = 0x12000, scoped, tag = 'internal scratch']
  #allocation2 [shape = 'f32[32,64]{1,0:T(8,128)}', space=vmem, size = 0x4000, scoped, tag = 'scratch operand']
  %s0 = inlined_call_operand.vmem [shape: bf16[32,288], index: 0, kind: input, shape index: {}]
  %s1 = inlined_call_operand.vmem [shape: bf16[288,64], index: 1, kind: input, shape index: {}]
  %s2 = inlined_call_operand.vmem [shape: f32[1,64], index: 2, kind: input, shape index: {}]
  %s3 = inlined_call_operand.vmem [shape: bf16[32,64], index: 3, kind: output, shape index: {}]
  %s4 = sld [smem:[#allocation0]]
  $region30: #{diffusion_unet_forward.11} parent=0
    _
  %s6 = ssub.s32 1, %s4
  %s7 = scalar_select 0, %s6, %s4
  // Predicated region
  $region2: #{diffusion_unet_forward.11} parent=0 // pred_check
    _
  $region3: #{diffusion_unet_forward.11} parent=0 // pred_check_branch
    %9 = sbr.rel (0) target = $region5
  $region4: #{diffusion_unet_forward.11} parent=0 // pred_region
    _
  $region5: #{diffusion_unet_forward.11} parent=0 // pred_fallthru
    _
  // Predicated region
  $region6: #{diffusion_unet_forward.11} parent=0 // pred_check
    _
  $region7: #{diffusion_unet_forward.11} parent=0 // pred_check_branch
    %11 = sbr.rel (0) target = $region9
  $region8: #{diffusion_unet_forward.11} parent=0 // pred_region
    _
  $region9: #{diffusion_unet_forward.11} parent=0 // pred_fallthru
    _
  // Predicated region
  $region10: #{diffusion_unet_forward.11} parent=0 // pred_check
    _
  $region11: #{diffusion_unet_forward.11} parent=0 // pred_check_branch
    %13 = sbr.rel (0) target = $region13
  $region12: #{diffusion_unet_forward.11} parent=0 // pred_region
    _
  $region13: #{diffusion_unet_forward.11} parent=0 // pred_fallthru
    _
  %p15 = scmp.eq.s32.totalorder 0, 0
  // Predicated region
  $region14: #{diffusion_unet_forward.11} parent=0 // pred_check
    %p16 = pneg %p15
  $region15: #{diffusion_unet_forward.11} parent=0 // pred_check_branch
    %18 = sbr.rel (%p16) target = $region17
  $region16: #{diffusion_unet_forward.11} parent=0 // pred_region
    %v19 = vld [vmem:[%s2] sm:$0x1]
    %v21 = vlaneseq
    %v22 = vshrl.u32 %v21, 7
    %v23 = vsub.s32 0, %v22
    %v24 = vrot.slane %v19, %v23
    %vm26 = vcmask 523264
    %27 = vst.msk [vmem:[#allocation2] sm:$0xff] %vm26, %v24
    %28 = vst.msk [vmem:[#allocation2 + $0x8] sm:$0xff] %vm26, %v24
    %29 = vst.msk [vmem:[#allocation2 + $0x10] sm:$0xff] %vm26, %v24
    %30 = vst.msk [vmem:[#allocation2 + $0x18] sm:$0xff] %vm26, %v24
  $region17: #{diffusion_unet_forward.11} parent=0 // pred_fallthru
    _
  %v31 = vld [vmem:[#allocation2] sm:$0xff]
  %v32 = vld [vmem:[#allocation2 + $0x8] sm:$0xff]
  %v33 = vld [vmem:[#allocation2 + $0x10] sm:$0xff]
  %v34 = vld [vmem:[#allocation2 + $0x18] sm:$0xff]
  %v35 = vld [vmem:[%s0] sm:$0xff]
  %v36 = vld [vmem:[%s0 + $0x8] sm:$0xf]
  %v37 = vld [vmem:[%s0 + $0xc] sm:$0xff]
  %v38 = vld [vmem:[%s0 + $0x14] sm:$0xf]
  %v39 = vld [vmem:[%s0 + $0x18] sm:$0xff]
  %v40 = vld [vmem:[%s0 + $0x20] sm:$0xf]
  %v41 = vld [vmem:[%s0 + $0x24] sm:$0xff]
  %v42 = vld [vmem:[%s0 + $0x2c] sm:$0xf]
  %v43 = vld [vmem:[%s1] sm:$0xf]
  %v44 = vld [vmem:[%s1 + $0x4] sm:$0xf]
  %v45 = vld [vmem:[%s1 + $0x8] sm:$0xf]
  %v46 = vld [vmem:[%s1 + $0xc] sm:$0xf]
  %v47 = vld [vmem:[%s1 + $0x10] sm:$0xf]
  %v48 = vld [vmem:[%s1 + $0x14] sm:$0xf]
  %v49 = vld [vmem:[%s1 + $0x18] sm:$0xf]
  %v50 = vld [vmem:[%s1 + $0x1c] sm:$0xf]
  %v51 = vld [vmem:[%s1 + $0x20] sm:$0xf]
  %v52 = vld [vmem:[%s1 + $0x24] sm:$0xf]
  %v53 = vld [vmem:[%s1 + $0x28] sm:$0xf]
  %v54 = vld [vmem:[%s1 + $0x2c] sm:$0xf]
  %v55 = vld [vmem:[%s1 + $0x30] sm:$0xf]
  %v56 = vld [vmem:[%s1 + $0x34] sm:$0xf]
  %v57 = vld [vmem:[%s1 + $0x38] sm:$0xf]
  %v58 = vld [vmem:[%s1 + $0x3c] sm:$0xf]
  %v59 = vld [vmem:[%s1 + $0x40] sm:$0xf]
  %v60 = vld [vmem:[%s1 + $0x44] sm:$0xf]
  %v61 = vld [vmem:[%s1 + $0x48] sm:$0xf]
  %v62 = vld [vmem:[%s1 + $0x4c] sm:$0xf]
  %v63 = vld [vmem:[%s1 + $0x50] sm:$0xf]
  %v64 = vld [vmem:[%s1 + $0x54] sm:$0xf]
  %v65 = vld [vmem:[%s1 + $0x58] sm:$0xf]
  %v66 = vld [vmem:[%s1 + $0x5c] sm:$0xf]
  %v67 = vld [vmem:[%s1 + $0x60] sm:$0xf]
  %v68 = vld [vmem:[%s1 + $0x64] sm:$0xf]
  %v69 = vld [vmem:[%s1 + $0x68] sm:$0xf]
  %v70 = vld [vmem:[%s1 + $0x6c] sm:$0xf]
  %v71 = vld [vmem:[%s1 + $0x70] sm:$0xf]
  %v72 = vld [vmem:[%s1 + $0x74] sm:$0xf]
  %v73 = vld [vmem:[%s1 + $0x78] sm:$0xf]
  %v74 = vld [vmem:[%s1 + $0x7c] sm:$0xf]
  %v75 = vld [vmem:[%s1 + $0x80] sm:$0xf]
  %v76 = vld [vmem:[%s1 + $0x84] sm:$0xf]
  %v77 = vld [vmem:[%s1 + $0x88] sm:$0xf]
  %v78 = vld [vmem:[%s1 + $0x8c] sm:$0xf]
  %v87 = vunpack.c.l.b16 %v35
  %v88 = vunpack.c.h.b16 %v35
  %v89 = vunpack.c.l.b16 %v36
  %v90 = vunpack.c.l.b16 %v37
  %v91 = vunpack.c.h.b16 %v37
  %v92 = vunpack.c.l.b16 %v38
  %v93 = vunpack.c.l.b16 %v39
  %v94 = vunpack.c.h.b16 %v39
  %v95 = vunpack.c.l.b16 %v40
  %v96 = vunpack.c.l.b16 %v41
  %v97 = vunpack.c.h.b16 %v41
  %v98 = vunpack.c.l.b16 %v42
  %v99 = vpack.c.b16 %v90, %v87
  %v100 = vpack.c.b16 %v91, %v88
  %v101 = vpack.c.b16 %v92, %v89
  %v102 = vpack.c.b16 %v96, %v93
  %v103 = vpack.c.b16 %v97, %v94
  %v104 = vpack.c.b16 %v98, %v95
  %v145 = vunpack.c.l.b16 %v43
  %v146 = vunpack.c.l.b16 %v44
  %v147 = vunpack.c.l.b16 %v45
  %v148 = vunpack.c.l.b16 %v46
  %v149 = vunpack.c.l.b16 %v47
  %v150 = vunpack.c.l.b16 %v48
  %v151 = vunpack.c.l.b16 %v49
  %v152 = vunpack.c.l.b16 %v50
  %v153 = vunpack.c.l.b16 %v51
  %v154 = vunpack.c.l.b16 %v52
  %v155 = vunpack.c.l.b16 %v53
  %v156 = vunpack.c.l.b16 %v54
  %v157 = vunpack.c.l.b16 %v55
  %v158 = vunpack.c.l.b16 %v56
  %v159 = vunpack.c.l.b16 %v57
  %v160 = vunpack.c.l.b16 %v58
  %v161 = vunpack.c.l.b16 %v59
  %v162 = vunpack.c.l.b16 %v60
  %v163 = vunpack.c.l.b16 %v61
  %v164 = vunpack.c.l.b16 %v62
  %v165 = vunpack.c.l.b16 %v63
  %v166 = vunpack.c.l.b16 %v64
  %v167 = vunpack.c.l.b16 %v65
  %v168 = vunpack.c.l.b16 %v66
  %v169 = vunpack.c.l.b16 %v67
  %v170 = vunpack.c.l.b16 %v68
  %v171 = vunpack.c.l.b16 %v69
  %v172 = vunpack.c.l.b16 %v70
  %v173 = vunpack.c.l.b16 %v71
  %v174 = vunpack.c.l.b16 %v72
  %v175 = vunpack.c.l.b16 %v73
  %v176 = vunpack.c.l.b16 %v74
  %v177 = vunpack.c.l.b16 %v75
  %v178 = vunpack.c.l.b16 %v76
  %v179 = vunpack.c.l.b16 %v77
  %v180 = vunpack.c.l.b16 %v78
  %v181 = vpack.c.b16 %v146, %v145
  %v182 = vpack.c.b16 %v148, %v147
  %v183 = vpack.c.b16 %v150, %v149
  %v184 = vpack.c.b16 %v152, %v151
  %v185 = vpack.c.b16 %v154, %v153
  %v186 = vpack.c.b16 %v156, %v155
  %v187 = vpack.c.b16 %v158, %v157
  %v188 = vpack.c.b16 %v160, %v159
  %v189 = vpack.c.b16 %v162, %v161
  %v190 = vpack.c.b16 %v164, %v163
  %v191 = vpack.c.b16 %v166, %v165
  %v192 = vpack.c.b16 %v168, %v167
  %v193 = vpack.c.b16 %v170, %v169
  %v194 = vpack.c.b16 %v172, %v171
  %v195 = vpack.c.b16 %v174, %v173
  %v196 = vpack.c.b16 %v176, %v175
  %v197 = vpack.c.b16 %v178, %v177
  %v198 = vpack.c.b16 %v180, %v179
  %vm217 = vcmask 261120
  %v219 = vsel %vm217, %v101, 0
  %v222 = vsel %vm217, %v104, 0
  %224 = vmatprep.subr.bf16.mxu0 0
  %225 = vmatpush1.bf16.msra.mxu0 %v181
  %226 = vmatprep.subr.bf16.mxu0 0
  %227 = vmatpush1.bf16.msra.mxu0 %v182
  %228 = vmatprep.subr.bf16.mxu0 0
  %229 = vmatpush1.bf16.msra.mxu0 %v183
  %230 = vmatprep.subr.bf16.mxu0 0
  %231 = vmatpush1.bf16.msra.mxu0 %v184
  %232 = vmatprep.subr.bf16.mxu0 0
  %233 = vmatpush1.bf16.msra.mxu0 %v185
  %234 = vmatprep.subr.bf16.mxu0 0
  %235 = vmatpush1.bf16.msra.mxu0 %v186
  %236 = vmatprep.subr.bf16.mxu0 0
  %237 = vmatpush1.bf16.msra.mxu0 %v187
  %238 = vmatprep.subr.bf16.mxu0 0
  %239 = vmatpush1.bf16.msra.mxu0 %v188
  %240 = vmatprep.subr.bf16.mxu0 0
  %241 = vmatpush1.bf16.msra.mxu0 %v189
  %242 = vmatprep.subr.bf16.mxu0 0
  %243 = vmatpush1.bf16.msra.mxu0 %v190
  %244 = vmatprep.subr.bf16.mxu0 0
  %245 = vmatpush1.bf16.msra.mxu0 %v191
  %246 = vmatprep.subr.bf16.mxu0 0
  %247 = vmatpush1.bf16.msra.mxu0 %v192
  %248 = vmatprep.subr.bf16.mxu0 0
  %249 = vmatpush1.bf16.msra.mxu0 %v193
  %250 = vmatprep.subr.bf16.mxu0 0
  %251 = vmatpush1.bf16.msra.mxu0 %v194
  %252 = vmatprep.subr.bf16.mxu0 0
  %253 = vmatpush1.bf16.msra.mxu0 %v195
  %254 = vmatprep.subr.bf16.mxu0 0
  %255 = vmatpush1.bf16.msra.mxu0 %v196
  %256 = vmatprep.mubr.bf16.mxu0 %v100
  %257 = vmatmul.mubr.bf16.gmra.mrb[0].mxu0 %v99
  %v258 = vpop.f32.mrb[0].mxu0
  %v259 = vadd.f32 0.0, %v258
  %v260 = vpop.f32.mrb[0].mxu0
  %v261 = vpop.f32.mrb[0].mxu0
  %v262 = vadd.f32 0.0, %v261
  %v263 = vpop.f32.mrb[0].mxu0
  %264 = vmatprep.mubr.bf16.mxu0 %v103
  %265 = vmatmul.mubr.bf16.gmra.mrb[0].mxu0 %v102
  %v266 = vpop.f32.mrb[0].mxu0
  %v267 = vadd.f32 0.0, %v266
  %v268 = vpop.f32.mrb[0].mxu0
  %v269 = vpop.f32.mrb[0].mxu0
  %v270 = vadd.f32 0.0, %v269
  %v271 = vpop.f32.mrb[0].mxu0
  %272 = vdwg.mxu0
  %273 = vmatprep.subr.bf16.mxu0 0
  %274 = vmatpush1.bf16.msra.mxu0 %v197
  %275 = vmatprep.subr.bf16.mxu0 0
  %276 = vmatpush1.bf16.msra.mxu0 %v198
  %277 = vmatprep.subr.bf16.mxu0 0
  %278 = vmatpush1.bf16.msra.mxu0 0
  %279 = vmatprep.subr.bf16.mxu0 0
  %280 = vmatpush1.bf16.msra.mxu0 0
  %281 = vmatprep.subr.bf16.mxu0 0
  %282 = vmatpush1.bf16.msra.mxu0 0
  %283 = vmatprep.subr.bf16.mxu0 0
  %284 = vmatpush1.bf16.msra.mxu0 0
  %285 = vmatprep.subr.bf16.mxu0 0
  %286 = vmatpush1.bf16.msra.mxu0 0
  %287 = vmatprep.subr.bf16.mxu0 0
  %288 = vmatpush1.bf16.msra.mxu0 0
  %289 = vmatprep.subr.bf16.mxu0 0
  %290 = vmatpush1.bf16.msra.mxu0 0
  %291 = vmatprep.subr.bf16.mxu0 0
  %292 = vmatpush1.bf16.msra.mxu0 0
  %293 = vmatprep.subr.bf16.mxu0 0
  %294 = vmatpush1.bf16.msra.mxu0 0
  %295 = vmatprep.subr.bf16.mxu0 0
  %296 = vmatpush1.bf16.msra.mxu0 0
  %297 = vmatprep.subr.bf16.mxu0 0
  %298 = vmatpush1.bf16.msra.mxu0 0
  %299 = vmatprep.subr.bf16.mxu0 0
  %300 = vmatpush1.bf16.msra.mxu0 0
  %301 = vmatprep.subr.bf16.mxu0 0
  %302 = vmatpush1.bf16.msra.mxu0 0
  %303 = vmatprep.subr.bf16.mxu0 0
  %304 = vmatpush1.bf16.msra.mxu0 0
  %305 = vmatprep.mubr.bf16.mxu0 0
  %306 = vmatmul.mubr.bf16.gmra.mrb[0].mxu0 %v219
  %v307 = vpop.f32.mrb[0].mxu0
  %v308 = vadd.f32 %v259, %v307
  %v309 = vpop.f32.mrb[0].mxu0
  %v310 = vpop.f32.mrb[0].mxu0
  %v311 = vadd.f32 %v262, %v310
  %v312 = vpop.f32.mrb[0].mxu0
  %313 = vmatprep.mubr.bf16.mxu0 0
  %314 = vmatmul.mubr.bf16.gmra.mrb[0].mxu0 %v222
  %v315 = vpop.f32.mrb[0].mxu0
  %v316 = vadd.f32 %v267, %v315
  %v317 = vpop.f32.mrb[0].mxu0
  %v318 = vpop.f32.mrb[0].mxu0
  %v319 = vadd.f32 %v270, %v318
  %v320 = vpop.f32.mrb[0].mxu0
  %321 = vdwg.mxu0
  %v322 = vadd.f32 %v31, %v308
  %v323 = vadd.f32 %v32, %v311
  %v324 = vadd.f32 %v33, %v316
  %v325 = vadd.f32 %v34, %v319
  %vm326 = vcmask 523264
  %327 = vst.msk [vmem:[#allocation2] sm:$0xff] %vm326, %v322
  %328 = vst.msk [vmem:[#allocation2 + $0x8] sm:$0xff] %vm326, %v323
  %329 = vst.msk [vmem:[#allocation2 + $0x10] sm:$0xff] %vm326, %v324
  %330 = vst.msk [vmem:[#allocation2 + $0x18] sm:$0xff] %vm326, %v325
  // Predicated region
  $region18: #{diffusion_unet_forward.11} parent=0 // pred_check
    %p331 = pneg %p15
  $region19: #{diffusion_unet_forward.11} parent=0 // pred_check_branch
    %333 = sbr.rel (%p331) target = $region21
  $region20: #{diffusion_unet_forward.11} parent=0 // pred_region
    %v334 = vld [vmem:[#allocation2] sm:$0xff]
    %v335 = vld [vmem:[#allocation2 + $0x8] sm:$0xff]
    %v336 = vld [vmem:[#allocation2 + $0x10] sm:$0xff]
    %v337 = vld [vmem:[#allocation2 + $0x18] sm:$0xff]
    %v338 = vmax.f32 %v334, 0.0
    %v339 = vmax.f32 %v335, 0.0
    %v340 = vmax.f32 %v336, 0.0
    %v341 = vmax.f32 %v337, 0.0
    %v342 = vpack.c.bf16 %v339, %v338
    %v343 = vpack.c.bf16 %v341, %v340
    %v346 = vunpack.c.l.b16 %v342
    %v347 = vunpack.c.h.b16 %v342
    %v348 = vunpack.c.l.b16 %v343
    %v349 = vunpack.c.h.b16 %v343
    %v350 = vpack.c.b16 %v346, %v346
    %v351 = vpack.c.b16 %v347, %v347
    %v352 = vpack.c.b16 %v348, %v348
    %v353 = vpack.c.b16 %v349, %v349
    %vm358 = vcmask 519168
    %359 = vst.msk [vmem:[%s3] sm:$0xf] %vm358, %v350
    %360 = vst.msk [vmem:[%s3 + $0x4] sm:$0xf] %vm358, %v351
    %361 = vst.msk [vmem:[%s3 + $0x8] sm:$0xf] %vm358, %v352
    %362 = vst.msk [vmem:[%s3 + $0xc] sm:$0xf] %vm358, %v353
  $region21: #{diffusion_unet_forward.11} parent=0 // pred_fallthru
    _
  // Predicated region
  $region22: #{diffusion_unet_forward.11} parent=0 // pred_check
    _
  $region23: #{diffusion_unet_forward.11} parent=0 // pred_check_branch
    %364 = sbr.rel (0) target = $region25
  $region24: #{diffusion_unet_forward.11} parent=0 // pred_region
    _
  $region25: #{diffusion_unet_forward.11} parent=0 // pred_fallthru
    _
  // Predicated region
  $region26: #{diffusion_unet_forward.11} parent=0 // pred_check
    _
  $region27: #{diffusion_unet_forward.11} parent=0 // pred_check_branch
    %366 = sbr.rel (0) target = $region29
  $region28: #{diffusion_unet_forward.11} parent=0 // pred_region
    _
  $region29: #{diffusion_unet_forward.11} parent=0 // pred_fallthru
    _

// kernel: diffusion_unet_forward.12
$region0: #{diffusion_unet_forward.12}
  #allocation0 [shape = 'u32[]', space=smem, size = 0x4, offset = 0x4, fixed_abs, tag = 'smem constant byte address 0x4 - core index']
  #allocation1 [shape = 'u32[144,128]{1,0:T(1,128)}', space=vmem, size = 0x12000, scoped, tag = 'internal scratch']
  #allocation2 [shape = 'f32[128,32]{1,0:T(8,128)}', space=vmem, size = 0x10000, scoped, tag = 'scratch operand']
  %s0 = inlined_call_operand.vmem [shape: bf16[128,288], index: 0, kind: input, shape index: {}]
  %s1 = inlined_call_operand.vmem [shape: bf16[288,32], index: 1, kind: input, shape index: {}]
  %s2 = inlined_call_operand.vmem [shape: f32[1,32], index: 2, kind: input, shape index: {}]
  %s3 = inlined_call_operand.vmem [shape: bf16[128,32], index: 3, kind: output, shape index: {}]
  %s4 = sld [smem:[#allocation0]]
  $region30: #{diffusion_unet_forward.12} parent=0
    _
  %s6 = ssub.s32 1, %s4
  %s7 = scalar_select 0, %s6, %s4
  // Predicated region
  $region2: #{diffusion_unet_forward.12} parent=0 // pred_check
    _
  $region3: #{diffusion_unet_forward.12} parent=0 // pred_check_branch
    %9 = sbr.rel (0) target = $region5
  $region4: #{diffusion_unet_forward.12} parent=0 // pred_region
    _
  $region5: #{diffusion_unet_forward.12} parent=0 // pred_fallthru
    _
  // Predicated region
  $region6: #{diffusion_unet_forward.12} parent=0 // pred_check
    _
  $region7: #{diffusion_unet_forward.12} parent=0 // pred_check_branch
    %11 = sbr.rel (0) target = $region9
  $region8: #{diffusion_unet_forward.12} parent=0 // pred_region
    _
  $region9: #{diffusion_unet_forward.12} parent=0 // pred_fallthru
    _
  // Predicated region
  $region10: #{diffusion_unet_forward.12} parent=0 // pred_check
    _
  $region11: #{diffusion_unet_forward.12} parent=0 // pred_check_branch
    %13 = sbr.rel (0) target = $region13
  $region12: #{diffusion_unet_forward.12} parent=0 // pred_region
    _
  $region13: #{diffusion_unet_forward.12} parent=0 // pred_fallthru
    _
  %p15 = scmp.eq.s32.totalorder 0, 0
  // Predicated region
  $region14: #{diffusion_unet_forward.12} parent=0 // pred_check
    %p16 = pneg %p15
  $region15: #{diffusion_unet_forward.12} parent=0 // pred_check_branch
    %18 = sbr.rel (%p16) target = $region17
  $region16: #{diffusion_unet_forward.12} parent=0 // pred_region
    %v19 = vld [vmem:[%s2] sm:$0x1]
    %v21 = vlaneseq
    %v22 = vshrl.u32 %v21, 7
    %v23 = vsub.s32 0, %v22
    %v24 = vrot.slane %v19, %v23
    %vm26 = vcmask 261120
    %27 = vst.msk [vmem:[#allocation2] sm:$0xff] %vm26, %v24
    %28 = vst.msk [vmem:[#allocation2 + $0x8] sm:$0xff] %vm26, %v24
    %29 = vst.msk [vmem:[#allocation2 + $0x10] sm:$0xff] %vm26, %v24
    %30 = vst.msk [vmem:[#allocation2 + $0x18] sm:$0xff] %vm26, %v24
    %31 = vst.msk [vmem:[#allocation2 + $0x20] sm:$0xff] %vm26, %v24
    %32 = vst.msk [vmem:[#allocation2 + $0x28] sm:$0xff] %vm26, %v24
    %33 = vst.msk [vmem:[#allocation2 + $0x30] sm:$0xff] %vm26, %v24
    %34 = vst.msk [vmem:[#allocation2 + $0x38] sm:$0xff] %vm26, %v24
    %35 = vst.msk [vmem:[#allocation2 + $0x40] sm:$0xff] %vm26, %v24
    %36 = vst.msk [vmem:[#allocation2 + $0x48] sm:$0xff] %vm26, %v24
    %37 = vst.msk [vmem:[#allocation2 + $0x50] sm:$0xff] %vm26, %v24
    %38 = vst.msk [vmem:[#allocation2 + $0x58] sm:$0xff] %vm26, %v24
    %39 = vst.msk [vmem:[#allocation2 + $0x60] sm:$0xff] %vm26, %v24
    %40 = vst.msk [vmem:[#allocation2 + $0x68] sm:$0xff] %vm26, %v24
    %41 = vst.msk [vmem:[#allocation2 + $0x70] sm:$0xff] %vm26, %v24
    %42 = vst.msk [vmem:[#allocation2 + $0x78] sm:$0xff] %vm26, %v24
  $region17: #{diffusion_unet_forward.12} parent=0 // pred_fallthru
    _
  %v43 = vld [vmem:[#allocation2] sm:$0xff]
  %v44 = vld [vmem:[#allocation2 + $0x8] sm:$0xff]
  %v45 = vld [vmem:[#allocation2 + $0x10] sm:$0xff]
  %v46 = vld [vmem:[#allocation2 + $0x18] sm:$0xff]
  %v47 = vld [vmem:[#allocation2 + $0x20] sm:$0xff]
  %v48 = vld [vmem:[#allocation2 + $0x28] sm:$0xff]
  %v49 = vld [vmem:[#allocation2 + $0x30] sm:$0xff]
  %v50 = vld [vmem:[#allocation2 + $0x38] sm:$0xff]
  %v51 = vld [vmem:[#allocation2 + $0x40] sm:$0xff]
  %v52 = vld [vmem:[#allocation2 + $0x48] sm:$0xff]
  %v53 = vld [vmem:[#allocation2 + $0x50] sm:$0xff]
  %v54 = vld [vmem:[#allocation2 + $0x58] sm:$0xff]
  %v55 = vld [vmem:[#allocation2 + $0x60] sm:$0xff]
  %v56 = vld [vmem:[#allocation2 + $0x68] sm:$0xff]
  %v57 = vld [vmem:[#allocation2 + $0x70] sm:$0xff]
  %v58 = vld [vmem:[#allocation2 + $0x78] sm:$0xff]
  %v59 = vld [vmem:[%s0] sm:$0xff]
  %v60 = vld [vmem:[%s0 + $0x8] sm:$0xf]
  %v61 = vld [vmem:[%s0 + $0xc] sm:$0xff]
  %v62 = vld [vmem:[%s0 + $0x14] sm:$0xf]
  %v63 = vld [vmem:[%s0 + $0x18] sm:$0xff]
  %v64 = vld [vmem:[%s0 + $0x20] sm:$0xf]
  %v65 = vld [vmem:[%s0 + $0x24] sm:$0xff]
  %v66 = vld [vmem:[%s0 + $0x2c] sm:$0xf]
  %v67 = vld [vmem:[%s0 + $0x30] sm:$0xff]
  %v68 = vld [vmem:[%s0 + $0x38] sm:$0xf]
  %v69 = vld [vmem:[%s0 + $0x3c] sm:$0xff]
  %v70 = vld [vmem:[%s0 + $0x44] sm:$0xf]
  %v71 = vld [vmem:[%s0 + $0x48] sm:$0xff]
  %v72 = vld [vmem:[%s0 + $0x50] sm:$0xf]
  %v73 = vld [vmem:[%s0 + $0x54] sm:$0xff]
  %v74 = vld [vmem:[%s0 + $0x5c] sm:$0xf]
  %v75 = vld [vmem:[%s0 + $0x60] sm:$0xff]
  %v76 = vld [vmem:[%s0 + $0x68] sm:$0xf]
  %v77 = vld [vmem:[%s0 + $0x6c] sm:$0xff]
  %v78 = vld [vmem:[%s0 + $0x74] sm:$0xf]
  %v79 = vld [vmem:[%s0 + $0x78] sm:$0xff]
  %v80 = vld [vmem:[%s0 + $0x80] sm:$0xf]
  %v81 = vld [vmem:[%s0 + $0x84] sm:$0xff]
  %v82 = vld [vmem:[%s0 + $0x8c] sm:$0xf]
  %v83 = vld [vmem:[%s0 + $0x90] sm:$0xff]
  %v84 = vld [vmem:[%s0 + $0x98] sm:$0xf]
  %v85 = vld [vmem:[%s0 + $0x9c] sm:$0xff]
  %v86 = vld [vmem:[%s0 + $0xa4] sm:$0xf]
  %v87 = vld [vmem:[%s0 + $0xa8] sm:$0xff]
  %v88 = vld [vmem:[%s0 + $0xb0] sm:$0xf]
  %v89 = vld [vmem:[%s0 + $0xb4] sm:$0xff]
  %v90 = vld [vmem:[%s0 + $0xbc] sm:$0xf]
  %v91 = vld [vmem:[%s1] sm:$0xf]
  %v92 = vld [vmem:[%s1 + $0x4] sm:$0xf]
  %v93 = vld [vmem:[%s1 + $0x8] sm:$0xf]
  %v94 = vld [vmem:[%s1 + $0xc] sm:$0xf]
  %v95 = vld [vmem:[%s1 + $0x10] sm:$0xf]
  %v96 = vld [vmem:[%s1 + $0x14] sm:$0xf]
  %v97 = vld [vmem:[%s1 + $0x18] sm:$0xf]
  %v98 = vld [vmem:[%s1 + $0x1c] sm:$0xf]
  %v99 = vld [vmem:[%s1 + $0x20] sm:$0xf]
  %v100 = vld [vmem:[%s1 + $0x24] sm:$0xf]
  %v101 = vld [vmem:[%s1 + $0x28] sm:$0xf]
  %v102 = vld [vmem:[%s1 + $0x2c] sm:$0xf]
  %v103 = vld [vmem:[%s1 + $0x30] sm:$0xf]
  %v104 = vld [vmem:[%s1 + $0x34] sm:$0xf]
  %v105 = vld [vmem:[%s1 + $0x38] sm:$0xf]
  %v106 = vld [vmem:[%s1 + $0x3c] sm:$0xf]
  %v107 = vld [vmem:[%s1 + $0x40] sm:$0xf]
  %v108 = vld [vmem:[%s1 + $0x44] sm:$0xf]
  %v109 = vld [vmem:[%s1 + $0x48] sm:$0xf]
  %v110 = vld [vmem:[%s1 + $0x4c] sm:$0xf]
  %v111 = vld [vmem:[%s1 + $0x50] sm:$0xf]
  %v112 = vld [vmem:[%s1 + $0x54] sm:$0xf]
  %v113 = vld [vmem:[%s1 + $0x58] sm:$0xf]
  %v114 = vld [vmem:[%s1 + $0x5c] sm:$0xf]
  %v115 = vld [vmem:[%s1 + $0x60] sm:$0xf]
  %v116 = vld [vmem:[%s1 + $0x64] sm:$0xf]
  %v117 = vld [vmem:[%s1 + $0x68] sm:$0xf]
  %v118 = vld [vmem:[%s1 + $0x6c] sm:$0xf]
  %v119 = vld [vmem:[%s1 + $0x70] sm:$0xf]
  %v120 = vld [vmem:[%s1 + $0x74] sm:$0xf]
  %v121 = vld [vmem:[%s1 + $0x78] sm:$0xf]
  %v122 = vld [vmem:[%s1 + $0x7c] sm:$0xf]
  %v123 = vld [vmem:[%s1 + $0x80] sm:$0xf]
  %v124 = vld [vmem:[%s1 + $0x84] sm:$0xf]
  %v125 = vld [vmem:[%s1 + $0x88] sm:$0xf]
  %v126 = vld [vmem:[%s1 + $0x8c] sm:$0xf]
  %v159 = vunpack.c.l.b16 %v59
  %v160 = vunpack.c.h.b16 %v59
  %v161 = vunpack.c.l.b16 %v60
  %v162 = vunpack.c.l.b16 %v61
  %v163 = vunpack.c.h.b16 %v61
  %v164 = vunpack.c.l.b16 %v62
  %v165 = vunpack.c.l.b16 %v63
  %v166 = vunpack.c.h.b16 %v63
  %v167 = vunpack.c.l.b16 %v64
  %v168 = vunpack.c.l.b16 %v65
  %v169 = vunpack.c.h.b16 %v65
  %v170 = vunpack.c.l.b16 %v66
  %v171 = vunpack.c.l.b16 %v67
  %v172 = vunpack.c.h.b16 %v67
  %v173 = vunpack.c.l.b16 %v68
  %v174 = vunpack.c.l.b16 %v69
  %v175 = vunpack.c.h.b16 %v69
  %v176 = vunpack.c.l.b16 %v70
  %v177 = vunpack.c.l.b16 %v71
  %v178 = vunpack.c.h.b16 %v71
  %v179 = vunpack.c.l.b16 %v72
  %v180 = vunpack.c.l.b16 %v73
  %v181 = vunpack.c.h.b16 %v73
  %v182 = vunpack.c.l.b16 %v74
  %v183 = vunpack.c.l.b16 %v75
  %v184 = vunpack.c.h.b16 %v75
  %v185 = vunpack.c.l.b16 %v76
  %v186 = vunpack.c.l.b16 %v77
  %v187 = vunpack.c.h.b16 %v77
  %v188 = vunpack.c.l.b16 %v78
  %v189 = vunpack.c.l.b16 %v79
  %v190 = vunpack.c.h.b16 %v79
  %v191 = vunpack.c.l.b16 %v80
  %v192 = vunpack.c.l.b16 %v81
  %v193 = vunpack.c.h.b16 %v81
  %v194 = vunpack.c.l.b16 %v82
  %v195 = vunpack.c.l.b16 %v83
  %v196 = vunpack.c.h.b16 %v83
  %v197 = vunpack.c.l.b16 %v84
  %v198 = vunpack.c.l.b16 %v85
  %v199 = vunpack.c.h.b16 %v85
  %v200 = vunpack.c.l.b16 %v86
  %v201 = vunpack.c.l.b16 %v87
  %v202 = vunpack.c.h.b16 %v87
  %v203 = vunpack.c.l.b16 %v88
  %v204 = vunpack.c.l.b16 %v89
  %v205 = vunpack.c.h.b16 %v89
  %v206 = vunpack.c.l.b16 %v90
  %v207 = vpack.c.b16 %v162, %v159
  %v208 = vpack.c.b16 %v163, %v160
  %v209 = vpack.c.b16 %v164, %v161
  %v210 = vpack.c.b16 %v168, %v165
  %v211 = vpack.c.b16 %v169, %v166
  %v212 = vpack.c.b16 %v170, %v167
  %v213 = vpack.c.b16 %v174, %v171
  %v214 = vpack.c.b16 %v175, %v172
  %v215 = vpack.c.b16 %v176, %v173
  %v216 = vpack.c.b16 %v180, %v177
  %v217 = vpack.c.b16 %v181, %v178
  %v218 = vpack.c.b16 %v182, %v179
  %v219 = vpack.c.b16 %v186, %v183
  %v220 = vpack.c.b16 %v187, %v184
  %v221 = vpack.c.b16 %v188, %v185
  %v222 = vpack.c.b16 %v192, %v189
  %v223 = vpack.c.b16 %v193, %v190
  %v224 = vpack.c.b16 %v194, %v191
  %v225 = vpack.c.b16 %v198, %v195
  %v226 = vpack.c.b16 %v199, %v196
  %v227 = vpack.c.b16 %v200, %v197
  %v228 = vpack.c.b16 %v204, %v201
  %v229 = vpack.c.b16 %v205, %v202
  %v230 = vpack.c.b16 %v206, %v203
  %v283 = vunpack.c.l.b16 %v91
  %v284 = vunpack.c.l.b16 %v92
  %v285 = vunpack.c.l.b16 %v93
  %v286 = vunpack.c.l.b16 %v94
  %v287 = vunpack.c.l.b16 %v95
  %v288 = vunpack.c.l.b16 %v96
  %v289 = vunpack.c.l.b16 %v97
  %v290 = vunpack.c.l.b16 %v98
  %v291 = vunpack.c.l.b16 %v99
  %v292 = vunpack.c.l.b16 %v100
  %v293 = vunpack.c.l.b16 %v101
  %v294 = vunpack.c.l.b16 %v102
  %v295 = vunpack.c.l.b16 %v103
  %v296 = vunpack.c.l.b16 %v104
  %v297 = vunpack.c.l.b16 %v105
  %v298 = vunpack.c.l.b16 %v106
  %v299 = vunpack.c.l.b16 %v107
  %v300 = vunpack.c.l.b16 %v108
  %v301 = vunpack.c.l.b16 %v109
  %v302 = vunpack.c.l.b16 %v110
  %v303 = vunpack.c.l.b16 %v111
  %v304 = vunpack.c.l.b16 %v112
  %v305 = vunpack.c.l.b16 %v113
  %v306 = vunpack.c.l.b16 %v114
  %v307 = vunpack.c.l.b16 %v115
  %v308 = vunpack.c.l.b16 %v116
  %v309 = vunpack.c.l.b16 %v117
  %v310 = vunpack.c.l.b16 %v118
  %v311 = vunpack.c.l.b16 %v119
  %v312 = vunpack.c.l.b16 %v120
  %v313 = vunpack.c.l.b16 %v121
  %v314 = vunpack.c.l.b16 %v122
  %v315 = vunpack.c.l.b16 %v123
  %v316 = vunpack.c.l.b16 %v124
  %v317 = vunpack.c.l.b16 %v125
  %v318 = vunpack.c.l.b16 %v126
  %v319 = vpack.c.b16 %v284, %v283
  %v320 = vpack.c.b16 %v286, %v285
  %v321 = vpack.c.b16 %v288, %v287
  %v322 = vpack.c.b16 %v290, %v289
  %v323 = vpack.c.b16 %v292, %v291
  %v324 = vpack.c.b16 %v294, %v293
  %v325 = vpack.c.b16 %v296, %v295
  %v326 = vpack.c.b16 %v298, %v297
  %v327 = vpack.c.b16 %v300, %v299
  %v328 = vpack.c.b16 %v302, %v301
  %v329 = vpack.c.b16 %v304, %v303
  %v330 = vpack.c.b16 %v306, %v305
  %v331 = vpack.c.b16 %v308, %v307
  %v332 = vpack.c.b16 %v310, %v309
  %v333 = vpack.c.b16 %v312, %v311
  %v334 = vpack.c.b16 %v314, %v313
  %v335 = vpack.c.b16 %v316, %v315
  %v336 = vpack.c.b16 %v318, %v317
  %vm355 = vcmask 261120
  %v357 = vsel %vm355, %v209, 0
  %v360 = vsel %vm355, %v212, 0
  %v363 = vsel %vm355, %v215, 0
  %v366 = vsel %vm355, %v218, 0
  %v369 = vsel %vm355, %v221, 0
  %v372 = vsel %vm355, %v224, 0
  %v375 = vsel %vm355, %v227, 0
  %v378 = vsel %vm355, %v230, 0
  %380 = vmatprep.subr.bf16.mxu0 0
  %381 = vmatpush1.bf16.msra.mxu0 %v319
  %382 = vmatprep.subr.bf16.mxu0 0
  %383 = vmatpush1.bf16.msra.mxu0 %v320
  %384 = vmatprep.subr.bf16.mxu0 0
  %385 = vmatpush1.bf16.msra.mxu0 %v321
  %386 = vmatprep.subr.bf16.mxu0 0
  %387 = vmatpush1.bf16.msra.mxu0 %v322
  %388 = vmatprep.subr.bf16.mxu0 0
  %389 = vmatpush1.bf16.msra.mxu0 %v323
  %390 = vmatprep.subr.bf16.mxu0 0
  %391 = vmatpush1.bf16.msra.mxu0 %v324
  %392 = vmatprep.subr.bf16.mxu0 0
  %393 = vmatpush1.bf16.msra.mxu0 %v325
  %394 = vmatprep.subr.bf16.mxu0 0
  %395 = vmatpush1.bf16.msra.mxu0 %v326
  %396 = vmatprep.subr.bf16.mxu0 0
  %397 = vmatpush1.bf16.msra.mxu0 %v327
  %398 = vmatprep.subr.bf16.mxu0 0
  %399 = vmatpush1.bf16.msra.mxu0 %v328
  %400 = vmatprep.subr.bf16.mxu0 0
  %401 = vmatpush1.bf16.msra.mxu0 %v329
  %402 = vmatprep.subr.bf16.mxu0 0
  %403 = vmatpush1.bf16.msra.mxu0 %v330
  %404 = vmatprep.subr.bf16.mxu0 0
  %405 = vmatpush1.bf16.msra.mxu0 %v331
  %406 = vmatprep.subr.bf16.mxu0 0
  %407 = vmatpush1.bf16.msra.mxu0 %v332
  %408 = vmatprep.subr.bf16.mxu0 0
  %409 = vmatpush1.bf16.msra.mxu0 %v333
  %410 = vmatprep.subr.bf16.mxu0 0
  %411 = vmatpush1.bf16.msra.mxu0 %v334
  %412 = vmatprep.mubr.bf16.mxu0 %v208
  %413 = vmatmul.mubr.bf16.gmra.mrb[0].mxu0 %v207
  %v414 = vpop.f32.mrb[0].mxu0
  %v415 = vadd.f32 0.0, %v414
  %v416 = vpop.f32.mrb[0].mxu0
  %v417 = vpop.f32.mrb[0].mxu0
  %v418 = vadd.f32 0.0, %v417
  %v419 = vpop.f32.mrb[0].mxu0
  %420 = vmatprep.mubr.bf16.mxu0 %v211
  %421 = vmatmul.mubr.bf16.gmra.mrb[0].mxu0 %v210
  %v422 = vpop.f32.mrb[0].mxu0
  %v423 = vadd.f32 0.0, %v422
  %v424 = vpop.f32.mrb[0].mxu0
  %v425 = vpop.f32.mrb[0].mxu0
  %v426 = vadd.f32 0.0, %v425
  %v427 = vpop.f32.mrb[0].mxu0
  %428 = vmatprep.mubr.bf16.mxu0 %v214
  %429 = vmatmul.mubr.bf16.gmra.mrb[0].mxu0 %v213
  %v430 = vpop.f32.mrb[0].mxu0
  %v431 = vadd.f32 0.0, %v430
  %v432 = vpop.f32.mrb[0].mxu0
  %v433 = vpop.f32.mrb[0].mxu0
  %v434 = vadd.f32 0.0, %v433
  %v435 = vpop.f32.mrb[0].mxu0
  %436 = vmatprep.mubr.bf16.mxu0 %v217
  %437 = vmatmul.mubr.bf16.gmra.mrb[0].mxu0 %v216
  %v438 = vpop.f32.mrb[0].mxu0
  %v439 = vadd.f32 0.0, %v438
  %v440 = vpop.f32.mrb[0].mxu0
  %v441 = vpop.f32.mrb[0].mxu0
  %v442 = vadd.f32 0.0, %v441
  %v443 = vpop.f32.mrb[0].mxu0
  %444 = vmatprep.mubr.bf16.mxu0 %v220
  %445 = vmatmul.mubr.bf16.gmra.mrb[0].mxu0 %v219
  %v446 = vpop.f32.mrb[0].mxu0
  %v447 = vadd.f32 0.0, %v446
  %v448 = vpop.f32.mrb[0].mxu0
  %v449 = vpop.f32.mrb[0].mxu0
  %v450 = vadd.f32 0.0, %v449
  %v451 = vpop.f32.mrb[0].mxu0
  %452 = vmatprep.mubr.bf16.mxu0 %v223
  %453 = vmatmul.mubr.bf16.gmra.mrb[0].mxu0 %v222
  %v454 = vpop.f32.mrb[0].mxu0
  %v455 = vadd.f32 0.0, %v454
  %v456 = vpop.f32.mrb[0].mxu0
  %v457 = vpop.f32.mrb[0].mxu0
  %v458 = vadd.f32 0.0, %v457
  %v459 = vpop.f32.mrb[0].mxu0
  %460 = vmatprep.mubr.bf16.mxu0 %v226
  %461 = vmatmul.mubr.bf16.gmra.mrb[0].mxu0 %v225
  %v462 = vpop.f32.mrb[0].mxu0
  %v463 = vadd.f32 0.0, %v462
  %v464 = vpop.f32.mrb[0].mxu0
  %v465 = vpop.f32.mrb[0].mxu0
  %v466 = vadd.f32 0.0, %v465
  %v467 = vpop.f32.mrb[0].mxu0
  %468 = vmatprep.mubr.bf16.mxu0 %v229
  %469 = vmatmul.mubr.bf16.gmra.mrb[0].mxu0 %v228
  %v470 = vpop.f32.mrb[0].mxu0
  %v471 = vadd.f32 0.0, %v470
  %v472 = vpop.f32.mrb[0].mxu0
  %v473 = vpop.f32.mrb[0].mxu0
  %v474 = vadd.f32 0.0, %v473
  %v475 = vpop.f32.mrb[0].mxu0
  %476 = vdwg.mxu0
  %477 = vmatprep.subr.bf16.mxu0 0
  %478 = vmatpush1.bf16.msra.mxu0 %v335
  %479 = vmatprep.subr.bf16.mxu0 0
  %480 = vmatpush1.bf16.msra.mxu0 %v336
  %481 = vmatprep.subr.bf16.mxu0 0
  %482 = vmatpush1.bf16.msra.mxu0 0
  %483 = vmatprep.subr.bf16.mxu0 0
  %484 = vmatpush1.bf16.msra.mxu0 0
  %485 = vmatprep.subr.bf16.mxu0 0
  %486 = vmatpush1.bf16.msra.mxu0 0
  %487 = vmatprep.subr.bf16.mxu0 0
  %488 = vmatpush1.bf16.msra.mxu0 0
  %489 = vmatprep.subr.bf16.mxu0 0
  %490 = vmatpush1.bf16.msra.mxu0 0
  %491 = vmatprep.subr.bf16.mxu0 0
  %492 = vmatpush1.bf16.msra.mxu0 0
  %493 = vmatprep.subr.bf16.mxu0 0
  %494 = vmatpush1.bf16.msra.mxu0 0
  %495 = vmatprep.subr.bf16.mxu0 0
  %496 = vmatpush1.bf16.msra.mxu0 0
  %497 = vmatprep.subr.bf16.mxu0 0
  %498 = vmatpush1.bf16.msra.mxu0 0
  %499 = vmatprep.subr.bf16.mxu0 0
  %500 = vmatpush1.bf16.msra.mxu0 0
  %501 = vmatprep.subr.bf16.mxu0 0
  %502 = vmatpush1.bf16.msra.mxu0 0
  %503 = vmatprep.subr.bf16.mxu0 0
  %504 = vmatpush1.bf16.msra.mxu0 0
  %505 = vmatprep.subr.bf16.mxu0 0
  %506 = vmatpush1.bf16.msra.mxu0 0
  %507 = vmatprep.subr.bf16.mxu0 0
  %508 = vmatpush1.bf16.msra.mxu0 0
  %509 = vmatprep.mubr.bf16.mxu0 0
  %510 = vmatmul.mubr.bf16.gmra.mrb[0].mxu0 %v357
  %v511 = vpop.f32.mrb[0].mxu0
  %v512 = vadd.f32 %v415, %v511
  %v513 = vpop.f32.mrb[0].mxu0
  %v514 = vpop.f32.mrb[0].mxu0
  %v515 = vadd.f32 %v418, %v514
  %v516 = vpop.f32.mrb[0].mxu0
  %517 = vmatprep.mubr.bf16.mxu0 0
  %518 = vmatmul.mubr.bf16.gmra.mrb[0].mxu0 %v360
  %v519 = vpop.f32.mrb[0].mxu0
  %v520 = vadd.f32 %v423, %v519
  %v521 = vpop.f32.mrb[0].mxu0
  %v522 = vpop.f32.mrb[0].mxu0
  %v523 = vadd.f32 %v426, %v522
  %v524 = vpop.f32.mrb[0].mxu0
  %525 = vmatprep.mubr.bf16.mxu0 0
  %526 = vmatmul.mubr.bf16.gmra.mrb[0].mxu0 %v363
  %v527 = vpop.f32.mrb[0].mxu0
  %v528 = vadd.f32 %v431, %v527
  %v529 = vpop.f32.mrb[0].mxu0
  %v530 = vpop.f32.mrb[0].mxu0
  %v531 = vadd.f32 %v434, %v530
  %v532 = vpop.f32.mrb[0].mxu0
  %533 = vmatprep.mubr.bf16.mxu0 0
  %534 = vmatmul.mubr.bf16.gmra.mrb[0].mxu0 %v366
  %v535 = vpop.f32.mrb[0].mxu0
  %v536 = vadd.f32 %v439, %v535
  %v537 = vpop.f32.mrb[0].mxu0
  %v538 = vpop.f32.mrb[0].mxu0
  %v539 = vadd.f32 %v442, %v538
  %v540 = vpop.f32.mrb[0].mxu0
  %541 = vmatprep.mubr.bf16.mxu0 0
  %542 = vmatmul.mubr.bf16.gmra.mrb[0].mxu0 %v369
  %v543 = vpop.f32.mrb[0].mxu0
  %v544 = vadd.f32 %v447, %v543
  %v545 = vpop.f32.mrb[0].mxu0
  %v546 = vpop.f32.mrb[0].mxu0
  %v547 = vadd.f32 %v450, %v546
  %v548 = vpop.f32.mrb[0].mxu0
  %549 = vmatprep.mubr.bf16.mxu0 0
  %550 = vmatmul.mubr.bf16.gmra.mrb[0].mxu0 %v372
  %v551 = vpop.f32.mrb[0].mxu0
  %v552 = vadd.f32 %v455, %v551
  %v553 = vpop.f32.mrb[0].mxu0
  %v554 = vpop.f32.mrb[0].mxu0
  %v555 = vadd.f32 %v458, %v554
  %v556 = vpop.f32.mrb[0].mxu0
  %557 = vmatprep.mubr.bf16.mxu0 0
  %558 = vmatmul.mubr.bf16.gmra.mrb[0].mxu0 %v375
  %v559 = vpop.f32.mrb[0].mxu0
  %v560 = vadd.f32 %v463, %v559
  %v561 = vpop.f32.mrb[0].mxu0
  %v562 = vpop.f32.mrb[0].mxu0
  %v563 = vadd.f32 %v466, %v562
  %v564 = vpop.f32.mrb[0].mxu0
  %565 = vmatprep.mubr.bf16.mxu0 0
  %566 = vmatmul.mubr.bf16.gmra.mrb[0].mxu0 %v378
  %v567 = vpop.f32.mrb[0].mxu0
  %v568 = vadd.f32 %v471, %v567
  %v569 = vpop.f32.mrb[0].mxu0
  %v570 = vpop.f32.mrb[0].mxu0
  %v571 = vadd.f32 %v474, %v570
  %v572 = vpop.f32.mrb[0].mxu0
  %573 = vdwg.mxu0
  %v574 = vadd.f32 %v43, %v512
  %v575 = vadd.f32 %v44, %v515
  %v576 = vadd.f32 %v45, %v520
  %v577 = vadd.f32 %v46, %v523
  %v578 = vadd.f32 %v47, %v528
  %v579 = vadd.f32 %v48, %v531
  %v580 = vadd.f32 %v49, %v536
  %v581 = vadd.f32 %v50, %v539
  %v582 = vadd.f32 %v51, %v544
  %v583 = vadd.f32 %v52, %v547
  %v584 = vadd.f32 %v53, %v552
  %v585 = vadd.f32 %v54, %v555
  %v586 = vadd.f32 %v55, %v560
  %v587 = vadd.f32 %v56, %v563
  %v588 = vadd.f32 %v57, %v568
  %v589 = vadd.f32 %v58, %v571
  %590 = vst.msk [vmem:[#allocation2] sm:$0xff] %vm355, %v574
  %591 = vst.msk [vmem:[#allocation2 + $0x8] sm:$0xff] %vm355, %v575
  %592 = vst.msk [vmem:[#allocation2 + $0x10] sm:$0xff] %vm355, %v576
  %593 = vst.msk [vmem:[#allocation2 + $0x18] sm:$0xff] %vm355, %v577
  %594 = vst.msk [vmem:[#allocation2 + $0x20] sm:$0xff] %vm355, %v578
  %595 = vst.msk [vmem:[#allocation2 + $0x28] sm:$0xff] %vm355, %v579
  %596 = vst.msk [vmem:[#allocation2 + $0x30] sm:$0xff] %vm355, %v580
  %597 = vst.msk [vmem:[#allocation2 + $0x38] sm:$0xff] %vm355, %v581
  %598 = vst.msk [vmem:[#allocation2 + $0x40] sm:$0xff] %vm355, %v582
  %599 = vst.msk [vmem:[#allocation2 + $0x48] sm:$0xff] %vm355, %v583
  %600 = vst.msk [vmem:[#allocation2 + $0x50] sm:$0xff] %vm355, %v584
  %601 = vst.msk [vmem:[#allocation2 + $0x58] sm:$0xff] %vm355, %v585
  %602 = vst.msk [vmem:[#allocation2 + $0x60] sm:$0xff] %vm355, %v586
  %603 = vst.msk [vmem:[#allocation2 + $0x68] sm:$0xff] %vm355, %v587
  %604 = vst.msk [vmem:[#allocation2 + $0x70] sm:$0xff] %vm355, %v588
  %605 = vst.msk [vmem:[#allocation2 + $0x78] sm:$0xff] %vm355, %v589
  // Predicated region
  $region18: #{diffusion_unet_forward.12} parent=0 // pred_check
    %p606 = pneg %p15
  $region19: #{diffusion_unet_forward.12} parent=0 // pred_check_branch
    %608 = sbr.rel (%p606) target = $region21
  $region20: #{diffusion_unet_forward.12} parent=0 // pred_region
    %v609 = vld [vmem:[#allocation2] sm:$0xff]
    %v610 = vld [vmem:[#allocation2 + $0x8] sm:$0xff]
    %v611 = vld [vmem:[#allocation2 + $0x10] sm:$0xff]
    %v612 = vld [vmem:[#allocation2 + $0x18] sm:$0xff]
    %v613 = vld [vmem:[#allocation2 + $0x20] sm:$0xff]
    %v614 = vld [vmem:[#allocation2 + $0x28] sm:$0xff]
    %v615 = vld [vmem:[#allocation2 + $0x30] sm:$0xff]
    %v616 = vld [vmem:[#allocation2 + $0x38] sm:$0xff]
    %v617 = vld [vmem:[#allocation2 + $0x40] sm:$0xff]
    %v618 = vld [vmem:[#allocation2 + $0x48] sm:$0xff]
    %v619 = vld [vmem:[#allocation2 + $0x50] sm:$0xff]
    %v620 = vld [vmem:[#allocation2 + $0x58] sm:$0xff]
    %v621 = vld [vmem:[#allocation2 + $0x60] sm:$0xff]
    %v622 = vld [vmem:[#allocation2 + $0x68] sm:$0xff]
    %v623 = vld [vmem:[#allocation2 + $0x70] sm:$0xff]
    %v624 = vld [vmem:[#allocation2 + $0x78] sm:$0xff]
    %v625 = vmax.f32 %v609, 0.0
    %v626 = vmax.f32 %v610, 0.0
    %v627 = vmax.f32 %v611, 0.0
    %v628 = vmax.f32 %v612, 0.0
    %v629 = vmax.f32 %v613, 0.0
    %v630 = vmax.f32 %v614, 0.0
    %v631 = vmax.f32 %v615, 0.0
    %v632 = vmax.f32 %v616, 0.0
    %v633 = vmax.f32 %v617, 0.0
    %v634 = vmax.f32 %v618, 0.0
    %v635 = vmax.f32 %v619, 0.0
    %v636 = vmax.f32 %v620, 0.0
    %v637 = vmax.f32 %v621, 0.0
    %v638 = vmax.f32 %v622, 0.0
    %v639 = vmax.f32 %v623, 0.0
    %v640 = vmax.f32 %v624, 0.0
    %v641 = vpack.c.bf16 %v626, %v625
    %v642 = vpack.c.bf16 %v628, %v627
    %v643 = vpack.c.bf16 %v630, %v629
    %v644 = vpack.c.bf16 %v632, %v631
    %v645 = vpack.c.bf16 %v634, %v633
    %v646 = vpack.c.bf16 %v636, %v635
    %v647 = vpack.c.bf16 %v638, %v637
    %v648 = vpack.c.bf16 %v640, %v639
    %v657 = vunpack.c.l.b16 %v641
    %v658 = vunpack.c.h.b16 %v641
    %v659 = vunpack.c.l.b16 %v642
    %v660 = vunpack.c.h.b16 %v642
    %v661 = vunpack.c.l.b16 %v643
    %v662 = vunpack.c.h.b16 %v643
    %v663 = vunpack.c.l.b16 %v644
    %v664 = vunpack.c.h.b16 %v644
    %v665 = vunpack.c.l.b16 %v645
    %v666 = vunpack.c.h.b16 %v645
    %v667 = vunpack.c.l.b16 %v646
    %v668 = vunpack.c.h.b16 %v646
    %v669 = vunpack.c.l.b16 %v647
    %v670 = vunpack.c.h.b16 %v647
    %v671 = vunpack.c.l.b16 %v648
    %v672 = vunpack.c.h.b16 %v648
    %v673 = vpack.c.b16 %v657, %v657
    %v674 = vpack.c.b16 %v658, %v658
    %v675 = vpack.c.b16 %v659, %v659
    %v676 = vpack.c.b16 %v660, %v660
    %v677 = vpack.c.b16 %v661, %v661
    %v678 = vpack.c.b16 %v662, %v662
    %v679 = vpack.c.b16 %v663, %v663
    %v680 = vpack.c.b16 %v664, %v664
    %v681 = vpack.c.b16 %v665, %v665
    %v682 = vpack.c.b16 %v666, %v666
    %v683 = vpack.c.b16 %v667, %v667
    %v684 = vpack.c.b16 %v668, %v668
    %v685 = vpack.c.b16 %v669, %v669
    %v686 = vpack.c.b16 %v670, %v670
    %v687 = vpack.c.b16 %v671, %v671
    %v688 = vpack.c.b16 %v672, %v672
    %vm705 = vcmask 257024
    %706 = vst.msk [vmem:[%s3] sm:$0xf] %vm705, %v673
    %707 = vst.msk [vmem:[%s3 + $0x4] sm:$0xf] %vm705, %v674
    %708 = vst.msk [vmem:[%s3 + $0x8] sm:$0xf] %vm705, %v675
    %709 = vst.msk [vmem:[%s3 + $0xc] sm:$0xf] %vm705, %v676
    %710 = vst.msk [vmem:[%s3 + $0x10] sm:$0xf] %vm705, %v677
    %711 = vst.msk [vmem:[%s3 + $0x14] sm:$0xf] %vm705, %v678
    %712 = vst.msk [vmem:[%s3 + $0x18] sm:$0xf] %vm705, %v679
    %713 = vst.msk [vmem:[%s3 + $0x1c] sm:$0xf] %vm705, %v680
    %714 = vst.msk [vmem:[%s3 + $0x20] sm:$0xf] %vm705, %v681
    %715 = vst.msk [vmem:[%s3 + $0x24] sm:$0xf] %vm705, %v682
    %716 = vst.msk [vmem:[%s3 + $0x28] sm:$0xf] %vm705, %v683
    %717 = vst.msk [vmem:[%s3 + $0x2c] sm:$0xf] %vm705, %v684
    %718 = vst.msk [vmem:[%s3 + $0x30] sm:$0xf] %vm705, %v685
    %719 = vst.msk [vmem:[%s3 + $0x34] sm:$0xf] %vm705, %v686
    %720 = vst.msk [vmem:[%s3 + $0x38] sm:$0xf] %vm705, %v687
    %721 = vst.msk [vmem:[%s3 + $0x3c] sm:$0xf] %vm705, %v688
  $region21: #{diffusion_unet_forward.12} parent=0 // pred_fallthru
    _
  // Predicated region
  $region22: #{diffusion_unet_forward.12} parent=0 // pred_check
    _
  $region23: #{diffusion_unet_forward.12} parent=0 // pred_check_branch
    %723 = sbr.rel (0) target = $region25
  $region24: #{diffusion_unet_forward.12} parent=0 // pred_region
    _
  $region25: #{diffusion_unet_forward.12} parent=0 // pred_fallthru
    _
  // Predicated region
  $region26: #{diffusion_unet_forward.12} parent=0 // pred_check
    _
  $region27: #{diffusion_unet_forward.12} parent=0 // pred_check_branch
    %725 = sbr.rel (0) target = $region29
  $region28: #{diffusion_unet_forward.12} parent=0 // pred_region
    _
  $region29: #{diffusion_unet_forward.12} parent=0 // pred_fallthru
    _

// kernel: diffusion_unet_forward.13
$region0: #{diffusion_unet_forward.13}
  #allocation0 [shape = 'u32[]', space=smem, size = 0x4, offset = 0x4, fixed_abs, tag = 'smem constant byte address 0x4 - core index']
  #allocation1 [shape = 'u32[144,128]{1,0:T(1,128)}', space=vmem, size = 0x12000, scoped, tag = 'internal scratch']
  #allocation2 [shape = 'f32[512,1]{1,0:T(8,128)}', space=vmem, size = 0x40000, scoped, tag = 'scratch operand']
  #allocation3 [shape = 'f32[1,1]{1,0:T(1,128)S(1)}', space=vmem, size = 0x200, scoped, tag = 'scoped memory for diffusion_unet_forward.13']
  %s0 = inlined_call_operand.vmem [shape: bf16[512,144], index: 0, kind: input, shape index: {}]
  %s1 = inlined_call_operand.vmem [shape: bf16[144,1], index: 1, kind: input, shape index: {}]
  %s2 = inlined_call_operand.<no memory space> [shape: f32[1,1], index: 2, kind: input, shape index: {}]
  %s3 = inlined_call_operand.vmem [shape: f32[512,1], index: 3, kind: output, shape index: {}]
  %s4 = sld [smem:[#allocation0]]
  $region30: #{diffusion_unet_forward.13} parent=0
    _
  %s6 = ssub.s32 1, %s4
  %s7 = scalar_select 0, %s6, %s4
  %v8 = vstv %s2
  %9 = vst [vmem:[#allocation3] sm:$0x1] %v8
  // Predicated region
  $region2: #{diffusion_unet_forward.13} parent=0 // pred_check
    _
  $region3: #{diffusion_unet_forward.13} parent=0 // pred_check_branch
    %11 = sbr.rel (0) target = $region5
  $region4: #{diffusion_unet_forward.13} parent=0 // pred_region
    _
  $region5: #{diffusion_unet_forward.13} parent=0 // pred_fallthru
    _
  // Predicated region
  $region6: #{diffusion_unet_forward.13} parent=0 // pred_check
    _
  $region7: #{diffusion_unet_forward.13} parent=0 // pred_check_branch
    %13 = sbr.rel (0) target = $region9
  $region8: #{diffusion_unet_forward.13} parent=0 // pred_region
    _
  $region9: #{diffusion_unet_forward.13} parent=0 // pred_fallthru
    _
  // Predicated region
  $region10: #{diffusion_unet_forward.13} parent=0 // pred_check
    _
  $region11: #{diffusion_unet_forward.13} parent=0 // pred_check_branch
    %15 = sbr.rel (0) target = $region13
  $region12: #{diffusion_unet_forward.13} parent=0 // pred_region
    _
  $region13: #{diffusion_unet_forward.13} parent=0 // pred_fallthru
    _
  %p17 = scmp.eq.s32.totalorder 0, 0
  // Predicated region
  $region14: #{diffusion_unet_forward.13} parent=0 // pred_check
    %p18 = pneg %p17
  $region15: #{diffusion_unet_forward.13} parent=0 // pred_check_branch
    %20 = sbr.rel (%p18) target = $region17
  $region16: #{diffusion_unet_forward.13} parent=0 // pred_region
    %v21 = vld [vmem:[#allocation3] sm:$0x1]
    %v23 = vlaneseq
    %v24 = vshrl.u32 %v23, 7
    %v25 = vsub.s32 0, %v24
    %v26 = vrot.slane %v21, %v25
    %vm28 = vcmask 7168
    %29 = vst.msk [vmem:[#allocation2] sm:$0xff] %vm28, %v26
    %30 = vst.msk [vmem:[#allocation2 + $0x8] sm:$0xff] %vm28, %v26
    %31 = vst.msk [vmem:[#allocation2 + $0x10] sm:$0xff] %vm28, %v26
    %32 = vst.msk [vmem:[#allocation2 + $0x18] sm:$0xff] %vm28, %v26
    %33 = vst.msk [vmem:[#allocation2 + $0x20] sm:$0xff] %vm28, %v26
    %34 = vst.msk [vmem:[#allocation2 + $0x28] sm:$0xff] %vm28, %v26
    %35 = vst.msk [vmem:[#allocation2 + $0x30] sm:$0xff] %vm28, %v26
    %36 = vst.msk [vmem:[#allocation2 + $0x38] sm:$0xff] %vm28, %v26
    %37 = vst.msk [vmem:[#allocation2 + $0x40] sm:$0xff] %vm28, %v26
    %38 = vst.msk [vmem:[#allocation2 + $0x48] sm:$0xff] %vm28, %v26
    %39 = vst.msk [vmem:[#allocation2 + $0x50] sm:$0xff] %vm28, %v26
    %40 = vst.msk [vmem:[#allocation2 + $0x58] sm:$0xff] %vm28, %v26
    %41 = vst.msk [vmem:[#allocation2 + $0x60] sm:$0xff] %vm28, %v26
    %42 = vst.msk [vmem:[#allocation2 + $0x68] sm:$0xff] %vm28, %v26
    %43 = vst.msk [vmem:[#allocation2 + $0x70] sm:$0xff] %vm28, %v26
    %44 = vst.msk [vmem:[#allocation2 + $0x78] sm:$0xff] %vm28, %v26
    %45 = vst.msk [vmem:[#allocation2 + $0x80] sm:$0xff] %vm28, %v26
    %46 = vst.msk [vmem:[#allocation2 + $0x88] sm:$0xff] %vm28, %v26
    %47 = vst.msk [vmem:[#allocation2 + $0x90] sm:$0xff] %vm28, %v26
    %48 = vst.msk [vmem:[#allocation2 + $0x98] sm:$0xff] %vm28, %v26
    %49 = vst.msk [vmem:[#allocation2 + $0xa0] sm:$0xff] %vm28, %v26
    %50 = vst.msk [vmem:[#allocation2 + $0xa8] sm:$0xff] %vm28, %v26
    %51 = vst.msk [vmem:[#allocation2 + $0xb0] sm:$0xff] %vm28, %v26
    %52 = vst.msk [vmem:[#allocation2 + $0xb8] sm:$0xff] %vm28, %v26
    %53 = vst.msk [vmem:[#allocation2 + $0xc0] sm:$0xff] %vm28, %v26
    %54 = vst.msk [vmem:[#allocation2 + $0xc8] sm:$0xff] %vm28, %v26
    %55 = vst.msk [vmem:[#allocation2 + $0xd0] sm:$0xff] %vm28, %v26
    %56 = vst.msk [vmem:[#allocation2 + $0xd8] sm:$0xff] %vm28, %v26
    %57 = vst.msk [vmem:[#allocation2 + $0xe0] sm:$0xff] %vm28, %v26
    %58 = vst.msk [vmem:[#allocation2 + $0xe8] sm:$0xff] %vm28, %v26
    %59 = vst.msk [vmem:[#allocation2 + $0xf0] sm:$0xff] %vm28, %v26
    %60 = vst.msk [vmem:[#allocation2 + $0xf8] sm:$0xff] %vm28, %v26
    %61 = vst.msk [vmem:[#allocation2 + $0x100] sm:$0xff] %vm28, %v26
    %62 = vst.msk [vmem:[#allocation2 + $0x108] sm:$0xff] %vm28, %v26
    %63 = vst.msk [vmem:[#allocation2 + $0x110] sm:$0xff] %vm28, %v26
    %64 = vst.msk [vmem:[#allocation2 + $0x118] sm:$0xff] %vm28, %v26
    %65 = vst.msk [vmem:[#allocation2 + $0x120] sm:$0xff] %vm28, %v26
    %66 = vst.msk [vmem:[#allocation2 + $0x128] sm:$0xff] %vm28, %v26
    %67 = vst.msk [vmem:[#allocation2 + $0x130] sm:$0xff] %vm28, %v26
    %68 = vst.msk [vmem:[#allocation2 + $0x138] sm:$0xff] %vm28, %v26
    %69 = vst.msk [vmem:[#allocation2 + $0x140] sm:$0xff] %vm28, %v26
    %70 = vst.msk [vmem:[#allocation2 + $0x148] sm:$0xff] %vm28, %v26
    %71 = vst.msk [vmem:[#allocation2 + $0x150] sm:$0xff] %vm28, %v26
    %72 = vst.msk [vmem:[#allocation2 + $0x158] sm:$0xff] %vm28, %v26
    %73 = vst.msk [vmem:[#allocation2 + $0x160] sm:$0xff] %vm28, %v26
    %74 = vst.msk [vmem:[#allocation2 + $0x168] sm:$0xff] %vm28, %v26
    %75 = vst.msk [vmem:[#allocation2 + $0x170] sm:$0xff] %vm28, %v26
    %76 = vst.msk [vmem:[#allocation2 + $0x178] sm:$0xff] %vm28, %v26
    %77 = vst.msk [vmem:[#allocation2 + $0x180] sm:$0xff] %vm28, %v26
    %78 = vst.msk [vmem:[#allocation2 + $0x188] sm:$0xff] %vm28, %v26
    %79 = vst.msk [vmem:[#allocation2 + $0x190] sm:$0xff] %vm28, %v26
    %80 = vst.msk [vmem:[#allocation2 + $0x198] sm:$0xff] %vm28, %v26
    %81 = vst.msk [vmem:[#allocation2 + $0x1a0] sm:$0xff] %vm28, %v26
    %82 = vst.msk [vmem:[#allocation2 + $0x1a8] sm:$0xff] %vm28, %v26
    %83 = vst.msk [vmem:[#allocation2 + $0x1b0] sm:$0xff] %vm28, %v26
    %84 = vst.msk [vmem:[#allocation2 + $0x1b8] sm:$0xff] %vm28, %v26
    %85 = vst.msk [vmem:[#allocation2 + $0x1c0] sm:$0xff] %vm28, %v26
    %86 = vst.msk [vmem:[#allocation2 + $0x1c8] sm:$0xff] %vm28, %v26
    %87 = vst.msk [vmem:[#allocation2 + $0x1d0] sm:$0xff] %vm28, %v26
    %88 = vst.msk [vmem:[#allocation2 + $0x1d8] sm:$0xff] %vm28, %v26
    %89 = vst.msk [vmem:[#allocation2 + $0x1e0] sm:$0xff] %vm28, %v26
    %90 = vst.msk [vmem:[#allocation2 + $0x1e8] sm:$0xff] %vm28, %v26
    %91 = vst.msk [vmem:[#allocation2 + $0x1f0] sm:$0xff] %vm28, %v26
    %92 = vst.msk [vmem:[#allocation2 + $0x1f8] sm:$0xff] %vm28, %v26
  $region17: #{diffusion_unet_forward.13} parent=0 // pred_fallthru
    _
  %v93 = vld [vmem:[#allocation2] sm:$0xff]
  %v94 = vld [vmem:[#allocation2 + $0x8] sm:$0xff]
  %v95 = vld [vmem:[#allocation2 + $0x10] sm:$0xff]
  %v96 = vld [vmem:[#allocation2 + $0x18] sm:$0xff]
  %v97 = vld [vmem:[#allocation2 + $0x20] sm:$0xff]
  %v98 = vld [vmem:[#allocation2 + $0x28] sm:$0xff]
  %v99 = vld [vmem:[#allocation2 + $0x30] sm:$0xff]
  %v100 = vld [vmem:[#allocation2 + $0x38] sm:$0xff]
  %v101 = vld [vmem:[#allocation2 + $0x40] sm:$0xff]
  %v102 = vld [vmem:[#allocation2 + $0x48] sm:$0xff]
  %v103 = vld [vmem:[#allocation2 + $0x50] sm:$0xff]
  %v104 = vld [vmem:[#allocation2 + $0x58] sm:$0xff]
  %v105 = vld [vmem:[#allocation2 + $0x60] sm:$0xff]
  %v106 = vld [vmem:[#allocation2 + $0x68] sm:$0xff]
  %v107 = vld [vmem:[#allocation2 + $0x70] sm:$0xff]
  %v108 = vld [vmem:[#allocation2 + $0x78] sm:$0xff]
  %v109 = vld [vmem:[#allocation2 + $0x80] sm:$0xff]
  %v110 = vld [vmem:[#allocation2 + $0x88] sm:$0xff]
  %v111 = vld [vmem:[#allocation2 + $0x90] sm:$0xff]
  %v112 = vld [vmem:[#allocation2 + $0x98] sm:$0xff]
  %v113 = vld [vmem:[#allocation2 + $0xa0] sm:$0xff]
  %v114 = vld [vmem:[#allocation2 + $0xa8] sm:$0xff]
  %v115 = vld [vmem:[#allocation2 + $0xb0] sm:$0xff]
  %v116 = vld [vmem:[#allocation2 + $0xb8] sm:$0xff]
  %v117 = vld [vmem:[#allocation2 + $0xc0] sm:$0xff]
  %v118 = vld [vmem:[#allocation2 + $0xc8] sm:$0xff]
  %v119 = vld [vmem:[#allocation2 + $0xd0] sm:$0xff]
  %v120 = vld [vmem:[#allocation2 + $0xd8] sm:$0xff]
  %v121 = vld [vmem:[#allocation2 + $0xe0] sm:$0xff]
  %v122 = vld [vmem:[#allocation2 + $0xe8] sm:$0xff]
  %v123 = vld [vmem:[#allocation2 + $0xf0] sm:$0xff]
  %v124 = vld [vmem:[#allocation2 + $0xf8] sm:$0xff]
  %v125 = vld [vmem:[#allocation2 + $0x100] sm:$0xff]
  %v126 = vld [vmem:[#allocation2 + $0x108] sm:$0xff]
  %v127 = vld [vmem:[#allocation2 + $0x110] sm:$0xff]
  %v128 = vld [vmem:[#allocation2 + $0x118] sm:$0xff]
  %v129 = vld [vmem:[#allocation2 + $0x120] sm:$0xff]
  %v130 = vld [vmem:[#allocation2 + $0x128] sm:$0xff]
  %v131 = vld [vmem:[#allocation2 + $0x130] sm:$0xff]
  %v132 = vld [vmem:[#allocation2 + $0x138] sm:$0xff]
  %v133 = vld [vmem:[#allocation2 + $0x140] sm:$0xff]
  %v134 = vld [vmem:[#allocation2 + $0x148] sm:$0xff]
  %v135 = vld [vmem:[#allocation2 + $0x150] sm:$0xff]
  %v136 = vld [vmem:[#allocation2 + $0x158] sm:$0xff]
  %v137 = vld [vmem:[#allocation2 + $0x160] sm:$0xff]
  %v138 = vld [vmem:[#allocation2 + $0x168] sm:$0xff]
  %v139 = vld [vmem:[#allocation2 + $0x170] sm:$0xff]
  %v140 = vld [vmem:[#allocation2 + $0x178] sm:$0xff]
  %v141 = vld [vmem:[#allocation2 + $0x180] sm:$0xff]
  %v142 = vld [vmem:[#allocation2 + $0x188] sm:$0xff]
  %v143 = vld [vmem:[#allocation2 + $0x190] sm:$0xff]
  %v144 = vld [vmem:[#allocation2 + $0x198] sm:$0xff]
  %v145 = vld [vmem:[#allocation2 + $0x1a0] sm:$0xff]
  %v146 = vld [vmem:[#allocation2 + $0x1a8] sm:$0xff]
  %v147 = vld [vmem:[#allocation2 + $0x1b0] sm:$0xff]
  %v148 = vld [vmem:[#allocation2 + $0x1b8] sm:$0xff]
  %v149 = vld [vmem:[#allocation2 + $0x1c0] sm:$0xff]
  %v150 = vld [vmem:[#allocation2 + $0x1c8] sm:$0xff]
  %v151 = vld [vmem:[#allocation2 + $0x1d0] sm:$0xff]
  %v152 = vld [vmem:[#allocation2 + $0x1d8] sm:$0xff]
  %v153 = vld [vmem:[#allocation2 + $0x1e0] sm:$0xff]
  %v154 = vld [vmem:[#allocation2 + $0x1e8] sm:$0xff]
  %v155 = vld [vmem:[#allocation2 + $0x1f0] sm:$0xff]
  %v156 = vld [vmem:[#allocation2 + $0x1f8] sm:$0xff]
  %v157 = vld [vmem:[%s0] sm:$0xff]
  %v158 = vld [vmem:[%s0 + $0x8] sm:$0xff]
  %v159 = vld [vmem:[%s0 + $0x10] sm:$0xff]
  %v160 = vld [vmem:[%s0 + $0x18] sm:$0xff]
  %v161 = vld [vmem:[%s0 + $0x20] sm:$0xff]
  %v162 = vld [vmem:[%s0 + $0x28] sm:$0xff]
  %v163 = vld [vmem:[%s0 + $0x30] sm:$0xff]
  %v164 = vld [vmem:[%s0 + $0x38] sm:$0xff]
  %v165 = vld [vmem:[%s0 + $0x40] sm:$0xff]
  %v166 = vld [vmem:[%s0 + $0x48] sm:$0xff]
  %v167 = vld [vmem:[%s0 + $0x50] sm:$0xff]
  %v168 = vld [vmem:[%s0 + $0x58] sm:$0xff]
  %v169 = vld [vmem:[%s0 + $0x60] sm:$0xff]
  %v170 = vld [vmem:[%s0 + $0x68] sm:$0xff]
  %v171 = vld [vmem:[%s0 + $0x70] sm:$0xff]
  %v172 = vld [vmem:[%s0 + $0x78] sm:$0xff]
  %v173 = vld [vmem:[%s0 + $0x80] sm:$0xff]
  %v174 = vld [vmem:[%s0 + $0x88] sm:$0xff]
  %v175 = vld [vmem:[%s0 + $0x90] sm:$0xff]
  %v176 = vld [vmem:[%s0 + $0x98] sm:$0xff]
  %v177 = vld [vmem:[%s0 + $0xa0] sm:$0xff]
  %v178 = vld [vmem:[%s0 + $0xa8] sm:$0xff]
  %v179 = vld [vmem:[%s0 + $0xb0] sm:$0xff]
  %v180 = vld [vmem:[%s0 + $0xb8] sm:$0xff]
  %v181 = vld [vmem:[%s0 + $0xc0] sm:$0xff]
  %v182 = vld [vmem:[%s0 + $0xc8] sm:$0xff]
  %v183 = vld [vmem:[%s0 + $0xd0] sm:$0xff]
  %v184 = vld [vmem:[%s0 + $0xd8] sm:$0xff]
  %v185 = vld [vmem:[%s0 + $0xe0] sm:$0xff]
  %v186 = vld [vmem:[%s0 + $0xe8] sm:$0xff]
  %v187 = vld [vmem:[%s0 + $0xf0] sm:$0xff]
  %v188 = vld [vmem:[%s0 + $0xf8] sm:$0xff]
  %v189 = vld [vmem:[%s0 + $0x100] sm:$0xff]
  %v190 = vld [vmem:[%s0 + $0x108] sm:$0xff]
  %v191 = vld [vmem:[%s0 + $0x110] sm:$0xff]
  %v192 = vld [vmem:[%s0 + $0x118] sm:$0xff]
  %v193 = vld [vmem:[%s0 + $0x120] sm:$0xff]
  %v194 = vld [vmem:[%s0 + $0x128] sm:$0xff]
  %v195 = vld [vmem:[%s0 + $0x130] sm:$0xff]
  %v196 = vld [vmem:[%s0 + $0x138] sm:$0xff]
  %v197 = vld [vmem:[%s0 + $0x140] sm:$0xff]
  %v198 = vld [vmem:[%s0 + $0x148] sm:$0xff]
  %v199 = vld [vmem:[%s0 + $0x150] sm:$0xff]
  %v200 = vld [vmem:[%s0 + $0x158] sm:$0xff]
  %v201 = vld [vmem:[%s0 + $0x160] sm:$0xff]
  %v202 = vld [vmem:[%s0 + $0x168] sm:$0xff]
  %v203 = vld [vmem:[%s0 + $0x170] sm:$0xff]
  %v204 = vld [vmem:[%s0 + $0x178] sm:$0xff]
  %v205 = vld [vmem:[%s0 + $0x180] sm:$0xff]
  %v206 = vld [vmem:[%s0 + $0x188] sm:$0xff]
  %v207 = vld [vmem:[%s0 + $0x190] sm:$0xff]
  %v208 = vld [vmem:[%s0 + $0x198] sm:$0xff]
  %v209 = vld [vmem:[%s0 + $0x1a0] sm:$0xff]
  %v210 = vld [vmem:[%s0 + $0x1a8] sm:$0xff]
  %v211 = vld [vmem:[%s0 + $0x1b0] sm:$0xff]
  %v212 = vld [vmem:[%s0 + $0x1b8] sm:$0xff]
  %v213 = vld [vmem:[%s0 + $0x1c0] sm:$0xff]
  %v214 = vld [vmem:[%s0 + $0x1c8] sm:$0xff]
  %v215 = vld [vmem:[%s0 + $0x1d0] sm:$0xff]
  %v216 = vld [vmem:[%s0 + $0x1d8] sm:$0xff]
  %v217 = vld [vmem:[%s0 + $0x1e0] sm:$0xff]
  %v218 = vld [vmem:[%s0 + $0x1e8] sm:$0xff]
  %v219 = vld [vmem:[%s0 + $0x1f0] sm:$0xff]
  %v220 = vld [vmem:[%s0 + $0x1f8] sm:$0xff]
  %v221 = vld [vmem:[%s1] sm:$0xf]
  %v222 = vld [vmem:[%s1 + $0x4] sm:$0xf]
  %v223 = vld [vmem:[%s1 + $0x8] sm:$0xf]
  %v224 = vld [vmem:[%s1 + $0xc] sm:$0xf]
  %v225 = vld [vmem:[%s1 + $0x10] sm:$0xf]
  %v226 = vld [vmem:[%s1 + $0x14] sm:$0xf]
  %v227 = vld [vmem:[%s1 + $0x18] sm:$0xf]
  %v228 = vld [vmem:[%s1 + $0x1c] sm:$0xf]
  %v229 = vld [vmem:[%s1 + $0x20] sm:$0xf]
  %v230 = vld [vmem:[%s1 + $0x24] sm:$0xf]
  %v231 = vld [vmem:[%s1 + $0x28] sm:$0xf]
  %v232 = vld [vmem:[%s1 + $0x2c] sm:$0xf]
  %v233 = vld [vmem:[%s1 + $0x30] sm:$0xf]
  %v234 = vld [vmem:[%s1 + $0x34] sm:$0xf]
  %v235 = vld [vmem:[%s1 + $0x38] sm:$0xf]
  %v236 = vld [vmem:[%s1 + $0x3c] sm:$0xf]
  %v237 = vld [vmem:[%s1 + $0x40] sm:$0xf]
  %v238 = vld [vmem:[%s1 + $0x44] sm:$0xf]
  %v303 = vunpack.c.l.b16 %v157
  %v304 = vunpack.c.h.b16 %v157
  %v305 = vunpack.c.l.b16 %v158
  %v306 = vunpack.c.h.b16 %v158
  %v307 = vunpack.c.l.b16 %v159
  %v308 = vunpack.c.h.b16 %v159
  %v309 = vunpack.c.l.b16 %v160
  %v310 = vunpack.c.h.b16 %v160
  %v311 = vunpack.c.l.b16 %v161
  %v312 = vunpack.c.h.b16 %v161
  %v313 = vunpack.c.l.b16 %v162
  %v314 = vunpack.c.h.b16 %v162
  %v315 = vunpack.c.l.b16 %v163
  %v316 = vunpack.c.h.b16 %v163
  %v317 = vunpack.c.l.b16 %v164
  %v318 = vunpack.c.h.b16 %v164
  %v319 = vunpack.c.l.b16 %v165
  %v320 = vunpack.c.h.b16 %v165
  %v321 = vunpack.c.l.b16 %v166
  %v322 = vunpack.c.h.b16 %v166
  %v323 = vunpack.c.l.b16 %v167
  %v324 = vunpack.c.h.b16 %v167
  %v325 = vunpack.c.l.b16 %v168
  %v326 = vunpack.c.h.b16 %v168
  %v327 = vunpack.c.l.b16 %v169
  %v328 = vunpack.c.h.b16 %v169
  %v329 = vunpack.c.l.b16 %v170
  %v330 = vunpack.c.h.b16 %v170
  %v331 = vunpack.c.l.b16 %v171
  %v332 = vunpack.c.h.b16 %v171
  %v333 = vunpack.c.l.b16 %v172
  %v334 = vunpack.c.h.b16 %v172
  %v335 = vunpack.c.l.b16 %v173
  %v336 = vunpack.c.h.b16 %v173
  %v337 = vunpack.c.l.b16 %v174
  %v338 = vunpack.c.h.b16 %v174
  %v339 = vunpack.c.l.b16 %v175
  %v340 = vunpack.c.h.b16 %v175
  %v341 = vunpack.c.l.b16 %v176
  %v342 = vunpack.c.h.b16 %v176
  %v343 = vunpack.c.l.b16 %v177
  %v344 = vunpack.c.h.b16 %v177
  %v345 = vunpack.c.l.b16 %v178
  %v346 = vunpack.c.h.b16 %v178
  %v347 = vunpack.c.l.b16 %v179
  %v348 = vunpack.c.h.b16 %v179
  %v349 = vunpack.c.l.b16 %v180
  %v350 = vunpack.c.h.b16 %v180
  %v351 = vunpack.c.l.b16 %v181
  %v352 = vunpack.c.h.b16 %v181
  %v353 = vunpack.c.l.b16 %v182
  %v354 = vunpack.c.h.b16 %v182
  %v355 = vunpack.c.l.b16 %v183
  %v356 = vunpack.c.h.b16 %v183
  %v357 = vunpack.c.l.b16 %v184
  %v358 = vunpack.c.h.b16 %v184
  %v359 = vunpack.c.l.b16 %v185
  %v360 = vunpack.c.h.b16 %v185
  %v361 = vunpack.c.l.b16 %v186
  %v362 = vunpack.c.h.b16 %v186
  %v363 = vunpack.c.l.b16 %v187
  %v364 = vunpack.c.h.b16 %v187
  %v365 = vunpack.c.l.b16 %v188
  %v366 = vunpack.c.h.b16 %v188
  %v367 = vunpack.c.l.b16 %v189
  %v368 = vunpack.c.h.b16 %v189
  %v369 = vunpack.c.l.b16 %v190
  %v370 = vunpack.c.h.b16 %v190
  %v371 = vunpack.c.l.b16 %v191
  %v372 = vunpack.c.h.b16 %v191
  %v373 = vunpack.c.l.b16 %v192
  %v374 = vunpack.c.h.b16 %v192
  %v375 = vunpack.c.l.b16 %v193
  %v376 = vunpack.c.h.b16 %v193
  %v377 = vunpack.c.l.b16 %v194
  %v378 = vunpack.c.h.b16 %v194
  %v379 = vunpack.c.l.b16 %v195
  %v380 = vunpack.c.h.b16 %v195
  %v381 = vunpack.c.l.b16 %v196
  %v382 = vunpack.c.h.b16 %v196
  %v383 = vunpack.c.l.b16 %v197
  %v384 = vunpack.c.h.b16 %v197
  %v385 = vunpack.c.l.b16 %v198
  %v386 = vunpack.c.h.b16 %v198
  %v387 = vunpack.c.l.b16 %v199
  %v388 = vunpack.c.h.b16 %v199
  %v389 = vunpack.c.l.b16 %v200
  %v390 = vunpack.c.h.b16 %v200
  %v391 = vunpack.c.l.b16 %v201
  %v392 = vunpack.c.h.b16 %v201
  %v393 = vunpack.c.l.b16 %v202
  %v394 = vunpack.c.h.b16 %v202
  %v395 = vunpack.c.l.b16 %v203
  %v396 = vunpack.c.h.b16 %v203
  %v397 = vunpack.c.l.b16 %v204
  %v398 = vunpack.c.h.b16 %v204
  %v399 = vunpack.c.l.b16 %v205
  %v400 = vunpack.c.h.b16 %v205
  %v401 = vunpack.c.l.b16 %v206
  %v402 = vunpack.c.h.b16 %v206
  %v403 = vunpack.c.l.b16 %v207
  %v404 = vunpack.c.h.b16 %v207
  %v405 = vunpack.c.l.b16 %v208
  %v406 = vunpack.c.h.b16 %v208
  %v407 = vunpack.c.l.b16 %v209
  %v408 = vunpack.c.h.b16 %v209
  %v409 = vunpack.c.l.b16 %v210
  %v410 = vunpack.c.h.b16 %v210
  %v411 = vunpack.c.l.b16 %v211
  %v412 = vunpack.c.h.b16 %v211
  %v413 = vunpack.c.l.b16 %v212
  %v414 = vunpack.c.h.b16 %v212
  %v415 = vunpack.c.l.b16 %v213
  %v416 = vunpack.c.h.b16 %v213
  %v417 = vunpack.c.l.b16 %v214
  %v418 = vunpack.c.h.b16 %v214
  %v419 = vunpack.c.l.b16 %v215
  %v420 = vunpack.c.h.b16 %v215
  %v421 = vunpack.c.l.b16 %v216
  %v422 = vunpack.c.h.b16 %v216
  %v423 = vunpack.c.l.b16 %v217
  %v424 = vunpack.c.h.b16 %v217
  %v425 = vunpack.c.l.b16 %v218
  %v426 = vunpack.c.h.b16 %v218
  %v427 = vunpack.c.l.b16 %v219
  %v428 = vunpack.c.h.b16 %v219
  %v429 = vunpack.c.l.b16 %v220
  %v430 = vunpack.c.h.b16 %v220
  %v431 = vpack.c.b16 %v305, %v303
  %v432 = vpack.c.b16 %v306, %v304
  %v433 = vpack.c.b16 %v309, %v307
  %v434 = vpack.c.b16 %v310, %v308
  %v435 = vpack.c.b16 %v313, %v311
  %v436 = vpack.c.b16 %v314, %v312
  %v437 = vpack.c.b16 %v317, %v315
  %v438 = vpack.c.b16 %v318, %v316
  %v439 = vpack.c.b16 %v321, %v319
  %v440 = vpack.c.b16 %v322, %v320
  %v441 = vpack.c.b16 %v325, %v323
  %v442 = vpack.c.b16 %v326, %v324
  %v443 = vpack.c.b16 %v329, %v327
  %v444 = vpack.c.b16 %v330, %v328
  %v445 = vpack.c.b16 %v333, %v331
  %v446 = vpack.c.b16 %v334, %v332
  %v447 = vpack.c.b16 %v337, %v335
  %v448 = vpack.c.b16 %v338, %v336
  %v449 = vpack.c.b16 %v341, %v339
  %v450 = vpack.c.b16 %v342, %v340
  %v451 = vpack.c.b16 %v345, %v343
  %v452 = vpack.c.b16 %v346, %v344
  %v453 = vpack.c.b16 %v349, %v347
  %v454 = vpack.c.b16 %v350, %v348
  %v455 = vpack.c.b16 %v353, %v351
  %v456 = vpack.c.b16 %v354, %v352
  %v457 = vpack.c.b16 %v357, %v355
  %v458 = vpack.c.b16 %v358, %v356
  %v459 = vpack.c.b16 %v361, %v359
  %v460 = vpack.c.b16 %v362, %v360
  %v461 = vpack.c.b16 %v365, %v363
  %v462 = vpack.c.b16 %v366, %v364
  %v463 = vpack.c.b16 %v369, %v367
  %v464 = vpack.c.b16 %v370, %v368
  %v465 = vpack.c.b16 %v373, %v371
  %v466 = vpack.c.b16 %v374, %v372
  %v467 = vpack.c.b16 %v377, %v375
  %v468 = vpack.c.b16 %v378, %v376
  %v469 = vpack.c.b16 %v381, %v379
  %v470 = vpack.c.b16 %v382, %v380
  %v471 = vpack.c.b16 %v385, %v383
  %v472 = vpack.c.b16 %v386, %v384
  %v473 = vpack.c.b16 %v389, %v387
  %v474 = vpack.c.b16 %v390, %v388
  %v475 = vpack.c.b16 %v393, %v391
  %v476 = vpack.c.b16 %v394, %v392
  %v477 = vpack.c.b16 %v397, %v395
  %v478 = vpack.c.b16 %v398, %v396
  %v479 = vpack.c.b16 %v401, %v399
  %v480 = vpack.c.b16 %v402, %v400
  %v481 = vpack.c.b16 %v405, %v403
  %v482 = vpack.c.b16 %v406, %v404
  %v483 = vpack.c.b16 %v409, %v407
  %v484 = vpack.c.b16 %v410, %v408
  %v485 = vpack.c.b16 %v413, %v411
  %v486 = vpack.c.b16 %v414, %v412
  %v487 = vpack.c.b16 %v417, %v415
  %v488 = vpack.c.b16 %v418, %v416
  %v489 = vpack.c.b16 %v421, %v419
  %v490 = vpack.c.b16 %v422, %v420
  %v491 = vpack.c.b16 %v425, %v423
  %v492 = vpack.c.b16 %v426, %v424
  %v493 = vpack.c.b16 %v429, %v427
  %v494 = vpack.c.b16 %v430, %v428
  %v545 = vunpack.c.l.b16 %v221
  %v546 = vunpack.c.l.b16 %v222
  %v547 = vunpack.c.l.b16 %v223
  %v548 = vunpack.c.l.b16 %v224
  %v549 = vunpack.c.l.b16 %v225
  %v550 = vunpack.c.l.b16 %v226
  %v551 = vunpack.c.l.b16 %v227
  %v552 = vunpack.c.l.b16 %v228
  %v553 = vunpack.c.l.b16 %v229
  %v554 = vunpack.c.l.b16 %v230
  %v555 = vunpack.c.l.b16 %v231
  %v556 = vunpack.c.l.b16 %v232
  %v557 = vunpack.c.l.b16 %v233
  %v558 = vunpack.c.l.b16 %v234
  %v559 = vunpack.c.l.b16 %v235
  %v560 = vunpack.c.l.b16 %v236
  %v561 = vunpack.c.l.b16 %v237
  %v562 = vunpack.c.l.b16 %v238
  %v563 = vpack.c.b16 %v546, %v545
  %v564 = vpack.c.b16 %v548, %v547
  %v565 = vpack.c.b16 %v550, %v549
  %v566 = vpack.c.b16 %v552, %v551
  %v567 = vpack.c.b16 %v554, %v553
  %v568 = vpack.c.b16 %v556, %v555
  %v569 = vpack.c.b16 %v558, %v557
  %v570 = vpack.c.b16 %v560, %v559
  %v571 = vpack.c.b16 %v562, %v561
  %vm581 = vcmask 130048
  %v583 = vsel %vm581, %v432, 0
  %v586 = vsel %vm581, %v434, 0
  %v589 = vsel %vm581, %v436, 0
  %v592 = vsel %vm581, %v438, 0
  %v595 = vsel %vm581, %v440, 0
  %v598 = vsel %vm581, %v442, 0
  %v601 = vsel %vm581, %v444, 0
  %v604 = vsel %vm581, %v446, 0
  %v607 = vsel %vm581, %v448, 0
  %v610 = vsel %vm581, %v450, 0
  %v613 = vsel %vm581, %v452, 0
  %v616 = vsel %vm581, %v454, 0
  %v619 = vsel %vm581, %v456, 0
  %v622 = vsel %vm581, %v458, 0
  %v625 = vsel %vm581, %v460, 0
  %v628 = vsel %vm581, %v462, 0
  %v631 = vsel %vm581, %v464, 0
  %v634 = vsel %vm581, %v466, 0
  %v637 = vsel %vm581, %v468, 0
  %v640 = vsel %vm581, %v470, 0
  %v643 = vsel %vm581, %v472, 0
  %v646 = vsel %vm581, %v474, 0
  %v649 = vsel %vm581, %v476, 0
  %v652 = vsel %vm581, %v478, 0
  %v655 = vsel %vm581, %v480, 0
  %v658 = vsel %vm581, %v482, 0
  %v661 = vsel %vm581, %v484, 0
  %v664 = vsel %vm581, %v486, 0
  %v667 = vsel %vm581, %v488, 0
  %v670 = vsel %vm581, %v490, 0
  %v673 = vsel %vm581, %v492, 0
  %v676 = vsel %vm581, %v494, 0
  %678 = vmatprep.subr.bf16.mxu0 0
  %679 = vmatpush1.bf16.msra.mxu0 %v563
  %680 = vmatprep.subr.bf16.mxu0 0
  %681 = vmatpush1.bf16.msra.mxu0 %v564
  %682 = vmatprep.subr.bf16.mxu0 0
  %683 = vmatpush1.bf16.msra.mxu0 %v565
  %684 = vmatprep.subr.bf16.mxu0 0
  %685 = vmatpush1.bf16.msra.mxu0 %v566
  %686 = vmatprep.subr.bf16.mxu0 0
  %687 = vmatpush1.bf16.msra.mxu0 %v567
  %688 = vmatprep.subr.bf16.mxu0 0
  %689 = vmatpush1.bf16.msra.mxu0 %v568
  %690 = vmatprep.subr.bf16.mxu0 0
  %691 = vmatpush1.bf16.msra.mxu0 %v569
  %692 = vmatprep.subr.bf16.mxu0 0
  %693 = vmatpush1.bf16.msra.mxu0 %v570
  %694 = vmatprep.subr.bf16.mxu0 0
  %695 = vmatpush1.bf16.msra.mxu0 %v571
  %696 = vmatprep.subr.bf16.mxu0 0
  %697 = vmatpush1.bf16.msra.mxu0 0
  %698 = vmatprep.subr.bf16.mxu0 0
  %699 = vmatpush1.bf16.msra.mxu0 0
  %700 = vmatprep.subr.bf16.mxu0 0
  %701 = vmatpush1.bf16.msra.mxu0 0
  %702 = vmatprep.subr.bf16.mxu0 0
  %703 = vmatpush1.bf16.msra.mxu0 0
  %704 = vmatprep.subr.bf16.mxu0 0
  %705 = vmatpush1.bf16.msra.mxu0 0
  %706 = vmatprep.subr.bf16.mxu0 0
  %707 = vmatpush1.bf16.msra.mxu0 0
  %708 = vmatprep.subr.bf16.mxu0 0
  %709 = vmatpush1.bf16.msra.mxu0 0
  %710 = vmatprep.mubr.bf16.mxu0 %v583
  %711 = vmatmul.mubr.bf16.gmra.mrb[0].mxu0 %v431
  %v712 = vpop.f32.mrb[0].mxu0
  %v713 = vadd.f32 0.0, %v712
  %v714 = vpop.f32.mrb[0].mxu0
  %v715 = vpop.f32.mrb[0].mxu0
  %v716 = vadd.f32 0.0, %v715
  %v717 = vpop.f32.mrb[0].mxu0
  %718 = vmatprep.mubr.bf16.mxu0 %v586
  %719 = vmatmul.mubr.bf16.gmra.mrb[0].mxu0 %v433
  %v720 = vpop.f32.mrb[0].mxu0
  %v721 = vadd.f32 0.0, %v720
  %v722 = vpop.f32.mrb[0].mxu0
  %v723 = vpop.f32.mrb[0].mxu0
  %v724 = vadd.f32 0.0, %v723
  %v725 = vpop.f32.mrb[0].mxu0
  %726 = vmatprep.mubr.bf16.mxu0 %v589
  %727 = vmatmul.mubr.bf16.gmra.mrb[0].mxu0 %v435
  %v728 = vpop.f32.mrb[0].mxu0
  %v729 = vadd.f32 0.0, %v728
  %v730 = vpop.f32.mrb[0].mxu0
  %v731 = vpop.f32.mrb[0].mxu0
  %v732 = vadd.f32 0.0, %v731
  %v733 = vpop.f32.mrb[0].mxu0
  %734 = vmatprep.mubr.bf16.mxu0 %v592
  %735 = vmatmul.mubr.bf16.gmra.mrb[0].mxu0 %v437
  %v736 = vpop.f32.mrb[0].mxu0
  %v737 = vadd.f32 0.0, %v736
  %v738 = vpop.f32.mrb[0].mxu0
  %v739 = vpop.f32.mrb[0].mxu0
  %v740 = vadd.f32 0.0, %v739
  %v741 = vpop.f32.mrb[0].mxu0
  %742 = vmatprep.mubr.bf16.mxu0 %v595
  %743 = vmatmul.mubr.bf16.gmra.mrb[0].mxu0 %v439
  %v744 = vpop.f32.mrb[0].mxu0
  %v745 = vadd.f32 0.0, %v744
  %v746 = vpop.f32.mrb[0].mxu0
  %v747 = vpop.f32.mrb[0].mxu0
  %v748 = vadd.f32 0.0, %v747
  %v749 = vpop.f32.mrb[0].mxu0
  %750 = vmatprep.mubr.bf16.mxu0 %v598
  %751 = vmatmul.mubr.bf16.gmra.mrb[0].mxu0 %v441
  %v752 = vpop.f32.mrb[0].mxu0
  %v753 = vadd.f32 0.0, %v752
  %v754 = vpop.f32.mrb[0].mxu0
  %v755 = vpop.f32.mrb[0].mxu0
  %v756 = vadd.f32 0.0, %v755
  %v757 = vpop.f32.mrb[0].mxu0
  %758 = vmatprep.mubr.bf16.mxu0 %v601
  %759 = vmatmul.mubr.bf16.gmra.mrb[0].mxu0 %v443
  %v760 = vpop.f32.mrb[0].mxu0
  %v761 = vadd.f32 0.0, %v760
  %v762 = vpop.f32.mrb[0].mxu0
  %v763 = vpop.f32.mrb[0].mxu0
  %v764 = vadd.f32 0.0, %v763
  %v765 = vpop.f32.mrb[0].mxu0
  %766 = vmatprep.mubr.bf16.mxu0 %v604
  %767 = vmatmul.mubr.bf16.gmra.mrb[0].mxu0 %v445
  %v768 = vpop.f32.mrb[0].mxu0
  %v769 = vadd.f32 0.0, %v768
  %v770 = vpop.f32.mrb[0].mxu0
  %v771 = vpop.f32.mrb[0].mxu0
  %v772 = vadd.f32 0.0, %v771
  %v773 = vpop.f32.mrb[0].mxu0
  %774 = vmatprep.mubr.bf16.mxu0 %v607
  %775 = vmatmul.mubr.bf16.gmra.mrb[0].mxu0 %v447
  %v776 = vpop.f32.mrb[0].mxu0
  %v777 = vadd.f32 0.0, %v776
  %v778 = vpop.f32.mrb[0].mxu0
  %v779 = vpop.f32.mrb[0].mxu0
  %v780 = vadd.f32 0.0, %v779
  %v781 = vpop.f32.mrb[0].mxu0
  %782 = vmatprep.mubr.bf16.mxu0 %v610
  %783 = vmatmul.mubr.bf16.gmra.mrb[0].mxu0 %v449
  %v784 = vpop.f32.mrb[0].mxu0
  %v785 = vadd.f32 0.0, %v784
  %v786 = vpop.f32.mrb[0].mxu0
  %v787 = vpop.f32.mrb[0].mxu0
  %v788 = vadd.f32 0.0, %v787
  %v789 = vpop.f32.mrb[0].mxu0
  %790 = vmatprep.mubr.bf16.mxu0 %v613
  %791 = vmatmul.mubr.bf16.gmra.mrb[0].mxu0 %v451
  %v792 = vpop.f32.mrb[0].mxu0
  %v793 = vadd.f32 0.0, %v792
  %v794 = vpop.f32.mrb[0].mxu0
  %v795 = vpop.f32.mrb[0].mxu0
  %v796 = vadd.f32 0.0, %v795
  %v797 = vpop.f32.mrb[0].mxu0
  %798 = vmatprep.mubr.bf16.mxu0 %v616
  %799 = vmatmul.mubr.bf16.gmra.mrb[0].mxu0 %v453
  %v800 = vpop.f32.mrb[0].mxu0
  %v801 = vadd.f32 0.0, %v800
  %v802 = vpop.f32.mrb[0].mxu0
  %v803 = vpop.f32.mrb[0].mxu0
  %v804 = vadd.f32 0.0, %v803
  %v805 = vpop.f32.mrb[0].mxu0
  %806 = vmatprep.mubr.bf16.mxu0 %v619
  %807 = vmatmul.mubr.bf16.gmra.mrb[0].mxu0 %v455
  %v808 = vpop.f32.mrb[0].mxu0
  %v809 = vadd.f32 0.0, %v808
  %v810 = vpop.f32.mrb[0].mxu0
  %v811 = vpop.f32.mrb[0].mxu0
  %v812 = vadd.f32 0.0, %v811
  %v813 = vpop.f32.mrb[0].mxu0
  %814 = vmatprep.mubr.bf16.mxu0 %v622
  %815 = vmatmul.mubr.bf16.gmra.mrb[0].mxu0 %v457
  %v816 = vpop.f32.mrb[0].mxu0
  %v817 = vadd.f32 0.0, %v816
  %v818 = vpop.f32.mrb[0].mxu0
  %v819 = vpop.f32.mrb[0].mxu0
  %v820 = vadd.f32 0.0, %v819
  %v821 = vpop.f32.mrb[0].mxu0
  %822 = vmatprep.mubr.bf16.mxu0 %v625
  %823 = vmatmul.mubr.bf16.gmra.mrb[0].mxu0 %v459
  %v824 = vpop.f32.mrb[0].mxu0
  %v825 = vadd.f32 0.0, %v824
  %v826 = vpop.f32.mrb[0].mxu0
  %v827 = vpop.f32.mrb[0].mxu0
  %v828 = vadd.f32 0.0, %v827
  %v829 = vpop.f32.mrb[0].mxu0
  %830 = vmatprep.mubr.bf16.mxu0 %v628
  %831 = vmatmul.mubr.bf16.gmra.mrb[0].mxu0 %v461
  %v832 = vpop.f32.mrb[0].mxu0
  %v833 = vadd.f32 0.0, %v832
  %v834 = vpop.f32.mrb[0].mxu0
  %v835 = vpop.f32.mrb[0].mxu0
  %v836 = vadd.f32 0.0, %v835
  %v837 = vpop.f32.mrb[0].mxu0
  %838 = vmatprep.mubr.bf16.mxu0 %v631
  %839 = vmatmul.mubr.bf16.gmra.mrb[0].mxu0 %v463
  %v840 = vpop.f32.mrb[0].mxu0
  %v841 = vadd.f32 0.0, %v840
  %v842 = vpop.f32.mrb[0].mxu0
  %v843 = vpop.f32.mrb[0].mxu0
  %v844 = vadd.f32 0.0, %v843
  %v845 = vpop.f32.mrb[0].mxu0
  %846 = vmatprep.mubr.bf16.mxu0 %v634
  %847 = vmatmul.mubr.bf16.gmra.mrb[0].mxu0 %v465
  %v848 = vpop.f32.mrb[0].mxu0
  %v849 = vadd.f32 0.0, %v848
  %v850 = vpop.f32.mrb[0].mxu0
  %v851 = vpop.f32.mrb[0].mxu0
  %v852 = vadd.f32 0.0, %v851
  %v853 = vpop.f32.mrb[0].mxu0
  %854 = vmatprep.mubr.bf16.mxu0 %v637
  %855 = vmatmul.mubr.bf16.gmra.mrb[0].mxu0 %v467
  %v856 = vpop.f32.mrb[0].mxu0
  %v857 = vadd.f32 0.0, %v856
  %v858 = vpop.f32.mrb[0].mxu0
  %v859 = vpop.f32.mrb[0].mxu0
  %v860 = vadd.f32 0.0, %v859
  %v861 = vpop.f32.mrb[0].mxu0
  %862 = vmatprep.mubr.bf16.mxu0 %v640
  %863 = vmatmul.mubr.bf16.gmra.mrb[0].mxu0 %v469
  %v864 = vpop.f32.mrb[0].mxu0
  %v865 = vadd.f32 0.0, %v864
  %v866 = vpop.f32.mrb[0].mxu0
  %v867 = vpop.f32.mrb[0].mxu0
  %v868 = vadd.f32 0.0, %v867
  %v869 = vpop.f32.mrb[0].mxu0
  %870 = vmatprep.mubr.bf16.mxu0 %v643
  %871 = vmatmul.mubr.bf16.gmra.mrb[0].mxu0 %v471
  %v872 = vpop.f32.mrb[0].mxu0
  %v873 = vadd.f32 0.0, %v872
  %v874 = vpop.f32.mrb[0].mxu0
  %v875 = vpop.f32.mrb[0].mxu0
  %v876 = vadd.f32 0.0, %v875
  %v877 = vpop.f32.mrb[0].mxu0
  %878 = vmatprep.mubr.bf16.mxu0 %v646
  %879 = vmatmul.mubr.bf16.gmra.mrb[0].mxu0 %v473
  %v880 = vpop.f32.mrb[0].mxu0
  %v881 = vadd.f32 0.0, %v880
  %v882 = vpop.f32.mrb[0].mxu0
  %v883 = vpop.f32.mrb[0].mxu0
  %v884 = vadd.f32 0.0, %v883
  %v885 = vpop.f32.mrb[0].mxu0
  %886 = vmatprep.mubr.bf16.mxu0 %v649
  %887 = vmatmul.mubr.bf16.gmra.mrb[0].mxu0 %v475
  %v888 = vpop.f32.mrb[0].mxu0
  %v889 = vadd.f32 0.0, %v888
  %v890 = vpop.f32.mrb[0].mxu0
  %v891 = vpop.f32.mrb[0].mxu0
  %v892 = vadd.f32 0.0, %v891
  %v893 = vpop.f32.mrb[0].mxu0
  %894 = vmatprep.mubr.bf16.mxu0 %v652
  %895 = vmatmul.mubr.bf16.gmra.mrb[0].mxu0 %v477
  %v896 = vpop.f32.mrb[0].mxu0
  %v897 = vadd.f32 0.0, %v896
  %v898 = vpop.f32.mrb[0].mxu0
  %v899 = vpop.f32.mrb[0].mxu0
  %v900 = vadd.f32 0.0, %v899
  %v901 = vpop.f32.mrb[0].mxu0
  %902 = vmatprep.mubr.bf16.mxu0 %v655
  %903 = vmatmul.mubr.bf16.gmra.mrb[0].mxu0 %v479
  %v904 = vpop.f32.mrb[0].mxu0
  %v905 = vadd.f32 0.0, %v904
  %v906 = vpop.f32.mrb[0].mxu0
  %v907 = vpop.f32.mrb[0].mxu0
  %v908 = vadd.f32 0.0, %v907
  %v909 = vpop.f32.mrb[0].mxu0
  %910 = vmatprep.mubr.bf16.mxu0 %v658
  %911 = vmatmul.mubr.bf16.gmra.mrb[0].mxu0 %v481
  %v912 = vpop.f32.mrb[0].mxu0
  %v913 = vadd.f32 0.0, %v912
  %v914 = vpop.f32.mrb[0].mxu0
  %v915 = vpop.f32.mrb[0].mxu0
  %v916 = vadd.f32 0.0, %v915
  %v917 = vpop.f32.mrb[0].mxu0
  %918 = vmatprep.mubr.bf16.mxu0 %v661
  %919 = vmatmul.mubr.bf16.gmra.mrb[0].mxu0 %v483
  %v920 = vpop.f32.mrb[0].mxu0
  %v921 = vadd.f32 0.0, %v920
  %v922 = vpop.f32.mrb[0].mxu0
  %v923 = vpop.f32.mrb[0].mxu0
  %v924 = vadd.f32 0.0, %v923
  %v925 = vpop.f32.mrb[0].mxu0
  %926 = vmatprep.mubr.bf16.mxu0 %v664
  %927 = vmatmul.mubr.bf16.gmra.mrb[0].mxu0 %v485
  %v928 = vpop.f32.mrb[0].mxu0
  %v929 = vadd.f32 0.0, %v928
  %v930 = vpop.f32.mrb[0].mxu0
  %v931 = vpop.f32.mrb[0].mxu0
  %v932 = vadd.f32 0.0, %v931
  %v933 = vpop.f32.mrb[0].mxu0
  %934 = vmatprep.mubr.bf16.mxu0 %v667
  %935 = vmatmul.mubr.bf16.gmra.mrb[0].mxu0 %v487
  %v936 = vpop.f32.mrb[0].mxu0
  %v937 = vadd.f32 0.0, %v936
  %v938 = vpop.f32.mrb[0].mxu0
  %v939 = vpop.f32.mrb[0].mxu0
  %v940 = vadd.f32 0.0, %v939
  %v941 = vpop.f32.mrb[0].mxu0
  %942 = vmatprep.mubr.bf16.mxu0 %v670
  %943 = vmatmul.mubr.bf16.gmra.mrb[0].mxu0 %v489
  %v944 = vpop.f32.mrb[0].mxu0
  %v945 = vadd.f32 0.0, %v944
  %v946 = vpop.f32.mrb[0].mxu0
  %v947 = vpop.f32.mrb[0].mxu0
  %v948 = vadd.f32 0.0, %v947
  %v949 = vpop.f32.mrb[0].mxu0
  %950 = vmatprep.mubr.bf16.mxu0 %v673
  %951 = vmatmul.mubr.bf16.gmra.mrb[0].mxu0 %v491
  %v952 = vpop.f32.mrb[0].mxu0
  %v953 = vadd.f32 0.0, %v952
  %v954 = vpop.f32.mrb[0].mxu0
  %v955 = vpop.f32.mrb[0].mxu0
  %v956 = vadd.f32 0.0, %v955
  %v957 = vpop.f32.mrb[0].mxu0
  %958 = vmatprep.mubr.bf16.mxu0 %v676
  %959 = vmatmul.mubr.bf16.gmra.mrb[0].mxu0 %v493
  %v960 = vpop.f32.mrb[0].mxu0
  %v961 = vadd.f32 0.0, %v960
  %v962 = vpop.f32.mrb[0].mxu0
  %v963 = vpop.f32.mrb[0].mxu0
  %v964 = vadd.f32 0.0, %v963
  %v965 = vpop.f32.mrb[0].mxu0
  %966 = vdwg.mxu0
  %v967 = vadd.f32 %v93, %v713
  %v968 = vadd.f32 %v94, %v716
  %v969 = vadd.f32 %v95, %v721
  %v970 = vadd.f32 %v96, %v724
  %v971 = vadd.f32 %v97, %v729
  %v972 = vadd.f32 %v98, %v732
  %v973 = vadd.f32 %v99, %v737
  %v974 = vadd.f32 %v100, %v740
  %v975 = vadd.f32 %v101, %v745
  %v976 = vadd.f32 %v102, %v748
  %v977 = vadd.f32 %v103, %v753
  %v978 = vadd.f32 %v104, %v756
  %v979 = vadd.f32 %v105, %v761
  %v980 = vadd.f32 %v106, %v764
  %v981 = vadd.f32 %v107, %v769
  %v982 = vadd.f32 %v108, %v772
  %v983 = vadd.f32 %v109, %v777
  %v984 = vadd.f32 %v110, %v780
  %v985 = vadd.f32 %v111, %v785
  %v986 = vadd.f32 %v112, %v788
  %v987 = vadd.f32 %v113, %v793
  %v988 = vadd.f32 %v114, %v796
  %v989 = vadd.f32 %v115, %v801
  %v990 = vadd.f32 %v116, %v804
  %v991 = vadd.f32 %v117, %v809
  %v992 = vadd.f32 %v118, %v812
  %v993 = vadd.f32 %v119, %v817
  %v994 = vadd.f32 %v120, %v820
  %v995 = vadd.f32 %v121, %v825
  %v996 = vadd.f32 %v122, %v828
  %v997 = vadd.f32 %v123, %v833
  %v998 = vadd.f32 %v124, %v836
  %v999 = vadd.f32 %v125, %v841
  %v1000 = vadd.f32 %v126, %v844
  %v1001 = vadd.f32 %v127, %v849
  %v1002 = vadd.f32 %v128, %v852
  %v1003 = vadd.f32 %v129, %v857
  %v1004 = vadd.f32 %v130, %v860
  %v1005 = vadd.f32 %v131, %v865
  %v1006 = vadd.f32 %v132, %v868
  %v1007 = vadd.f32 %v133, %v873
  %v1008 = vadd.f32 %v134, %v876
  %v1009 = vadd.f32 %v135, %v881
  %v1010 = vadd.f32 %v136, %v884
  %v1011 = vadd.f32 %v137, %v889
  %v1012 = vadd.f32 %v138, %v892
  %v1013 = vadd.f32 %v139, %v897
  %v1014 = vadd.f32 %v140, %v900
  %v1015 = vadd.f32 %v141, %v905
  %v1016 = vadd.f32 %v142, %v908
  %v1017 = vadd.f32 %v143, %v913
  %v1018 = vadd.f32 %v144, %v916
  %v1019 = vadd.f32 %v145, %v921
  %v1020 = vadd.f32 %v146, %v924
  %v1021 = vadd.f32 %v147, %v929
  %v1022 = vadd.f32 %v148, %v932
  %v1023 = vadd.f32 %v149, %v937
  %v1024 = vadd.f32 %v150, %v940
  %v1025 = vadd.f32 %v151, %v945
  %v1026 = vadd.f32 %v152, %v948
  %v1027 = vadd.f32 %v153, %v953
  %v1028 = vadd.f32 %v154, %v956
  %v1029 = vadd.f32 %v155, %v961
  %v1030 = vadd.f32 %v156, %v964
  %vm1031 = vcmask 7168
  %1032 = vst.msk [vmem:[#allocation2] sm:$0xff] %vm1031, %v967
  %1033 = vst.msk [vmem:[#allocation2 + $0x8] sm:$0xff] %vm1031, %v968
  %1034 = vst.msk [vmem:[#allocation2 + $0x10] sm:$0xff] %vm1031, %v969
  %1035 = vst.msk [vmem:[#allocation2 + $0x18] sm:$0xff] %vm1031, %v970
  %1036 = vst.msk [vmem:[#allocation2 + $0x20] sm:$0xff] %vm1031, %v971
  %1037 = vst.msk [vmem:[#allocation2 + $0x28] sm:$0xff] %vm1031, %v972
  %1038 = vst.msk [vmem:[#allocation2 + $0x30] sm:$0xff] %vm1031, %v973
  %1039 = vst.msk [vmem:[#allocation2 + $0x38] sm:$0xff] %vm1031, %v974
  %1040 = vst.msk [vmem:[#allocation2 + $0x40] sm:$0xff] %vm1031, %v975
  %1041 = vst.msk [vmem:[#allocation2 + $0x48] sm:$0xff] %vm1031, %v976
  %1042 = vst.msk [vmem:[#allocation2 + $0x50] sm:$0xff] %vm1031, %v977
  %1043 = vst.msk [vmem:[#allocation2 + $0x58] sm:$0xff] %vm1031, %v978
  %1044 = vst.msk [vmem:[#allocation2 + $0x60] sm:$0xff] %vm1031, %v979
  %1045 = vst.msk [vmem:[#allocation2 + $0x68] sm:$0xff] %vm1031, %v980
  %1046 = vst.msk [vmem:[#allocation2 + $0x70] sm:$0xff] %vm1031, %v981
  %1047 = vst.msk [vmem:[#allocation2 + $0x78] sm:$0xff] %vm1031, %v982
  %1048 = vst.msk [vmem:[#allocation2 + $0x80] sm:$0xff] %vm1031, %v983
  %1049 = vst.msk [vmem:[#allocation2 + $0x88] sm:$0xff] %vm1031, %v984
  %1050 = vst.msk [vmem:[#allocation2 + $0x90] sm:$0xff] %vm1031, %v985
  %1051 = vst.msk [vmem:[#allocation2 + $0x98] sm:$0xff] %vm1031, %v986
  %1052 = vst.msk [vmem:[#allocation2 + $0xa0] sm:$0xff] %vm1031, %v987
  %1053 = vst.msk [vmem:[#allocation2 + $0xa8] sm:$0xff] %vm1031, %v988
  %1054 = vst.msk [vmem:[#allocation2 + $0xb0] sm:$0xff] %vm1031, %v989
  %1055 = vst.msk [vmem:[#allocation2 + $0xb8] sm:$0xff] %vm1031, %v990
  %1056 = vst.msk [vmem:[#allocation2 + $0xc0] sm:$0xff] %vm1031, %v991
  %1057 = vst.msk [vmem:[#allocation2 + $0xc8] sm:$0xff] %vm1031, %v992
  %1058 = vst.msk [vmem:[#allocation2 + $0xd0] sm:$0xff] %vm1031, %v993
  %1059 = vst.msk [vmem:[#allocation2 + $0xd8] sm:$0xff] %vm1031, %v994
  %1060 = vst.msk [vmem:[#allocation2 + $0xe0] sm:$0xff] %vm1031, %v995
  %1061 = vst.msk [vmem:[#allocation2 + $0xe8] sm:$0xff] %vm1031, %v996
  %1062 = vst.msk [vmem:[#allocation2 + $0xf0] sm:$0xff] %vm1031, %v997
  %1063 = vst.msk [vmem:[#allocation2 + $0xf8] sm:$0xff] %vm1031, %v998
  %1064 = vst.msk [vmem:[#allocation2 + $0x100] sm:$0xff] %vm1031, %v999
  %1065 = vst.msk [vmem:[#allocation2 + $0x108] sm:$0xff] %vm1031, %v1000
  %1066 = vst.msk [vmem:[#allocation2 + $0x110] sm:$0xff] %vm1031, %v1001
  %1067 = vst.msk [vmem:[#allocation2 + $0x118] sm:$0xff] %vm1031, %v1002
  %1068 = vst.msk [vmem:[#allocation2 + $0x120] sm:$0xff] %vm1031, %v1003
  %1069 = vst.msk [vmem:[#allocation2 + $0x128] sm:$0xff] %vm1031, %v1004
  %1070 = vst.msk [vmem:[#allocation2 + $0x130] sm:$0xff] %vm1031, %v1005
  %1071 = vst.msk [vmem:[#allocation2 + $0x138] sm:$0xff] %vm1031, %v1006
  %1072 = vst.msk [vmem:[#allocation2 + $0x140] sm:$0xff] %vm1031, %v1007
  %1073 = vst.msk [vmem:[#allocation2 + $0x148] sm:$0xff] %vm1031, %v1008
  %1074 = vst.msk [vmem:[#allocation2 + $0x150] sm:$0xff] %vm1031, %v1009
  %1075 = vst.msk [vmem:[#allocation2 + $0x158] sm:$0xff] %vm1031, %v1010
  %1076 = vst.msk [vmem:[#allocation2 + $0x160] sm:$0xff] %vm1031, %v1011
  %1077 = vst.msk [vmem:[#allocation2 + $0x168] sm:$0xff] %vm1031, %v1012
  %1078 = vst.msk [vmem:[#allocation2 + $0x170] sm:$0xff] %vm1031, %v1013
  %1079 = vst.msk [vmem:[#allocation2 + $0x178] sm:$0xff] %vm1031, %v1014
  %1080 = vst.msk [vmem:[#allocation2 + $0x180] sm:$0xff] %vm1031, %v1015
  %1081 = vst.msk [vmem:[#allocation2 + $0x188] sm:$0xff] %vm1031, %v1016
  %1082 = vst.msk [vmem:[#allocation2 + $0x190] sm:$0xff] %vm1031, %v1017
  %1083 = vst.msk [vmem:[#allocation2 + $0x198] sm:$0xff] %vm1031, %v1018
  %1084 = vst.msk [vmem:[#allocation2 + $0x1a0] sm:$0xff] %vm1031, %v1019
  %1085 = vst.msk [vmem:[#allocation2 + $0x1a8] sm:$0xff] %vm1031, %v1020
  %1086 = vst.msk [vmem:[#allocation2 + $0x1b0] sm:$0xff] %vm1031, %v1021
  %1087 = vst.msk [vmem:[#allocation2 + $0x1b8] sm:$0xff] %vm1031, %v1022
  %1088 = vst.msk [vmem:[#allocation2 + $0x1c0] sm:$0xff] %vm1031, %v1023
  %1089 = vst.msk [vmem:[#allocation2 + $0x1c8] sm:$0xff] %vm1031, %v1024
  %1090 = vst.msk [vmem:[#allocation2 + $0x1d0] sm:$0xff] %vm1031, %v1025
  %1091 = vst.msk [vmem:[#allocation2 + $0x1d8] sm:$0xff] %vm1031, %v1026
  %1092 = vst.msk [vmem:[#allocation2 + $0x1e0] sm:$0xff] %vm1031, %v1027
  %1093 = vst.msk [vmem:[#allocation2 + $0x1e8] sm:$0xff] %vm1031, %v1028
  %1094 = vst.msk [vmem:[#allocation2 + $0x1f0] sm:$0xff] %vm1031, %v1029
  %1095 = vst.msk [vmem:[#allocation2 + $0x1f8] sm:$0xff] %vm1031, %v1030
  // Predicated region
  $region18: #{diffusion_unet_forward.13} parent=0 // pred_check
    %p1096 = pneg %p17
  $region19: #{diffusion_unet_forward.13} parent=0 // pred_check_branch
    %1098 = sbr.rel (%p1096) target = $region21
  $region20: #{diffusion_unet_forward.13} parent=0 // pred_region
    %v1099 = vld [vmem:[#allocation2] sm:$0xff]
    %v1100 = vld [vmem:[#allocation2 + $0x8] sm:$0xff]
    %v1101 = vld [vmem:[#allocation2 + $0x10] sm:$0xff]
    %v1102 = vld [vmem:[#allocation2 + $0x18] sm:$0xff]
    %v1103 = vld [vmem:[#allocation2 + $0x20] sm:$0xff]
    %v1104 = vld [vmem:[#allocation2 + $0x28] sm:$0xff]
    %v1105 = vld [vmem:[#allocation2 + $0x30] sm:$0xff]
    %v1106 = vld [vmem:[#allocation2 + $0x38] sm:$0xff]
    %v1107 = vld [vmem:[#allocation2 + $0x40] sm:$0xff]
    %v1108 = vld [vmem:[#allocation2 + $0x48] sm:$0xff]
    %v1109 = vld [vmem:[#allocation2 + $0x50] sm:$0xff]
    %v1110 = vld [vmem:[#allocation2 + $0x58] sm:$0xff]
    %v1111 = vld [vmem:[#allocation2 + $0x60] sm:$0xff]
    %v1112 = vld [vmem:[#allocation2 + $0x68] sm:$0xff]
    %v1113 = vld [vmem:[#allocation2 + $0x70] sm:$0xff]
    %v1114 = vld [vmem:[#allocation2 + $0x78] sm:$0xff]
    %v1115 = vld [vmem:[#allocation2 + $0x80] sm:$0xff]
    %v1116 = vld [vmem:[#allocation2 + $0x88] sm:$0xff]
    %v1117 = vld [vmem:[#allocation2 + $0x90] sm:$0xff]
    %v1118 = vld [vmem:[#allocation2 + $0x98] sm:$0xff]
    %v1119 = vld [vmem:[#allocation2 + $0xa0] sm:$0xff]
    %v1120 = vld [vmem:[#allocation2 + $0xa8] sm:$0xff]
    %v1121 = vld [vmem:[#allocation2 + $0xb0] sm:$0xff]
    %v1122 = vld [vmem:[#allocation2 + $0xb8] sm:$0xff]
    %v1123 = vld [vmem:[#allocation2 + $0xc0] sm:$0xff]
    %v1124 = vld [vmem:[#allocation2 + $0xc8] sm:$0xff]
    %v1125 = vld [vmem:[#allocation2 + $0xd0] sm:$0xff]
    %v1126 = vld [vmem:[#allocation2 + $0xd8] sm:$0xff]
    %v1127 = vld [vmem:[#allocation2 + $0xe0] sm:$0xff]
    %v1128 = vld [vmem:[#allocation2 + $0xe8] sm:$0xff]
    %v1129 = vld [vmem:[#allocation2 + $0xf0] sm:$0xff]
    %v1130 = vld [vmem:[#allocation2 + $0xf8] sm:$0xff]
    %v1131 = vld [vmem:[#allocation2 + $0x100] sm:$0xff]
    %v1132 = vld [vmem:[#allocation2 + $0x108] sm:$0xff]
    %v1133 = vld [vmem:[#allocation2 + $0x110] sm:$0xff]
    %v1134 = vld [vmem:[#allocation2 + $0x118] sm:$0xff]
    %v1135 = vld [vmem:[#allocation2 + $0x120] sm:$0xff]
    %v1136 = vld [vmem:[#allocation2 + $0x128] sm:$0xff]
    %v1137 = vld [vmem:[#allocation2 + $0x130] sm:$0xff]
    %v1138 = vld [vmem:[#allocation2 + $0x138] sm:$0xff]
    %v1139 = vld [vmem:[#allocation2 + $0x140] sm:$0xff]
    %v1140 = vld [vmem:[#allocation2 + $0x148] sm:$0xff]
    %v1141 = vld [vmem:[#allocation2 + $0x150] sm:$0xff]
    %v1142 = vld [vmem:[#allocation2 + $0x158] sm:$0xff]
    %v1143 = vld [vmem:[#allocation2 + $0x160] sm:$0xff]
    %v1144 = vld [vmem:[#allocation2 + $0x168] sm:$0xff]
    %v1145 = vld [vmem:[#allocation2 + $0x170] sm:$0xff]
    %v1146 = vld [vmem:[#allocation2 + $0x178] sm:$0xff]
    %v1147 = vld [vmem:[#allocation2 + $0x180] sm:$0xff]
    %v1148 = vld [vmem:[#allocation2 + $0x188] sm:$0xff]
    %v1149 = vld [vmem:[#allocation2 + $0x190] sm:$0xff]
    %v1150 = vld [vmem:[#allocation2 + $0x198] sm:$0xff]
    %v1151 = vld [vmem:[#allocation2 + $0x1a0] sm:$0xff]
    %v1152 = vld [vmem:[#allocation2 + $0x1a8] sm:$0xff]
    %v1153 = vld [vmem:[#allocation2 + $0x1b0] sm:$0xff]
    %v1154 = vld [vmem:[#allocation2 + $0x1b8] sm:$0xff]
    %v1155 = vld [vmem:[#allocation2 + $0x1c0] sm:$0xff]
    %v1156 = vld [vmem:[#allocation2 + $0x1c8] sm:$0xff]
    %v1157 = vld [vmem:[#allocation2 + $0x1d0] sm:$0xff]
    %v1158 = vld [vmem:[#allocation2 + $0x1d8] sm:$0xff]
    %v1159 = vld [vmem:[#allocation2 + $0x1e0] sm:$0xff]
    %v1160 = vld [vmem:[#allocation2 + $0x1e8] sm:$0xff]
    %v1161 = vld [vmem:[#allocation2 + $0x1f0] sm:$0xff]
    %v1162 = vld [vmem:[#allocation2 + $0x1f8] sm:$0xff]
    %1163 = vst.msk [vmem:[%s3] sm:$0xff] %vm1031, %v1099
    %1164 = vst.msk [vmem:[%s3 + $0x8] sm:$0xff] %vm1031, %v1100
    %1165 = vst.msk [vmem:[%s3 + $0x10] sm:$0xff] %vm1031, %v1101
    %1166 = vst.msk [vmem:[%s3 + $0x18] sm:$0xff] %vm1031, %v1102
    %1167 = vst.msk [vmem:[%s3 + $0x20] sm:$0xff] %vm1031, %v1103
    %1168 = vst.msk [vmem:[%s3 + $0x28] sm:$0xff] %vm1031, %v1104
    %1169 = vst.msk [vmem:[%s3 + $0x30] sm:$0xff] %vm1031, %v1105
    %1170 = vst.msk [vmem:[%s3 + $0x38] sm:$0xff] %vm1031, %v1106
    %1171 = vst.msk [vmem:[%s3 + $0x40] sm:$0xff] %vm1031, %v1107
    %1172 = vst.msk [vmem:[%s3 + $0x48] sm:$0xff] %vm1031, %v1108
    %1173 = vst.msk [vmem:[%s3 + $0x50] sm:$0xff] %vm1031, %v1109
    %1174 = vst.msk [vmem:[%s3 + $0x58] sm:$0xff] %vm1031, %v1110
    %1175 = vst.msk [vmem:[%s3 + $0x60] sm:$0xff] %vm1031, %v1111
    %1176 = vst.msk [vmem:[%s3 + $0x68] sm:$0xff] %vm1031, %v1112
    %1177 = vst.msk [vmem:[%s3 + $0x70] sm:$0xff] %vm1031, %v1113
    %1178 = vst.msk [vmem:[%s3 + $0x78] sm:$0xff] %vm1031, %v1114
    %1179 = vst.msk [vmem:[%s3 + $0x80] sm:$0xff] %vm1031, %v1115
    %1180 = vst.msk [vmem:[%s3 + $0x88] sm:$0xff] %vm1031, %v1116
    %1181 = vst.msk [vmem:[%s3 + $0x90] sm:$0xff] %vm1031, %v1117
    %1182 = vst.msk [vmem:[%s3 + $0x98] sm:$0xff] %vm1031, %v1118
    %1183 = vst.msk [vmem:[%s3 + $0xa0] sm:$0xff] %vm1031, %v1119
    %1184 = vst.msk [vmem:[%s3 + $0xa8] sm:$0xff] %vm1031, %v1120
    %1185 = vst.msk [vmem:[%s3 + $0xb0] sm:$0xff] %vm1031, %v1121
    %1186 = vst.msk [vmem:[%s3 + $0xb8] sm:$0xff] %vm1031, %v1122
    %1187 = vst.msk [vmem:[%s3 + $0xc0] sm:$0xff] %vm1031, %v1123
    %1188 = vst.msk [vmem:[%s3 + $0xc8] sm:$0xff] %vm1031, %v1124
    %1189 = vst.msk [vmem:[%s3 + $0xd0] sm:$0xff] %vm1031, %v1125
    %1190 = vst.msk [vmem:[%s3 + $0xd8] sm:$0xff] %vm1031, %v1126
    %1191 = vst.msk [vmem:[%s3 + $0xe0] sm:$0xff] %vm1031, %v1127
    %1192 = vst.msk [vmem:[%s3 + $0xe8] sm:$0xff] %vm1031, %v1128
    %1193 = vst.msk [vmem:[%s3 + $0xf0] sm:$0xff] %vm1031, %v1129
    %1194 = vst.msk [vmem:[%s3 + $0xf8] sm:$0xff] %vm1031, %v1130
    %1195 = vst.msk [vmem:[%s3 + $0x100] sm:$0xff] %vm1031, %v1131
    %1196 = vst.msk [vmem:[%s3 + $0x108] sm:$0xff] %vm1031, %v1132
    %1197 = vst.msk [vmem:[%s3 + $0x110] sm:$0xff] %vm1031, %v1133
    %1198 = vst.msk [vmem:[%s3 + $0x118] sm:$0xff] %vm1031, %v1134
    %1199 = vst.msk [vmem:[%s3 + $0x120] sm:$0xff] %vm1031, %v1135
    %1200 = vst.msk [vmem:[%s3 + $0x128] sm:$0xff] %vm1031, %v1136
    %1201 = vst.msk [vmem:[%s3 + $0x130] sm:$0xff] %vm1031, %v1137
    %1202 = vst.msk [vmem:[%s3 + $0x138] sm:$0xff] %vm1031, %v1138
    %1203 = vst.msk [vmem:[%s3 + $0x140] sm:$0xff] %vm1031, %v1139
    %1204 = vst.msk [vmem:[%s3 + $0x148] sm:$0xff] %vm1031, %v1140
    %1205 = vst.msk [vmem:[%s3 + $0x150] sm:$0xff] %vm1031, %v1141
    %1206 = vst.msk [vmem:[%s3 + $0x158] sm:$0xff] %vm1031, %v1142
    %1207 = vst.msk [vmem:[%s3 + $0x160] sm:$0xff] %vm1031, %v1143
    %1208 = vst.msk [vmem:[%s3 + $0x168] sm:$0xff] %vm1031, %v1144
    %1209 = vst.msk [vmem:[%s3 + $0x170] sm:$0xff] %vm1031, %v1145
    %1210 = vst.msk [vmem:[%s3 + $0x178] sm:$0xff] %vm1031, %v1146
    %1211 = vst.msk [vmem:[%s3 + $0x180] sm:$0xff] %vm1031, %v1147
    %1212 = vst.msk [vmem:[%s3 + $0x188] sm:$0xff] %vm1031, %v1148
    %1213 = vst.msk [vmem:[%s3 + $0x190] sm:$0xff] %vm1031, %v1149
    %1214 = vst.msk [vmem:[%s3 + $0x198] sm:$0xff] %vm1031, %v1150
    %1215 = vst.msk [vmem:[%s3 + $0x1a0] sm:$0xff] %vm1031, %v1151
    %1216 = vst.msk [vmem:[%s3 + $0x1a8] sm:$0xff] %vm1031, %v1152
    %1217 = vst.msk [vmem:[%s3 + $0x1b0] sm:$0xff] %vm1031, %v1153
    %1218 = vst.msk [vmem:[%s3 + $0x1b8] sm:$0xff] %vm1031, %v1154
    %1219 = vst.msk [vmem:[%s3 + $0x1c0] sm:$0xff] %vm1031, %v1155
    %1220 = vst.msk [vmem:[%s3 + $0x1c8] sm:$0xff] %vm1031, %v1156
    %1221 = vst.msk [vmem:[%s3 + $0x1d0] sm:$0xff] %vm1031, %v1157
    %1222 = vst.msk [vmem:[%s3 + $0x1d8] sm:$0xff] %vm1031, %v1158
    %1223 = vst.msk [vmem:[%s3 + $0x1e0] sm:$0xff] %vm1031, %v1159
    %1224 = vst.msk [vmem:[%s3 + $0x1e8] sm:$0xff] %vm1031, %v1160
    %1225 = vst.msk [vmem:[%s3 + $0x1f0] sm:$0xff] %vm1031, %v1161
    %1226 = vst.msk [vmem:[%s3 + $0x1f8] sm:$0xff] %vm1031, %v1162
  $region21: #{diffusion_unet_forward.13} parent=0 // pred_fallthru
    _
  // Predicated region
  $region22: #{diffusion_unet_forward.13} parent=0 // pred_check
    _
  $region23: #{diffusion_unet_forward.13} parent=0 // pred_check_branch
    %1228 = sbr.rel (0) target = $region25
  $region24: #{diffusion_unet_forward.13} parent=0 // pred_region
    _
  $region25: #{diffusion_unet_forward.13} parent=0 // pred_fallthru
    _
  // Predicated region
  $region26: #{diffusion_unet_forward.13} parent=0 // pred_check
    _
  $region27: #{diffusion_unet_forward.13} parent=0 // pred_check_branch
    %1230 = sbr.rel (0) target = $region29
  $region28: #{diffusion_unet_forward.13} parent=0 // pred_region
    _
  $region29: #{diffusion_unet_forward.13} parent=0 // pred_fallthru
    _

</llo_original>
